<compile_context>
chip_gen: v7x
topology: tpu7x:2x2x1
jax: 0.10.0
libtpu: 0.0.40
codegen_flags: <defaults>
</compile_context>

<pallas_src>
import functools
import math

import numpy as np
import jax
import jax.numpy as jnp
from jax import lax
from jax.experimental import pallas as pl
from jax.experimental.pallas import tpu as pltpu

# ----------------------------- configuration -------------------------------
RESIZE = 64                 # small synthetic input size
SCALES = [24.0, 48.0]
RATIOS = [1.0, 0.5, 2.0]
STRIDES = [8, 16]
NUM_CLASSES = 8             # including background class 0
MASK_DIM = 8
TOPN = 64
MAX_OBJ = 16
MIN_SCORE = 0.05
NMS_THRESH = 0.5
MAX_FEATURE_UPSAMPLE = 8    # only used for empty outputs in the reference


# ------------------------------ Pallas kernels ------------------------------
def fused_scores_boxes_kernel(cls_ref, reg_ref, anchor_ref, scores_ref, boxes_ref,
                              *, n_valid):
    """Fused per-image class softmax (+ prekeep mask) and anchor box decode.

    Lane-dense layouts (classes / coords on sublanes, anchors on lanes):
      cls_ref    [C, Np]    raw class logits (transposed, lane-padded)
      reg_ref    [4, Np]    raw box regression (SoA)
      anchor_ref [4, Np]    anchors (cx, cy, w, h) (SoA)
      scores_ref [C-1, Np]  fg softmax scores; -1 where max fg score <= MIN_SCORE
                            or lane >= n_valid (padding)
      boxes_ref  [4, Np]    decoded (x1, y1, x2, y2) clipped to [0, 1]  (SoA)
    """
    x = cls_ref[...]                                          # [C, Np]
    m = jnp.max(x, axis=0, keepdims=True)
    e = jnp.exp(x - m)
    # exact divide: scores feed threshold / NMS ordering decisions
    sm = e / jnp.sum(e, axis=0, keepdims=True)
    fg = sm[1:, :]                                            # drop background class
    max_fg = jnp.max(fg, axis=0, keepdims=True)               # [1, Np]
    lane = lax.broadcasted_iota(jnp.int32, (1, fg.shape[1]), 1)
    keep = jnp.logical_and(lane < n_valid, max_fg > MIN_SCORE)
    scores_ref[...] = jnp.where(keep, fg, -1.0)

    a = anchor_ref[...]                                       # [4, Np]
    r = reg_ref[...]                                          # [4, Np]
    ctr = a[0:2, :] + r[0:2, :] * 0.1 * a[2:4, :]             # [2, Np]
    wh = a[2:4, :] * jnp.exp(r[2:4, :] * 0.2)                 # [2, Np]
    tl = ctr - 0.5 * wh
    br = tl + wh
    boxes = jnp.concatenate([tl, br], axis=0)                 # [4, Np], single store
    boxes_ref[...] = jnp.clip(boxes, 0.0, 1.0)


def pallas_scores_boxes(cls_t, reg_t, anchors_soa, n_valid):
    B, C, Np = cls_t.shape
    cc = C - 1
    kernel = functools.partial(fused_scores_boxes_kernel, n_valid=n_valid)
    return pl.pallas_call(
        kernel,
        out_shape=(jax.ShapeDtypeStruct((B, cc, Np), jnp.float32),
                   jax.ShapeDtypeStruct((B, 4, Np), jnp.float32)),
        grid=(B,),
        in_specs=[pl.BlockSpec((None, C, Np), lambda b: (b, 0, 0)),
                  pl.BlockSpec((None, 4, Np), lambda b: (b, 0, 0)),
                  pl.BlockSpec((4, Np), lambda b: (0, 0))],
        out_specs=(pl.BlockSpec((None, cc, Np), lambda b: (b, 0, 0)),
                   pl.BlockSpec((None, 4, Np), lambda b: (b, 0, 0))),
        compiler_params=pltpu.CompilerParams(dimension_semantics=("parallel",)),
    )(cls_t, reg_t, anchors_soa)


def iou_nms_kernel(boxes_ref, idx_ref, scores_ref, o_ref):
    """Fast-NMS with the per-class top-k box gather fused in.

      boxes_ref  [4, Np]  decoded boxes, SoA (x1, y1, x2, y2)
      idx_ref    [cc, T]  per-class top-T anchor indices (int32, descending score)
      scores_ref [cc, T]  per-class top-T scores
      o_ref      [cc, T]  score if kept (no higher-ranked box with IoU > thresh)
                          else -1
    """
    bsoa = boxes_ref[...]                                      # [4, Np]
    idx = idx_ref[...]                                         # [cc, T] int32
    cc, T = idx.shape
    Np = bsoa.shape[1]

    # in-kernel gather: one-hot select over the lane (anchor) axis
    n_iota = lax.broadcasted_iota(jnp.int32, (cc, T, Np), 2)
    onehot = idx[:, :, None] == n_iota                         # [cc, T, Np] bool
    b4 = bsoa.reshape(4, 1, 1, Np)

    def gather(k):
        return jnp.sum(jnp.where(onehot, b4[k], 0.0), axis=-1)  # [cc, T]

    x1 = gather(0); y1 = gather(1); x2 = gather(2); y2 = gather(3)
    area = (x2 - x1) * (y2 - y1)                               # [cc, T]

    iw = jnp.maximum(jnp.minimum(x2[:, :, None], x2[:, None, :])
                     - jnp.maximum(x1[:, :, None], x1[:, None, :]), 0.0)
    ih = jnp.maximum(jnp.minimum(y2[:, :, None], y2[:, None, :])
                     - jnp.maximum(y1[:, :, None], y1[:, None, :]), 0.0)
    inter = iw * ih                                            # [cc, T, T]
    denom = area[:, :, None] + area[:, None, :] - inter        # >= 0

    # divide-free suppression: iou > thresh  <=>  inter > thresh * denom.
    # NOTE: for fully-degenerate pairs (denom == 0) the reference would produce
    # NaN IoU; here they simply don't suppress (scores of degenerate/padded
    # anchors are -1 and filtered out downstream anyway).
    r_i = lax.broadcasted_iota(jnp.int32, (1, T, T), 1)
    c_i = lax.broadcasted_iota(jnp.int32, (1, T, T), 2)
    tri = r_i < c_i                                            # triu(diagonal=1)
    supp = jnp.where(jnp.logical_and(inter > NMS_THRESH * denom, tri), 1.0, 0.0)
    suppressed = jnp.max(supp, axis=1) > 0.0                   # [cc, T]
    o_ref[...] = jnp.where(suppressed, -1.0, scores_ref[...])


def pallas_iou_nms(boxes_soa, top_idx, top_scores):
    B, cc, T = top_scores.shape
    Np = boxes_soa.shape[2]
    return pl.pallas_call(
        iou_nms_kernel,
        out_shape=jax.ShapeDtypeStruct((B, cc, T), jnp.float32),
        grid=(B,),
        in_specs=[pl.BlockSpec((None, 4, Np), lambda b: (b, 0, 0)),
                  pl.BlockSpec((None, cc, T), lambda b: (b, 0, 0)),
                  pl.BlockSpec((None, cc, T), lambda b: (b, 0, 0))],
        out_specs=pl.BlockSpec((None, cc, T), lambda b: (b, 0, 0)),
        compiler_params=pltpu.CompilerParams(dimension_semantics=("parallel",)),
    )(boxes_soa, top_idx, top_scores)


def mask_crop_kernel(coef_ref, proto_t_ref, boxes_ref, grid_ref, o_ref,
                     *, Hp, Wp, padding):
    """masks = sigmoid(coef @ proto^T) * bbox crop, in [n, P] orientation.

      coef_ref    [n, md]
      proto_t_ref [md, P]   (P = Hp*Wp on lanes)
      boxes_ref   [n, 4]    (x1, y1, x2, y2) relative
      grid_ref    [2, P]    row 0 = pixel x, row 1 = pixel y (precomputed)
      o_ref       [n, P]
    """
    m = jax.nn.sigmoid(jnp.dot(coef_ref[...], proto_t_ref[...],
                               preferred_element_type=jnp.float32))   # [n, P]
    xs = grid_ref[0:1, :]                                             # [1, P]
    ys = grid_ref[1:2, :]
    bx1 = boxes_ref[:, 0:1] * float(Wp)                               # [n, 1]
    by1 = boxes_ref[:, 1:2] * float(Hp)
    bx2 = boxes_ref[:, 2:3] * float(Wp)
    by2 = boxes_ref[:, 3:4] * float(Hp)
    # sanitize_coordinates (min/max, +/- padding, clamp)
    x1 = jnp.maximum(jnp.minimum(bx1, bx2) - padding, 0.0)
    x2 = jnp.minimum(jnp.maximum(bx1, bx2) + padding, float(Wp))
    y1 = jnp.maximum(jnp.minimum(by1, by2) - padding, 0.0)
    y2 = jnp.minimum(jnp.maximum(by1, by2) + padding, float(Hp))
    crop = ((xs >= x1) & (xs < x2) & (ys >= y1) & (ys < y2)).astype(jnp.float32)
    o_ref[...] = m * crop


def pallas_masks(coefs, proto_t, boxes, grid_xy, Hp, Wp, padding=1.0):
    B, n, md = coefs.shape
    P = Hp * Wp
    kernel = functools.partial(mask_crop_kernel, Hp=Hp, Wp=Wp, padding=padding)
    return pl.pallas_call(
        kernel,
        out_shape=jax.ShapeDtypeStruct((B, n, P), jnp.float32),
        grid=(B,),
        in_specs=[pl.BlockSpec((None, n, md), lambda b: (b, 0, 0)),
                  pl.BlockSpec((None, md, P), lambda b: (b, 0, 0)),
                  pl.BlockSpec((None, n, 4), lambda b: (b, 0, 0)),
                  pl.BlockSpec((2, P), lambda b: (0, 0))],
        out_specs=pl.BlockSpec((None, n, P), lambda b: (b, 0, 0)),
        compiler_params=pltpu.CompilerParams(dimension_semantics=("parallel",)),
    )(coefs, proto_t, boxes, grid_xy)


# ------------------------------ anchors (glue) ------------------------------
def build_anchors(feature_sizes):
    """feature_sizes: tuple of (fw, fh) per level. Returns [N, 4] (cx, cy, w, h) rel."""
    per_level = []
    for (fw, fh), scale in zip(feature_sizes, SCALES):
        ys = (np.arange(fh, dtype=np.float32) + 0.5) / fh
        xs = (np.arange(fw, dtype=np.float32) + 0.5) / fw
        gy, gx = np.meshgrid(ys, xs, indexing='ij')           # [fh, fw]
        A = len(RATIOS)
        anc = np.zeros((fh, fw, A, 4), dtype=np.float32)
        for a, r in enumerate(RATIOS):
            ar = math.sqrt(r)
            anc[..., a, 0] = gx
            anc[..., a, 1] = gy
            anc[..., a, 2] = scale * ar / RESIZE
            anc[..., a, 3] = scale / ar / RESIZE
        per_level.append(anc.reshape(-1, 4))
    return np.concatenate(per_level, axis=0)


@functools.lru_cache(maxsize=None)
def cached_anchors_soa(feature_sizes, n_pad):
    """[4, n_pad] f32 SoA anchors, cached on device (zero-padded past N)."""
    anc = build_anchors(feature_sizes)                              # [N, 4]
    n = anc.shape[0]
    if n_pad > n:
        anc = np.concatenate([anc, np.zeros((n_pad - n, 4), np.float32)], axis=0)
    return jnp.asarray(anc.T)


@functools.lru_cache(maxsize=None)
def cached_pixel_grid(Hp, Wp):
    """[2, Hp*Wp] f32 table: row 0 = x (p % Wp), row 1 = y (p // Wp); cached."""
    ys, xs = np.meshgrid(np.arange(Hp, dtype=np.float32),
                         np.arange(Wp, dtype=np.float32), indexing='ij')
    return jnp.asarray(np.stack([xs.reshape(-1), ys.reshape(-1)], axis=0))


# -------------------------- jitted device decode core -----------------------
@jax.jit
def _decode_core(class_levels, box_levels, coef_levels, proto, anchors_soa, grid_xy):
    B = proto.shape[0]
    Hp, Wp, md = proto.shape[1], proto.shape[2], proto.shape[3]
    P = Hp * Wp

    cls = jnp.concatenate(
        [p.reshape(B, -1, p.shape[-1]) for p in class_levels], axis=1)   # [B, N, C]
    box = jnp.concatenate(
        [p.reshape(B, -1, 4) for p in box_levels], axis=1)               # [B, N, 4]
    coef = jnp.concatenate(
        [p.reshape(B, -1, md) for p in coef_levels], axis=1)             # [B, N, md]
    C = cls.shape[2]
    cc = C - 1
    N = cls.shape[1]

    # pad the anchor axis to a lane-dense multiple of 128 (padding masked in-kernel)
    Np = ((N + 127) // 128) * 128
    pad = Np - N
    if pad:
        cls = jnp.pad(cls, ((0, 0), (0, pad), (0, 0)))
        box = jnp.pad(box, ((0, 0), (0, pad), (0, 0)))
        coef = jnp.pad(coef, ((0, 0), (0, pad), (0, 0)))

    cls_t = jnp.transpose(cls, (0, 2, 1))                                # [B, C, Np]
    reg_t = jnp.transpose(box, (0, 2, 1))                                # [B, 4, Np]

    # fused softmax + prekeep masking + box decode (Pallas, grid=(B,))
    scores, boxes_soa = pallas_scores_boxes(cls_t, reg_t, anchors_soa, N)

    # ---- fast_nms: per-class top-k, then fused gather + divide-free IoU NMS ----
    top_scores, top_idx = lax.top_k(scores, TOPN)                        # [B, cc, T]
    kept_scores = pallas_iou_nms(boxes_soa, top_idx, top_scores)         # [B, cc, T]

    flat_scores = kept_scores.reshape(B, cc * TOPN)
    final_scores, flat_idx = lax.top_k(flat_scores, MAX_OBJ)             # [B, MAX_OBJ]
    final_ids = (flat_idx // TOPN).astype(jnp.int32)                     # class id

    # gather boxes/coefs only for the final MAX_OBJ detections (by anchor index)
    anchor_idx = jnp.take_along_axis(top_idx.reshape(B, cc * TOPN), flat_idx, axis=1)
    final_boxes = jnp.transpose(
        jnp.take_along_axis(boxes_soa, anchor_idx[:, None, :], axis=2),
        (0, 2, 1))                                                       # [B, MAX_OBJ, 4]
    final_coefs = jnp.take_along_axis(coef, anchor_idx[:, :, None], axis=1)  # [B, MAX_OBJ, md]

    # ---- masks: sigmoid(coef @ proto^T) + crop (Pallas, [n, P] orientation) ----
    proto_t = jnp.transpose(proto.reshape(B, P, md), (0, 2, 1))          # [B, md, P]
    masks = pallas_masks(final_coefs, proto_t, final_boxes, grid_xy, Hp, Wp,
                         padding=1.0)                                    # [B, MAX_OBJ, P]
    masks = masks.reshape(B, MAX_OBJ, Hp, Wp)
    return masks, final_ids, final_scores


@functools.partial(jax.jit, static_argnums=(1, 2, 3, 4))
def _postprocess_masks(masks, b, mo, oh, ow):
    """Per-image bilinear upsample + threshold + crop, jitted with static sizes."""
    # TODO(synk): bilinear upsample kept as jax.image.resize glue (no clean Pallas
    # equivalent for generic bilinear interpolation here).
    up = jax.image.resize(masks[b], (masks.shape[1], mo, mo), method='bilinear')
    return (up > 0.5)[:, :oh, :ow]


# ------------------------------- decoder glue -------------------------------
def yolact_decode(preds, scaled_sizes, origin_sizes):
    class_preds_levels, box_preds_levels, coef_preds_levels, proto_outs, _ = preds
    del scaled_sizes  # unused in the reference forward as well
    B = proto_outs.shape[0]
    A = len(RATIOS)
    feature_sizes = tuple((int(p.shape[2]), int(p.shape[1]))
                          for p in class_preds_levels)                   # (W, H)
    N = sum(fw * fh * A for (fw, fh) in feature_sizes)
    Np = ((N + 127) // 128) * 128
    anchors_soa = cached_anchors_soa(feature_sizes, Np)                  # cached [4, Np]
    Hp, Wp = int(proto_outs.shape[1]), int(proto_outs.shape[2])
    grid_xy = cached_pixel_grid(Hp, Wp)                                  # cached [2, P]

    masks, final_ids, final_scores = _decode_core(
        tuple(class_preds_levels), tuple(box_preds_levels),
        tuple(coef_preds_levels), proto_outs, anchors_soa, grid_xy)

    masks_bin = []
    for b in range(B):
        oh = int(origin_sizes[b][0])
        ow = int(origin_sizes[b][1])
        mo = max(oh, ow)
        masks_bin.append(_postprocess_masks(masks, b, mo, oh, ow))
    return masks_bin, final_ids, final_scores


# ---------------------------------- main ------------------------------------
if __name__ == "__main__":
    key = jax.random.PRNGKey(0)
    B = 2
    keys = jax.random.split(key, 3 * len(STRIDES) + 1)
    ki = 0
    class_preds, box_preds, coef_preds = [], [], []
    A = len(RATIOS)
    for s in STRIDES:
        f = RESIZE // s
        class_preds.append(jax.random.normal(
            keys[ki], (B, f, f, A, NUM_CLASSES), jnp.float32)); ki += 1
        box_preds.append(0.5 * jax.random.normal(
            keys[ki], (B, f, f, A, 4), jnp.float32)); ki += 1
        coef_preds.append(jax.random.normal(
            keys[ki], (B, f, f, A, MASK_DIM), jnp.float32)); ki += 1
    proto = jax.random.normal(keys[ki], (B, 16, 16, MASK_DIM), jnp.float32)

    preds = (class_preds, box_preds, coef_preds, proto, None)
    scaled_sizes = np.array([[64, 56], [56, 64]], dtype=np.int32)
    origin_sizes = np.array([[30, 26], [28, 32]], dtype=np.int32)

    masks_bin, final_ids, final_scores = yolact_decode(preds, scaled_sizes, origin_sizes)
    masks_bin, final_ids, final_scores = jax.block_until_ready(
        (masks_bin, final_ids, final_scores))

    # host-side dynamic-shape filtering (matches the reference's variable-length
    # outputs: padded / prekeep-failed / NMS-suppressed slots carry -1 scores)
    ids_np = np.asarray(final_ids)
    scores_np = np.asarray(final_scores)
    batch_masks, batch_labels, batch_scores = [], [], []
    for b in range(B):
        valid = scores_np[b] > 0.0
        batch_masks.append(np.asarray(masks_bin[b]).astype(np.uint8)[valid])
        batch_labels.append(ids_np[b].astype(np.int32)[valid])
        batch_scores.append(scores_np[b][valid].astype(np.float32))

    assert len(batch_masks) == B and len(batch_labels) == B and len(batch_scores) == B
    print("KERNEL_OK")
</pallas_src>

<mosaic_0001>
module attributes {stable_mosaic.version = 11 : i64} {
  func.func @fused_scores_boxes_kernel(%arg0: i32, %arg1: memref<1x8x256xf32, #tpu.memory_space<vmem>>, %arg2: memref<1x4x256xf32, #tpu.memory_space<vmem>>, %arg3: memref<4x256xf32, #tpu.memory_space<vmem>>, %arg4: memref<1x7x256xf32, #tpu.memory_space<vmem>>, %arg5: memref<1x4x256xf32, #tpu.memory_space<vmem>>) attributes {dimension_semantics = [#tpu.dimension_semantics<parallel>], iteration_bounds = array<i64: 2>, scalar_prefetch = 0 : i64, scratch_operands = 0 : i64, tpu.core_type = #tpu.core_type<tc>, window_params = [{transform_indices = @transform_0, window_bounds = array<i64: 1, 8, 256>}, {transform_indices = @transform_1, window_bounds = array<i64: 1, 4, 256>}, {pipeline_mode = #tpu.pipeline_mode<synchronous>, transform_indices = @transform_2, window_bounds = array<i64: 4, 256>}, {transform_indices = @transform_3, window_bounds = array<i64: 1, 7, 256>}, {transform_indices = @transform_4, window_bounds = array<i64: 1, 4, 256>}]} {
    %c0 = arith.constant 0 : index
    %c0_0 = arith.constant 0 : index
    %c0_1 = arith.constant 0 : index
    %0 = vector.load %arg1[%c0, %c0_0, %c0_1] : memref<1x8x256xf32, #tpu.memory_space<vmem>>, vector<1x8x256xf32>
    %1 = vector.shape_cast %0 : vector<1x8x256xf32> to vector<8x256xf32>
    %cst = arith.constant dense<0xFF800000> : vector<256xf32>
    %2 = vector.multi_reduction <maximumf>, %1, %cst [0] : vector<8x256xf32> to vector<256xf32>
    %3 = vector.shape_cast %2 : vector<256xf32> to vector<1x256xf32>
    %4 = vector.broadcast %3 : vector<1x256xf32> to vector<8x256xf32>
    %5 = arith.subf %1, %4 : vector<8x256xf32>
    %6 = math.exp %5 : vector<8x256xf32>
    %cst_2 = arith.constant dense<0.000000e+00> : vector<256xf32>
    %7 = vector.multi_reduction <add>, %6, %cst_2 [0] : vector<8x256xf32> to vector<256xf32>
    %8 = vector.shape_cast %7 : vector<256xf32> to vector<1x256xf32>
    %9 = vector.broadcast %8 : vector<1x256xf32> to vector<8x256xf32>
    %10 = arith.divf %6, %9 : vector<8x256xf32>
    %11 = vector.extract_strided_slice %10 {offsets = [1, 0], sizes = [7, 256], strides = [1, 1]} : vector<8x256xf32> to vector<7x256xf32>
    %cst_3 = arith.constant dense<0xFF800000> : vector<256xf32>
    %12 = vector.multi_reduction <maximumf>, %11, %cst_3 [0] : vector<7x256xf32> to vector<256xf32>
    %13 = vector.shape_cast %12 : vector<256xf32> to vector<1x256xf32>
    %14 = tpu.iota {dimensions = array<i32: 1>} : vector<1x256xi32>
    %c240_i32 = arith.constant 240 : i32
    %15 = vector.broadcast %c240_i32 : i32 to vector<1x256xi32>
    %16 = arith.cmpi slt, %14, %15 : vector<1x256xi32>
    %cst_4 = arith.constant 5.000000e-02 : f32
    %17 = vector.broadcast %cst_4 : f32 to vector<1x256xf32>
    %18 = arith.cmpf ogt, %13, %17 : vector<1x256xf32>
    %19 = arith.andi %16, %18 : vector<1x256xi1>
    %cst_5 = arith.constant -1.000000e+00 : f32
    %20 = vector.shape_cast %19 : vector<1x256xi1> to vector<1x256xi1>
    %21 = vector.broadcast %20 : vector<1x256xi1> to vector<7x256xi1>
    %22 = vector.broadcast %cst_5 : f32 to vector<7x256xf32>
    %23 = arith.select %21, %11, %22 : vector<7x256xi1>, vector<7x256xf32>
    %c0_6 = arith.constant 0 : index
    %c0_7 = arith.constant 0 : index
    %c0_8 = arith.constant 0 : index
    %24 = vector.load %arg4[%c0_6, %c0_7, %c0_8] : memref<1x7x256xf32, #tpu.memory_space<vmem>>, vector<1x7x256xf32>
    %25 = vector.shape_cast %24 : vector<1x7x256xf32> to vector<7x256xf32>
    %26 = vector.shape_cast %23 : vector<7x256xf32> to vector<1x7x256xf32>
    tpu.vector_store %arg4[%c0_6, %c0_7, %c0_8], %26 {strides = array<i32>} : memref<1x7x256xf32, #tpu.memory_space<vmem>>, vector<1x7x256xf32>,
    %c0_9 = arith.constant 0 : index
    %c0_10 = arith.constant 0 : index
    %27 = vector.load %arg3[%c0_9, %c0_10] : memref<4x256xf32, #tpu.memory_space<vmem>>, vector<4x256xf32>
    %c0_11 = arith.constant 0 : index
    %c0_12 = arith.constant 0 : index
    %c0_13 = arith.constant 0 : index
    %28 = vector.load %arg2[%c0_11, %c0_12, %c0_13] : memref<1x4x256xf32, #tpu.memory_space<vmem>>, vector<1x4x256xf32>
    %29 = vector.shape_cast %28 : vector<1x4x256xf32> to vector<4x256xf32>
    %30 = vector.extract_strided_slice %27 {offsets = [0, 0], sizes = [2, 256], strides = [1, 1]} : vector<4x256xf32> to vector<2x256xf32>
    %31 = vector.extract_strided_slice %29 {offsets = [0, 0], sizes = [2, 256], strides = [1, 1]} : vector<4x256xf32> to vector<2x256xf32>
    %cst_14 = arith.constant 1.000000e-01 : f32
    %32 = vector.broadcast %cst_14 : f32 to vector<2x256xf32>
    %33 = arith.mulf %31, %32 : vector<2x256xf32>
    %34 = vector.extract_strided_slice %27 {offsets = [2, 0], sizes = [2, 256], strides = [1, 1]} : vector<4x256xf32> to vector<2x256xf32>
    %35 = arith.mulf %33, %34 : vector<2x256xf32>
    %36 = arith.addf %30, %35 : vector<2x256xf32>
    %37 = vector.extract_strided_slice %27 {offsets = [2, 0], sizes = [2, 256], strides = [1, 1]} : vector<4x256xf32> to vector<2x256xf32>
    %38 = vector.extract_strided_slice %29 {offsets = [2, 0], sizes = [2, 256], strides = [1, 1]} : vector<4x256xf32> to vector<2x256xf32>
    %cst_15 = arith.constant 2.000000e-01 : f32
    %39 = vector.broadcast %cst_15 : f32 to vector<2x256xf32>
    %40 = arith.mulf %38, %39 : vector<2x256xf32>
    %41 = math.exp %40 : vector<2x256xf32>
    %42 = arith.mulf %37, %41 : vector<2x256xf32>
    %cst_16 = arith.constant 5.000000e-01 : f32
    %43 = vector.broadcast %cst_16 : f32 to vector<2x256xf32>
    %44 = arith.mulf %43, %42 : vector<2x256xf32>
    %45 = arith.subf %36, %44 : vector<2x256xf32>
    %46 = arith.addf %45, %42 : vector<2x256xf32>
    %47 = tpu.concatenate %45, %46 in 0 : vector<2x256xf32>, vector<2x256xf32> -> vector<4x256xf32>
    %cst_17 = arith.constant 0.000000e+00 : f32
    %cst_18 = arith.constant 1.000000e+00 : f32
    %48 = vector.broadcast %cst_17 : f32 to vector<4x256xf32>
    %49 = arith.maximumf %48, %47 : vector<4x256xf32>
    %50 = vector.broadcast %cst_18 : f32 to vector<4x256xf32>
    %51 = arith.minimumf %50, %49 : vector<4x256xf32>
    %c0_19 = arith.constant 0 : index
    %c0_20 = arith.constant 0 : index
    %c0_21 = arith.constant 0 : index
    %52 = vector.load %arg5[%c0_19, %c0_20, %c0_21] : memref<1x4x256xf32, #tpu.memory_space<vmem>>, vector<1x4x256xf32>
    %53 = vector.shape_cast %52 : vector<1x4x256xf32> to vector<4x256xf32>
    %54 = vector.shape_cast %51 : vector<4x256xf32> to vector<1x4x256xf32>
    tpu.vector_store %arg5[%c0_19, %c0_20, %c0_21], %54 {strides = array<i32>} : memref<1x4x256xf32, #tpu.memory_space<vmem>>, vector<1x4x256xf32>,
    return
  }
  func.func @transform_0(%arg0: i32) -> (i32, i32, i32) {
    %c0_i32 = arith.constant 0 : i32
    %c0_i32_0 = arith.constant 0 : i32
    %c0_i32_1 = arith.constant 0 : i32
    return %arg0, %c0_i32, %c0_i32_0 : i32, i32, i32
  }
  func.func @transform_1(%arg0: i32) -> (i32, i32, i32) {
    %c0_i32 = arith.constant 0 : i32
    %c0_i32_0 = arith.constant 0 : i32
    %c0_i32_1 = arith.constant 0 : i32
    return %arg0, %c0_i32, %c0_i32_0 : i32, i32, i32
  }
  func.func @transform_2(%arg0: i32) -> (i32, i32) {
    %c0_i32 = arith.constant 0 : i32
    %c0_i32_0 = arith.constant 0 : i32
    %c0_i32_1 = arith.constant 0 : i32
    return %c0_i32, %c0_i32_0 : i32, i32
  }
  func.func @transform_3(%arg0: i32) -> (i32, i32, i32) {
    %c0_i32 = arith.constant 0 : i32
    %c0_i32_0 = arith.constant 0 : i32
    %c0_i32_1 = arith.constant 0 : i32
    return %arg0, %c0_i32, %c0_i32_0 : i32, i32, i32
  }
  func.func @transform_4(%arg0: i32) -> (i32, i32, i32) {
    %c0_i32 = arith.constant 0 : i32
    %c0_i32_0 = arith.constant 0 : i32
    %c0_i32_1 = arith.constant 0 : i32
    return %arg0, %c0_i32, %c0_i32_0 : i32, i32, i32
  }
}

module attributes {stable_mosaic.version = 11 : i64} {
  func.func @iou_nms_kernel(%arg0: i32, %arg1: memref<1x4x256xf32, #tpu.memory_space<vmem>>, %arg2: memref<1x7x64xi32, #tpu.memory_space<vmem>>, %arg3: memref<1x7x64xf32, #tpu.memory_space<vmem>>, %arg4: memref<1x7x64xf32, #tpu.memory_space<vmem>>) attributes {dimension_semantics = [#tpu.dimension_semantics<parallel>], iteration_bounds = array<i64: 2>, scalar_prefetch = 0 : i64, scratch_operands = 0 : i64, tpu.core_type = #tpu.core_type<tc>, window_params = [{transform_indices = @transform_0, window_bounds = array<i64: 1, 4, 256>}, {transform_indices = @transform_1, window_bounds = array<i64: 1, 7, 64>}, {transform_indices = @transform_2, window_bounds = array<i64: 1, 7, 64>}, {transform_indices = @transform_3, window_bounds = array<i64: 1, 7, 64>}]} {
    %c0 = arith.constant 0 : index
    %c0_0 = arith.constant 0 : index
    %c0_1 = arith.constant 0 : index
    %0 = vector.load %arg1[%c0, %c0_0, %c0_1] : memref<1x4x256xf32, #tpu.memory_space<vmem>>, vector<1x4x256xf32>
    %1 = vector.shape_cast %0 : vector<1x4x256xf32> to vector<4x256xf32>
    %c0_2 = arith.constant 0 : index
    %c0_3 = arith.constant 0 : index
    %c0_4 = arith.constant 0 : index
    %2 = vector.load %arg2[%c0_2, %c0_3, %c0_4] : memref<1x7x64xi32, #tpu.memory_space<vmem>>, vector<1x7x64xi32>
    %3 = vector.shape_cast %2 : vector<1x7x64xi32> to vector<7x64xi32>
    %4 = tpu.iota {dimensions = array<i32: 2>} : vector<7x64x256xi32>
    %5 = vector.shape_cast %3 : vector<7x64xi32> to vector<7x64x1xi32>
    %6 = vector.broadcast %5 : vector<7x64x1xi32> to vector<7x64x256xi32>
    %7 = arith.cmpi eq, %6, %4 : vector<7x64x256xi32>
    %8 = vector.shape_cast %1 : vector<4x256xf32> to vector<4x1x1x256xf32>
    %9 = vector.extract_strided_slice %8 {offsets = [0, 0, 0, 0], sizes = [1, 1, 1, 256], strides = [1, 1, 1, 1]} : vector<4x1x1x256xf32> to vector<1x1x1x256xf32>
    %10 = vector.shape_cast %9 : vector<1x1x1x256xf32> to vector<1x1x256xf32>
    %cst = arith.constant 0.000000e+00 : f32
    %11 = vector.shape_cast %10 : vector<1x1x256xf32> to vector<1x1x256xf32>
    %12 = vector.broadcast %11 : vector<1x1x256xf32> to vector<7x64x256xf32>
    %13 = vector.broadcast %cst : f32 to vector<7x64x256xf32>
    %14 = arith.select %7, %12, %13 : vector<7x64x256xi1>, vector<7x64x256xf32>
    %cst_5 = arith.constant dense<0.000000e+00> : vector<7x64xf32>
    %15 = vector.multi_reduction <add>, %14, %cst_5 [2] : vector<7x64x256xf32> to vector<7x64xf32>
    %16 = vector.extract_strided_slice %8 {offsets = [1, 0, 0, 0], sizes = [1, 1, 1, 256], strides = [1, 1, 1, 1]} : vector<4x1x1x256xf32> to vector<1x1x1x256xf32>
    %17 = vector.shape_cast %16 : vector<1x1x1x256xf32> to vector<1x1x256xf32>
    %cst_6 = arith.constant 0.000000e+00 : f32
    %18 = vector.shape_cast %17 : vector<1x1x256xf32> to vector<1x1x256xf32>
    %19 = vector.broadcast %18 : vector<1x1x256xf32> to vector<7x64x256xf32>
    %20 = vector.broadcast %cst_6 : f32 to vector<7x64x256xf32>
    %21 = arith.select %7, %19, %20 : vector<7x64x256xi1>, vector<7x64x256xf32>
    %cst_7 = arith.constant dense<0.000000e+00> : vector<7x64xf32>
    %22 = vector.multi_reduction <add>, %21, %cst_7 [2] : vector<7x64x256xf32> to vector<7x64xf32>
    %23 = vector.extract_strided_slice %8 {offsets = [2, 0, 0, 0], sizes = [1, 1, 1, 256], strides = [1, 1, 1, 1]} : vector<4x1x1x256xf32> to vector<1x1x1x256xf32>
    %24 = vector.shape_cast %23 : vector<1x1x1x256xf32> to vector<1x1x256xf32>
    %cst_8 = arith.constant 0.000000e+00 : f32
    %25 = vector.shape_cast %24 : vector<1x1x256xf32> to vector<1x1x256xf32>
    %26 = vector.broadcast %25 : vector<1x1x256xf32> to vector<7x64x256xf32>
    %27 = vector.broadcast %cst_8 : f32 to vector<7x64x256xf32>
    %28 = arith.select %7, %26, %27 : vector<7x64x256xi1>, vector<7x64x256xf32>
    %cst_9 = arith.constant dense<0.000000e+00> : vector<7x64xf32>
    %29 = vector.multi_reduction <add>, %28, %cst_9 [2] : vector<7x64x256xf32> to vector<7x64xf32>
    %30 = vector.extract_strided_slice %8 {offsets = [3, 0, 0, 0], sizes = [1, 1, 1, 256], strides = [1, 1, 1, 1]} : vector<4x1x1x256xf32> to vector<1x1x1x256xf32>
    %31 = vector.shape_cast %30 : vector<1x1x1x256xf32> to vector<1x1x256xf32>
    %cst_10 = arith.constant 0.000000e+00 : f32
    %32 = vector.shape_cast %31 : vector<1x1x256xf32> to vector<1x1x256xf32>
    %33 = vector.broadcast %32 : vector<1x1x256xf32> to vector<7x64x256xf32>
    %34 = vector.broadcast %cst_10 : f32 to vector<7x64x256xf32>
    %35 = arith.select %7, %33, %34 : vector<7x64x256xi1>, vector<7x64x256xf32>
    %cst_11 = arith.constant dense<0.000000e+00> : vector<7x64xf32>
    %36 = vector.multi_reduction <add>, %35, %cst_11 [2] : vector<7x64x256xf32> to vector<7x64xf32>
    %37 = arith.subf %29, %15 : vector<7x64xf32>
    %38 = arith.subf %36, %22 : vector<7x64xf32>
    %39 = arith.mulf %37, %38 : vector<7x64xf32>
    %40 = vector.shape_cast %29 : vector<7x64xf32> to vector<7x64x1xf32>
    %41 = vector.shape_cast %29 : vector<7x64xf32> to vector<7x1x64xf32>
    %42 = vector.broadcast %40 : vector<7x64x1xf32> to vector<7x64x64xf32>
    %43 = vector.broadcast %41 : vector<7x1x64xf32> to vector<7x64x64xf32>
    %44 = arith.minimumf %42, %43 : vector<7x64x64xf32>
    %45 = vector.shape_cast %15 : vector<7x64xf32> to vector<7x64x1xf32>
    %46 = vector.shape_cast %15 : vector<7x64xf32> to vector<7x1x64xf32>
    %47 = vector.broadcast %45 : vector<7x64x1xf32> to vector<7x64x64xf32>
    %48 = vector.broadcast %46 : vector<7x1x64xf32> to vector<7x64x64xf32>
    %49 = arith.maximumf %47, %48 : vector<7x64x64xf32>
    %50 = arith.subf %44, %49 : vector<7x64x64xf32>
    %cst_12 = arith.constant 0.000000e+00 : f32
    %51 = vector.broadcast %cst_12 : f32 to vector<7x64x64xf32>
    %52 = arith.maximumf %50, %51 : vector<7x64x64xf32>
    %53 = vector.shape_cast %36 : vector<7x64xf32> to vector<7x64x1xf32>
    %54 = vector.shape_cast %36 : vector<7x64xf32> to vector<7x1x64xf32>
    %55 = vector.broadcast %53 : vector<7x64x1xf32> to vector<7x64x64xf32>
    %56 = vector.broadcast %54 : vector<7x1x64xf32> to vector<7x64x64xf32>
    %57 = arith.minimumf %55, %56 : vector<7x64x64xf32>
    %58 = vector.shape_cast %22 : vector<7x64xf32> to vector<7x64x1xf32>
    %59 = vector.shape_cast %22 : vector<7x64xf32> to vector<7x1x64xf32>
    %60 = vector.broadcast %58 : vector<7x64x1xf32> to vector<7x64x64xf32>
    %61 = vector.broadcast %59 : vector<7x1x64xf32> to vector<7x64x64xf32>
    %62 = arith.maximumf %60, %61 : vector<7x64x64xf32>
    %63 = arith.subf %57, %62 : vector<7x64x64xf32>
    %cst_13 = arith.constant 0.000000e+00 : f32
    %64 = vector.broadcast %cst_13 : f32 to vector<7x64x64xf32>
    %65 = arith.maximumf %63, %64 : vector<7x64x64xf32>
    %66 = arith.mulf %52, %65 : vector<7x64x64xf32>
    %67 = vector.shape_cast %39 : vector<7x64xf32> to vector<7x64x1xf32>
    %68 = vector.shape_cast %39 : vector<7x64xf32> to vector<7x1x64xf32>
    %69 = vector.broadcast %67 : vector<7x64x1xf32> to vector<7x64x64xf32>
    %70 = vector.broadcast %68 : vector<7x1x64xf32> to vector<7x64x64xf32>
    %71 = arith.addf %69, %70 : vector<7x64x64xf32>
    %72 = arith.subf %71, %66 : vector<7x64x64xf32>
    %73 = tpu.iota {dimensions = array<i32: 1>} : vector<1x64x64xi32>
    %74 = tpu.iota {dimensions = array<i32: 2>} : vector<1x64x64xi32>
    %75 = arith.cmpi slt, %73, %74 : vector<1x64x64xi32>
    %cst_14 = arith.constant 5.000000e-01 : f32
    %76 = vector.broadcast %cst_14 : f32 to vector<7x64x64xf32>
    %77 = arith.mulf %76, %72 : vector<7x64x64xf32>
    %78 = arith.cmpf ogt, %66, %77 : vector<7x64x64xf32>
    %79 = vector.broadcast %75 : vector<1x64x64xi1> to vector<7x64x64xi1>
    %80 = arith.andi %78, %79 : vector<7x64x64xi1>
    %cst_15 = arith.constant 1.000000e+00 : f32
    %cst_16 = arith.constant 0.000000e+00 : f32
    %81 = vector.broadcast %cst_15 : f32 to vector<7x64x64xf32>
    %82 = vector.broadcast %cst_16 : f32 to vector<7x64x64xf32>
    %83 = arith.select %80, %81, %82 : vector<7x64x64xi1>, vector<7x64x64xf32>
    %cst_17 = arith.constant dense<0xFF800000> : vector<7x64xf32>
    %84 = vector.multi_reduction <maximumf>, %83, %cst_17 [1] : vector<7x64x64xf32> to vector<7x64xf32>
    %cst_18 = arith.constant 0.000000e+00 : f32
    %85 = vector.broadcast %cst_18 : f32 to vector<7x64xf32>
    %86 = arith.cmpf ogt, %84, %85 : vector<7x64xf32>
    %c0_19 = arith.constant 0 : index
    %c0_20 = arith.constant 0 : index
    %c0_21 = arith.constant 0 : index
    %87 = vector.load %arg3[%c0_19, %c0_20, %c0_21] : memref<1x7x64xf32, #tpu.memory_space<vmem>>, vector<1x7x64xf32>
    %88 = vector.shape_cast %87 : vector<1x7x64xf32> to vector<7x64xf32>
    %cst_22 = arith.constant -1.000000e+00 : f32
    %89 = vector.broadcast %cst_22 : f32 to vector<7x64xf32>
    %90 = arith.select %86, %89, %88 : vector<7x64xi1>, vector<7x64xf32>
    %c0_23 = arith.constant 0 : index
    %c0_24 = arith.constant 0 : index
    %c0_25 = arith.constant 0 : index
    %91 = vector.load %arg4[%c0_23, %c0_24, %c0_25] : memref<1x7x64xf32, #tpu.memory_space<vmem>>, vector<1x7x64xf32>
    %92 = vector.shape_cast %91 : vector<1x7x64xf32> to vector<7x64xf32>
    %93 = vector.shape_cast %90 : vector<7x64xf32> to vector<1x7x64xf32>
    tpu.vector_store %arg4[%c0_23, %c0_24, %c0_25], %93 {strides = array<i32>} : memref<1x7x64xf32, #tpu.memory_space<vmem>>, vector<1x7x64xf32>,
    return
  }
  func.func @transform_0(%arg0: i32) -> (i32, i32, i32) {
    %c0_i32 = arith.constant 0 : i32
    %c0_i32_0 = arith.constant 0 : i32
    %c0_i32_1 = arith.constant 0 : i32
    return %arg0, %c0_i32, %c0_i32_0 : i32, i32, i32
  }
  func.func @transform_1(%arg0: i32) -> (i32, i32, i32) {
    %c0_i32 = arith.constant 0 : i32
    %c0_i32_0 = arith.constant 0 : i32
    %c0_i32_1 = arith.constant 0 : i32
    return %arg0, %c0_i32, %c0_i32_0 : i32, i32, i32
  }
  func.func @transform_2(%arg0: i32) -> (i32, i32, i32) {
    %c0_i32 = arith.constant 0 : i32
    %c0_i32_0 = arith.constant 0 : i32
    %c0_i32_1 = arith.constant 0 : i32
    return %arg0, %c0_i32, %c0_i32_0 : i32, i32, i32
  }
  func.func @transform_3(%arg0: i32) -> (i32, i32, i32) {
    %c0_i32 = arith.constant 0 : i32
    %c0_i32_0 = arith.constant 0 : i32
    %c0_i32_1 = arith.constant 0 : i32
    return %arg0, %c0_i32, %c0_i32_0 : i32, i32, i32
  }
}

module attributes {stable_mosaic.version = 11 : i64} {
  func.func @mask_crop_kernel(%arg0: i32, %arg1: memref<1x16x8xf32, #tpu.memory_space<vmem>>, %arg2: memref<1x8x256xf32, #tpu.memory_space<vmem>>, %arg3: memref<1x16x4xf32, #tpu.memory_space<vmem>>, %arg4: memref<2x256xf32, #tpu.memory_space<vmem>>, %arg5: memref<1x16x256xf32, #tpu.memory_space<vmem>>) attributes {dimension_semantics = [#tpu.dimension_semantics<parallel>], iteration_bounds = array<i64: 2>, scalar_prefetch = 0 : i64, scratch_operands = 0 : i64, tpu.core_type = #tpu.core_type<tc>, window_params = [{transform_indices = @transform_0, window_bounds = array<i64: 1, 16, 8>}, {transform_indices = @transform_1, window_bounds = array<i64: 1, 8, 256>}, {transform_indices = @transform_2, window_bounds = array<i64: 1, 16, 4>}, {pipeline_mode = #tpu.pipeline_mode<synchronous>, transform_indices = @transform_3, window_bounds = array<i64: 2, 256>}, {transform_indices = @transform_4, window_bounds = array<i64: 1, 16, 256>}]} {
    %c0 = arith.constant 0 : index
    %c0_0 = arith.constant 0 : index
    %c0_1 = arith.constant 0 : index
    %0 = vector.load %arg1[%c0, %c0_0, %c0_1] : memref<1x16x8xf32, #tpu.memory_space<vmem>>, vector<1x16x8xf32>
    %1 = vector.shape_cast %0 : vector<1x16x8xf32> to vector<16x8xf32>
    %c0_2 = arith.constant 0 : index
    %c0_3 = arith.constant 0 : index
    %c0_4 = arith.constant 0 : index
    %2 = vector.load %arg2[%c0_2, %c0_3, %c0_4] : memref<1x8x256xf32, #tpu.memory_space<vmem>>, vector<1x8x256xf32>
    %3 = vector.shape_cast %2 : vector<1x8x256xf32> to vector<8x256xf32>
    %cst = arith.constant dense<0.000000e+00> : vector<16x256xf32>
    %4 = tpu.matmul %1, %3, %cst {dimension_numbers = #tpu.dot_dimension_numbers<[1], [0], [0], [1], [0, 0, 1, 1], [], []>} : vector<16x8xf32>, vector<8x256xf32>, vector<16x256xf32> -> vector<16x256xf32>
    %5 = arith.negf %4 : vector<16x256xf32>
    %6 = math.exp %5 : vector<16x256xf32>
    %cst_5 = arith.constant 1.000000e+00 : f32
    %7 = vector.broadcast %cst_5 : f32 to vector<16x256xf32>
    %8 = arith.addf %7, %6 : vector<16x256xf32>
    %9 = arith.divf %7, %8 : vector<16x256xf32>
    %c0_6 = arith.constant 0 : index
    %c0_7 = arith.constant 0 : index
    %10 = vector.load %arg4[%c0_6, %c0_7] : memref<2x256xf32, #tpu.memory_space<vmem>>, vector<1x256xf32>
    %c1 = arith.constant 1 : index
    %c0_8 = arith.constant 0 : index
    %11 = vector.load %arg4[%c1, %c0_8] : memref<2x256xf32, #tpu.memory_space<vmem>>, vector<1x256xf32>
    %c0_9 = arith.constant 0 : index
    %c0_10 = arith.constant 0 : index
    %c0_11 = arith.constant 0 : index
    %12 = vector.load %arg3[%c0_9, %c0_10, %c0_11] : memref<1x16x4xf32, #tpu.memory_space<vmem>>, vector<1x16x1xf32>
    %13 = vector.shape_cast %12 : vector<1x16x1xf32> to vector<16x1xf32>
    %cst_12 = arith.constant 1.600000e+01 : f32
    %14 = vector.broadcast %cst_12 : f32 to vector<16x1xf32>
    %15 = arith.mulf %13, %14 : vector<16x1xf32>
    %c0_13 = arith.constant 0 : index
    %c0_14 = arith.constant 0 : index
    %c1_15 = arith.constant 1 : index
    %16 = vector.load %arg3[%c0_13, %c0_14, %c1_15] : memref<1x16x4xf32, #tpu.memory_space<vmem>>, vector<1x16x1xf32>
    %17 = vector.shape_cast %16 : vector<1x16x1xf32> to vector<16x1xf32>
    %cst_16 = arith.constant 1.600000e+01 : f32
    %18 = vector.broadcast %cst_16 : f32 to vector<16x1xf32>
    %19 = arith.mulf %17, %18 : vector<16x1xf32>
    %c0_17 = arith.constant 0 : index
    %c0_18 = arith.constant 0 : index
    %c2 = arith.constant 2 : index
    %20 = vector.load %arg3[%c0_17, %c0_18, %c2] : memref<1x16x4xf32, #tpu.memory_space<vmem>>, vector<1x16x1xf32>
    %21 = vector.shape_cast %20 : vector<1x16x1xf32> to vector<16x1xf32>
    %cst_19 = arith.constant 1.600000e+01 : f32
    %22 = vector.broadcast %cst_19 : f32 to vector<16x1xf32>
    %23 = arith.mulf %21, %22 : vector<16x1xf32>
    %c0_20 = arith.constant 0 : index
    %c0_21 = arith.constant 0 : index
    %c3 = arith.constant 3 : index
    %24 = vector.load %arg3[%c0_20, %c0_21, %c3] : memref<1x16x4xf32, #tpu.memory_space<vmem>>, vector<1x16x1xf32>
    %25 = vector.shape_cast %24 : vector<1x16x1xf32> to vector<16x1xf32>
    %cst_22 = arith.constant 1.600000e+01 : f32
    %26 = vector.broadcast %cst_22 : f32 to vector<16x1xf32>
    %27 = arith.mulf %25, %26 : vector<16x1xf32>
    %28 = arith.minimumf %15, %23 : vector<16x1xf32>
    %cst_23 = arith.constant 1.000000e+00 : f32
    %29 = vector.broadcast %cst_23 : f32 to vector<16x1xf32>
    %30 = arith.subf %28, %29 : vector<16x1xf32>
    %cst_24 = arith.constant 0.000000e+00 : f32
    %31 = vector.broadcast %cst_24 : f32 to vector<16x1xf32>
    %32 = arith.maximumf %30, %31 : vector<16x1xf32>
    %33 = arith.maximumf %15, %23 : vector<16x1xf32>
    %cst_25 = arith.constant 1.000000e+00 : f32
    %34 = vector.broadcast %cst_25 : f32 to vector<16x1xf32>
    %35 = arith.addf %33, %34 : vector<16x1xf32>
    %cst_26 = arith.constant 1.600000e+01 : f32
    %36 = vector.broadcast %cst_26 : f32 to vector<16x1xf32>
    %37 = arith.minimumf %35, %36 : vector<16x1xf32>
    %38 = arith.minimumf %19, %27 : vector<16x1xf32>
    %cst_27 = arith.constant 1.000000e+00 : f32
    %39 = vector.broadcast %cst_27 : f32 to vector<16x1xf32>
    %40 = arith.subf %38, %39 : vector<16x1xf32>
    %cst_28 = arith.constant 0.000000e+00 : f32
    %41 = vector.broadcast %cst_28 : f32 to vector<16x1xf32>
    %42 = arith.maximumf %40, %41 : vector<16x1xf32>
    %43 = arith.maximumf %19, %27 : vector<16x1xf32>
    %cst_29 = arith.constant 1.000000e+00 : f32
    %44 = vector.broadcast %cst_29 : f32 to vector<16x1xf32>
    %45 = arith.addf %43, %44 : vector<16x1xf32>
    %cst_30 = arith.constant 1.600000e+01 : f32
    %46 = vector.broadcast %cst_30 : f32 to vector<16x1xf32>
    %47 = arith.minimumf %45, %46 : vector<16x1xf32>
    %48 = vector.broadcast %10 : vector<1x256xf32> to vector<16x256xf32>
    %49 = vector.broadcast %32 : vector<16x1xf32> to vector<16x256xf32>
    %50 = arith.cmpf oge, %48, %49 : vector<16x256xf32>
    %51 = vector.broadcast %10 : vector<1x256xf32> to vector<16x256xf32>
    %52 = vector.broadcast %37 : vector<16x1xf32> to vector<16x256xf32>
    %53 = arith.cmpf olt, %51, %52 : vector<16x256xf32>
    %54 = arith.andi %50, %53 : vector<16x256xi1>
    %55 = vector.broadcast %11 : vector<1x256xf32> to vector<16x256xf32>
    %56 = vector.broadcast %42 : vector<16x1xf32> to vector<16x256xf32>
    %57 = arith.cmpf oge, %55, %56 : vector<16x256xf32>
    %58 = arith.andi %54, %57 : vector<16x256xi1>
    %59 = vector.broadcast %11 : vector<1x256xf32> to vector<16x256xf32>
    %60 = vector.broadcast %47 : vector<16x1xf32> to vector<16x256xf32>
    %61 = arith.cmpf olt, %59, %60 : vector<16x256xf32>
    %62 = arith.andi %58, %61 : vector<16x256xi1>
    %63 = arith.extui %62 : vector<16x256xi1> to vector<16x256xi32>
    %64 = arith.sitofp %63 : vector<16x256xi32> to vector<16x256xf32>
    %65 = arith.mulf %9, %64 : vector<16x256xf32>
    %c0_31 = arith.constant 0 : index
    %c0_32 = arith.constant 0 : index
    %c0_33 = arith.constant 0 : index
    %66 = vector.load %arg5[%c0_31, %c0_32, %c0_33] : memref<1x16x256xf32, #tpu.memory_space<vmem>>, vector<1x16x256xf32>
    %67 = vector.shape_cast %66 : vector<1x16x256xf32> to vector<16x256xf32>
    %68 = vector.shape_cast %65 : vector<16x256xf32> to vector<1x16x256xf32>
    tpu.vector_store %arg5[%c0_31, %c0_32, %c0_33], %68 {strides = array<i32>} : memref<1x16x256xf32, #tpu.memory_space<vmem>>, vector<1x16x256xf32>,
    return
  }
  func.func @transform_0(%arg0: i32) -> (i32, i32, i32) {
    %c0_i32 = arith.constant 0 : i32
    %c0_i32_0 = arith.constant 0 : i32
    %c0_i32_1 = arith.constant 0 : i32
    return %arg0, %c0_i32, %c0_i32_0 : i32, i32, i32
  }
  func.func @transform_1(%arg0: i32) -> (i32, i32, i32) {
    %c0_i32 = arith.constant 0 : i32
    %c0_i32_0 = arith.constant 0 : i32
    %c0_i32_1 = arith.constant 0 : i32
    return %arg0, %c0_i32, %c0_i32_0 : i32, i32, i32
  }
  func.func @transform_2(%arg0: i32) -> (i32, i32, i32) {
    %c0_i32 = arith.constant 0 : i32
    %c0_i32_0 = arith.constant 0 : i32
    %c0_i32_1 = arith.constant 0 : i32
    return %arg0, %c0_i32, %c0_i32_0 : i32, i32, i32
  }
  func.func @transform_3(%arg0: i32) -> (i32, i32) {
    %c0_i32 = arith.constant 0 : i32
    %c0_i32_0 = arith.constant 0 : i32
    %c0_i32_1 = arith.constant 0 : i32
    return %c0_i32, %c0_i32_0 : i32, i32
  }
  func.func @transform_4(%arg0: i32) -> (i32, i32, i32) {
    %c0_i32 = arith.constant 0 : i32
    %c0_i32_0 = arith.constant 0 : i32
    %c0_i32_1 = arith.constant 0 : i32
    return %arg0, %c0_i32, %c0_i32_0 : i32, i32, i32
  }
}

</mosaic_0001>

<llo_original>
// kernel: _decode_core.3
$region0: #{_decode_core.3}
  #allocation0 [shape = 'u32[]', space=smem, size = 0x4, offset = 0x4, fixed_abs, tag = 'smem constant byte address 0x4 - core index']
  #allocation1 [shape = 'u32[144,128]{1,0:T(1,128)}', space=vmem, size = 0x12000, scoped, tag = 'internal scratch']
  %s0 = inlined_call_operand.vmem [shape: f32[2,8,256], index: 0, kind: input, shape index: {}]
  %s1 = inlined_call_operand.vmem [shape: f32[2,4,256], index: 1, kind: input, shape index: {}]
  %s2 = inlined_call_operand.vmem [shape: f32[4,256], index: 2, kind: input, shape index: {}]
  %s3 = inlined_call_operand.vmem [shape: f32[2,7,256], index: 3, kind: output, shape index: {0}]
  %s4 = inlined_call_operand.vmem [shape: f32[2,4,256], index: 4, kind: output, shape index: {1}]
  %5 = xla_tuple %s3, %s4
  %s6 = sld [smem:[#allocation0]]
  $region53: #{_decode_core.3} parent=0
    _
  %s8 = ssub.s32 1, %s6
  %s9 = scalar_select 0, %s8, %s6
  loop: start=0, step=1, limit=4
  $region2: #{_decode_core.3} parent=0 // loop_pre_header
    _
  $region3: #{_decode_core.3} parent=0 // loop_header
    %s11 = sphi 0, %s15
    %p12 = scmp.ge.s32.totalorder %s11, 4
    %s21 = sphi 0, %s23
    %s24 = sphi 0, %s21
    %s25 = sphi 0, %s24
    %s41 = sphi 0, %s25
    %s47 = sphi 0, %s49
    %s50 = sphi 0, %s47
    %s51 = sphi 0, %s50
    %s67 = sphi 0, %s51
    %s71 = sphi 0, %s71
    %s73 = sphi 0, %s71
    %s74 = sphi 0, %s73
    %s88 = sphi 0, %s74
    %s94 = sphi 0, %s96
    %s97 = sphi 0, %s94
    %s98 = sphi 0, %s97
    %s114 = sphi 0, %s98
    %s120 = sphi 0, %s122
    %s123 = sphi 0, %s120
    %s124 = sphi 0, %s123
    %s140 = sphi 0, %s124
  $region4: #{_decode_core.3} parent=0 // loop_header_branch
    %14 = sbr.rel (%p12) target = $region8
  $region5: #{_decode_core.3} parent=0 // loop_body
    %s16 = ssub.s32 %s11, 1
    %s17 = ssub.s32 %s11, 2
    %s18 = sadd.s32 %s11, 1
    %s19 = ssub.s32 %s11, %s18
    %p20 = scmp.eq.s32.totalorder %s19, 0
    %s22 = sadd.s32 %s21, 1
    %s23 = scalar_select %p20, %s21, %s22
    %p26 = pneg %p20
    %p27 = scmp.eq.s32.totalorder %s11, 1
    %p28 = por %p26, %p27
    %p29 = scmp.ne.s32.totalorder %s21, %s24
    %p30 = scmp.eq.s32.totalorder %s11, 0
    %p31 = por %p29, %p30
    %p32 = scmp.ne.s32.totalorder %s21, %s24
    %p33 = scmp.eq.s32.totalorder %s16, 1
    %p34 = por %p32, %p33
    %p35 = scmp.ne.s32.totalorder %s24, %s25
    %p36 = scmp.eq.s32.totalorder %s16, 0
    %p37 = por %p35, %p36
    %p38 = scmp.ne.s32.totalorder %s24, %s25
    %p39 = scmp.eq.s32.totalorder %s17, 1
    %p40 = por %p38, %p39
    %p42 = scmp.ne.s32.totalorder %s25, %s41
    %p43 = scmp.eq.s32.totalorder %s17, 0
    %p44 = por %p42, %p43
    %s45 = ssub.s32 %s11, %s18
    %p46 = scmp.eq.s32.totalorder %s45, 0
    %s48 = sadd.s32 %s47, 1
    %s49 = scalar_select %p46, %s47, %s48
    %p52 = pneg %p46
    %p53 = scmp.eq.s32.totalorder %s11, 1
    %p54 = por %p52, %p53
    %p55 = scmp.ne.s32.totalorder %s47, %s50
    %p56 = scmp.eq.s32.totalorder %s11, 0
    %p57 = por %p55, %p56
    %p58 = scmp.ne.s32.totalorder %s47, %s50
    %p59 = scmp.eq.s32.totalorder %s16, 1
    %p60 = por %p58, %p59
    %p61 = scmp.ne.s32.totalorder %s50, %s51
    %p62 = scmp.eq.s32.totalorder %s16, 0
    %p63 = por %p61, %p62
    %p64 = scmp.ne.s32.totalorder %s50, %s51
    %p65 = scmp.eq.s32.totalorder %s17, 1
    %p66 = por %p64, %p65
    %p68 = scmp.ne.s32.totalorder %s51, %s67
    %p69 = scmp.eq.s32.totalorder %s17, 0
    %p70 = por %p68, %p69
    %s72 = sadd.s32 %s71, 1
    %p75 = scmp.eq.s32.totalorder %s11, 1
    %p76 = scmp.ne.s32.totalorder %s71, %s73
    %p77 = scmp.eq.s32.totalorder %s11, 0
    %p78 = por %p76, %p77
    %p79 = scmp.ne.s32.totalorder %s71, %s73
    %p80 = scmp.eq.s32.totalorder %s16, 1
    %p81 = por %p79, %p80
    %p82 = scmp.ne.s32.totalorder %s73, %s74
    %p83 = scmp.eq.s32.totalorder %s16, 0
    %p84 = por %p82, %p83
    %p85 = scmp.ne.s32.totalorder %s73, %s74
    %p86 = scmp.eq.s32.totalorder %s17, 1
    %p87 = por %p85, %p86
    %p89 = scmp.ne.s32.totalorder %s74, %s88
    %p90 = scmp.eq.s32.totalorder %s17, 0
    %p91 = por %p89, %p90
    %s92 = ssub.s32 %s11, %s18
    %p93 = scmp.eq.s32.totalorder %s92, 0
    %s95 = sadd.s32 %s94, 1
    %s96 = scalar_select %p93, %s94, %s95
    %p99 = pneg %p93
    %p100 = scmp.eq.s32.totalorder %s11, 1
    %p101 = por %p99, %p100
    %p102 = scmp.ne.s32.totalorder %s94, %s97
    %p103 = scmp.eq.s32.totalorder %s11, 0
    %p104 = por %p102, %p103
    %p105 = scmp.ne.s32.totalorder %s94, %s97
    %p106 = scmp.eq.s32.totalorder %s16, 1
    %p107 = por %p105, %p106
    %p108 = scmp.ne.s32.totalorder %s97, %s98
    %p109 = scmp.eq.s32.totalorder %s16, 0
    %p110 = por %p108, %p109
    %p111 = scmp.ne.s32.totalorder %s97, %s98
    %p112 = scmp.eq.s32.totalorder %s17, 1
    %p113 = por %p111, %p112
    %p115 = scmp.ne.s32.totalorder %s98, %s114
    %p116 = scmp.eq.s32.totalorder %s17, 0
    %p117 = por %p115, %p116
    %s118 = ssub.s32 %s11, %s18
    %p119 = scmp.eq.s32.totalorder %s118, 0
    %s121 = sadd.s32 %s120, 1
    %s122 = scalar_select %p119, %s120, %s121
    %p125 = pneg %p119
    %p126 = scmp.eq.s32.totalorder %s11, 1
    %p127 = por %p125, %p126
    %p128 = scmp.ne.s32.totalorder %s120, %s123
    %p129 = scmp.eq.s32.totalorder %s11, 0
    %p130 = por %p128, %p129
    %p131 = scmp.ne.s32.totalorder %s120, %s123
    %p132 = scmp.eq.s32.totalorder %s16, 1
    %p133 = por %p131, %p132
    %p134 = scmp.ne.s32.totalorder %s123, %s124
    %p135 = scmp.eq.s32.totalorder %s16, 0
    %p136 = por %p134, %p135
    %p137 = scmp.ne.s32.totalorder %s123, %s124
    %p138 = scmp.eq.s32.totalorder %s17, 1
    %p139 = por %p137, %p138
    %p141 = scmp.ne.s32.totalorder %s124, %s140
    %p142 = scmp.eq.s32.totalorder %s17, 0
    %p143 = por %p141, %p142
    %p144 = scmp.le.s32.totalorder 1, %s11
    %p145 = scmp.lt.s32.totalorder %s11, 3
    %p146 = pnand %p144, %p145
    %p147 = pneg %p146
    // Predicated region
    $region9: #{_decode_core.3} parent=5 // pred_check
      _
    $region10: #{_decode_core.3} parent=5 // pred_check_branch
      %149 = sbr.rel (%p146) target = $region12
    $region11: #{_decode_core.3} parent=5 // pred_region
      %s150 = ssub.s32 %s11, 1
      // Predicated region
      $region13: #{_decode_core.3} parent=11 // pred_check
        %p151 = pneg %p84
      $region14: #{_decode_core.3} parent=11 // pred_check_branch
        %153 = sbr.rel (%p151) target = $region16
      $region15: #{_decode_core.3} parent=11 // pred_region
        _
      $region16: #{_decode_core.3} parent=11 // pred_fallthru
        _
    $region12: #{_decode_core.3} parent=5 // pred_fallthru
      _
    %p154 = scmp.lt.s32.totalorder %s11, 2
    // Predicated region
    $region17: #{_decode_core.3} parent=5 // pred_check
      %p155 = pneg %p154
    $region18: #{_decode_core.3} parent=5 // pred_check_branch
      %157 = sbr.rel (%p155) target = $region20
    $region19: #{_decode_core.3} parent=5 // pred_region
      // Predicated region
      $region21: #{_decode_core.3} parent=19 // pred_check
        %p158 = pneg %p31
      $region22: #{_decode_core.3} parent=19 // pred_check_branch
        %160 = sbr.rel (%p158) target = $region24
      $region23: #{_decode_core.3} parent=19 // pred_region
        %p161 = scmp.lt.s32.totalorder %s11, 1
        %s162 = scalar_select %p161, %s11, 1
        %s163 = smul.addr %s162, 2
        %s164 = smul.addr %s163, 8
        %s165 = scalar_lea.vmem %s0, %s164
      $region24: #{_decode_core.3} parent=19 // pred_fallthru
        _
      // Predicated region
      $region25: #{_decode_core.3} parent=19 // pred_check
        %p166 = pneg %p57
      $region26: #{_decode_core.3} parent=19 // pred_check_branch
        %168 = sbr.rel (%p166) target = $region28
      $region27: #{_decode_core.3} parent=19 // pred_region
        %p169 = scmp.lt.s32.totalorder %s11, 1
        %s170 = scalar_select %p169, %s11, 1
        %s171 = smul.addr %s170, 2
        %s172 = smul.addr %s171, 4
        %s173 = scalar_lea.vmem %s1, %s172
      $region28: #{_decode_core.3} parent=19 // pred_fallthru
        _
    $region20: #{_decode_core.3} parent=5 // pred_fallthru
      _
    %p174 = scmp.le.s32.totalorder 1, %s11
    %p175 = scmp.lt.s32.totalorder %s11, 3
    %p176 = pnand %p174, %p175
    %p177 = pneg %p176
    // Predicated region
    $region29: #{_decode_core.3} parent=5 // pred_check
      _
    $region30: #{_decode_core.3} parent=5 // pred_check_branch
      %179 = sbr.rel (%p176) target = $region32
    $region31: #{_decode_core.3} parent=5 // pred_region
      %s180 = ssub.s32 %s11, 1
      %p181 = scmp.lt.s32.totalorder %s16, 1
      %s182 = scalar_select %p181, %s16, 1
      %s183 = smul.addr %s182, 2
      %s184 = smul.addr %s183, 8
      %s185 = scalar_lea.vmem %s0, %s184
      %p186 = pneg %p37
      %p187 = pneg %p34
      %p188 = scmp.lt.s32.totalorder %s16, 1
      %s189 = scalar_select %p188, %s16, 1
      %s190 = smul.addr %s189, 2
      %s191 = smul.addr %s190, 4
      %s192 = scalar_lea.vmem %s1, %s191
      %p193 = pneg %p63
      %p194 = pneg %p60
      %p195 = pneg %p84
      %p196 = pneg %p81
      %p197 = pneg %p110
      %p198 = pneg %p107
      %p199 = scmp.lt.s32.totalorder %s16, 1
      %s200 = scalar_select %p199, %s16, 1
      %s201 = smul.addr %s200, 2
      %s202 = smul.addr %s201, 8
      %s203 = scalar_lea.vmem %s3, %s202
      %p204 = pneg %p136
      %p205 = pneg %p133
      %p206 = scmp.lt.s32.totalorder %s16, 1
      %s207 = scalar_select %p206, %s16, 1
      %s208 = smul.addr %s207, 2
      %s209 = smul.addr %s208, 4
      %s210 = scalar_lea.vmem %s4, %s209
      %p211 = scmp.lt.s32.totalorder %s16, 1
      %s212 = scalar_select %p211, %s16, 1
      %s213 = smul.addr %s212, 2
      %s214 = smul.addr %s213, 8
      %s215 = scalar_lea.vmem %s0, %s214
      %p216 = scmp.lt.s32.totalorder %s16, 1
      %s217 = scalar_select %p216, %s16, 1
      %s218 = smul.addr %s217, 2
      %s219 = smul.addr %s218, 4
      %s220 = scalar_lea.vmem %s1, %s219
      %p221 = scmp.lt.s32.totalorder %s16, 1
      %s222 = scalar_select %p221, %s16, 1
      %s223 = smul.addr %s222, 2
      %s224 = smul.addr %s223, 8
      %s225 = scalar_lea.vmem %s3, %s224
      %p226 = scmp.lt.s32.totalorder %s16, 1
      %s227 = scalar_select %p226, %s16, 1
      %s228 = smul.addr %s227, 2
      %s229 = smul.addr %s228, 4
      %s230 = scalar_lea.vmem %s4, %s229
      %v231 = vld [vmem:[%s215] sm:$0xff]
      %v232 = vld [vmem:[%s215 + $0x8] sm:$0xff]
      %v233 = vrot.slane %v231, 4
      %v234 = vmax.f32 %v231, %v233
      %v235 = vrot.slane %v234, 2
      %v236 = vmax.f32 %v234, %v235
      %v237 = vrot.slane %v236, 1
      %v238 = vmax.f32 %v236, %v237
      %v239 = vrot.slane %v232, 4
      %v240 = vmax.f32 %v232, %v239
      %v241 = vrot.slane %v240, 2
      %v242 = vmax.f32 %v240, %v241
      %v243 = vrot.slane %v242, 1
      %v244 = vmax.f32 %v242, %v243
      %v245 = vsub.f32 %v231, %v238
      %v246 = vsub.f32 %v232, %v244
      %v247 = vmul.f32 %v245, 1.442695
      %v248 = vpow.pop %v247
      %v249 = vmul.f32 %v246, 1.442695
      %v250 = vpow.pop %v249
      %v251 = vrot.slane %v248, 4
      %v252 = vadd.f32 %v248, %v251
      %v253 = vrot.slane %v252, 2
      %v254 = vadd.f32 %v252, %v253
      %v255 = vrot.slane %v254, 1
      %v256 = vadd.f32 %v254, %v255
      %v257 = vrot.slane %v250, 4
      %v258 = vadd.f32 %v250, %v257
      %v259 = vrot.slane %v258, 2
      %v260 = vadd.f32 %v258, %v259
      %v261 = vrot.slane %v260, 1
      %v262 = vadd.f32 %v260, %v261
      %v263 = vrcp.pop %v256
      %v264 = vmul.f32 %v248, %v263
      %v265 = vrcp.pop %v262
      %v266 = vmul.f32 %v250, %v265
      %vm267 = vcmask 1047553
      %v268 = vsel %vm267, %v264, -inf
      %v269 = vrot.slane %v268, 4
      %v270 = vmax.f32 %v268, %v269
      %v271 = vrot.slane %v270, 2
      %v272 = vmax.f32 %v270, %v271
      %v273 = vrot.slane %v272, 1
      %v274 = vmax.f32 %v272, %v273
      %v275 = vsel %vm267, %v266, -inf
      %v276 = vrot.slane %v275, 4
      %v277 = vmax.f32 %v275, %v276
      %v278 = vrot.slane %v277, 2
      %v279 = vmax.f32 %v277, %v278
      %v280 = vrot.slane %v279, 1
      %v281 = vmax.f32 %v279, %v280
      %v282 = vlaneseq
      %v283 = vand.u32 %v282, 127
      %v284 = vadd.s32 %v283, 128
      %vm285 = vcmp.lt.s32.totalorder %v283, 240
      %vm286 = vcmp.lt.s32.totalorder %v284, 240
      %vm287 = vcmp.gt.f32.partialorder %v274, 0.05
      %vm288 = vcmp.gt.f32.partialorder %v281, 0.05
      %vm289 = vmand %vm285, %vm287
      %vm290 = vmand %vm286, %vm288
      %v291 = vsel %vm289, 1, 0
      %v292 = vsel %vm290, 1, 0
      %vm293 = vcmp.eq.s32.totalorder %v291, 1
      %vm294 = vcmp.eq.s32.totalorder %v292, 1
      %v295 = vsel %vm293, %v264, -1.0
      %v296 = vsel %vm294, %v266, -1.0
      %v299 = vrot.slane %v295, 1
      %v300 = vrot.slane %v296, 1
      %303 = vst [vmem:[%s225] sm:$0x7f] %v299
      %304 = vst [vmem:[%s225 + $0x8] sm:$0x7f] %v300
      %v305 = vld [vmem:[%s2] sm:$0xff]
      %v306 = vld [vmem:[%s220] sm:$0xff]
      %v307 = vmul.f32 %v306, 0.1
      %v309 = vrot.slane %v305, 6
      %v310 = vrot.slane %v309, 4
      %v312 = vmul.f32 %v307, %v310
      %v313 = vadd.f32 %v305, %v312
      %v314 = vmul.f32 %v306, 0.2
      %v315 = vmul.f32 %v314, 1.442695
      %v316 = vpow.pop %v315
      %v317 = vmul.f32 %v305, %v316
      %v318 = vmul.f32 %v317, 0.5
      %v320 = vrot.slane %v318, 6
      %v321 = vrot.slane %v320, 4
      %v323 = vsub.f32 %v313, %v321
      %v325 = vrot.slane %v317, 6
      %v326 = vrot.slane %v325, 4
      %v328 = vadd.f32 %v323, %v326
      %v330 = vcombine.high %v323, %v323
      %v333 = vcombine.high %v328, %v328
      %v334 = vrot.slane %v328, 6
      %v335 = vrot.slane %v333, 6
      %vm338 = vcmask 1041408
      %v339 = vsel %vm338, %v323, %v334
      %v340 = vsel %vm338, %v330, %v335
      %v341 = vmax.f32 %v339, 0.0
      %v342 = vmax.f32 %v340, 0.0
      %v343 = vmin.f32 %v341, 1.0
      %v344 = vmin.f32 %v342, 1.0
      %v347 = vcombine.low %v343, %v344
      %349 = vst [vmem:[%s230] sm:$0xff] %v347
      %p350 = scmp.lt.s32.totalorder %s16, 1
      %s351 = scalar_select %p350, %s16, 1
      %s352 = smul.addr %s351, 2
      %s353 = smul.addr %s352, 8
      %s354 = scalar_lea.vmem %s3, %s353
      %p355 = scmp.lt.s32.totalorder %s16, 1
      %s356 = scalar_select %p355, %s16, 1
      %s357 = smul.addr %s356, 2
      %s358 = smul.addr %s357, 4
      %s359 = scalar_lea.vmem %s4, %s358
      // Predicated region
      $region33: #{_decode_core.3} parent=31 // pred_check
        %p360 = pneg %p107
      $region34: #{_decode_core.3} parent=31 // pred_check_branch
        %362 = sbr.rel (%p360) target = $region36
      $region35: #{_decode_core.3} parent=31 // pred_region
        _
      $region36: #{_decode_core.3} parent=31 // pred_fallthru
        _
      // Predicated region
      $region37: #{_decode_core.3} parent=31 // pred_check
        %p363 = pneg %p133
      $region38: #{_decode_core.3} parent=31 // pred_check_branch
        %365 = sbr.rel (%p363) target = $region40
      $region39: #{_decode_core.3} parent=31 // pred_region
        _
      $region40: #{_decode_core.3} parent=31 // pred_fallthru
        _
    $region32: #{_decode_core.3} parent=5 // pred_fallthru
      _
    %p366 = scmp.le.s32.totalorder 2, %s11
    // Predicated region
    $region41: #{_decode_core.3} parent=5 // pred_check
      %p367 = pneg %p366
    $region42: #{_decode_core.3} parent=5 // pred_check_branch
      %369 = sbr.rel (%p367) target = $region44
    $region43: #{_decode_core.3} parent=5 // pred_region
      %s370 = ssub.s32 %s11, 2
      // Predicated region
      $region45: #{_decode_core.3} parent=43 // pred_check
        %p371 = pneg %p113
      $region46: #{_decode_core.3} parent=43 // pred_check_branch
        %373 = sbr.rel (%p371) target = $region48
      $region47: #{_decode_core.3} parent=43 // pred_region
        %p374 = scmp.lt.s32.totalorder %s17, 1
        %s375 = scalar_select %p374, %s17, 1
        %s376 = smul.addr %s375, 2
        %s377 = smul.addr %s376, 8
        %s378 = scalar_lea.vmem %s3, %s377
      $region48: #{_decode_core.3} parent=43 // pred_fallthru
        _
      // Predicated region
      $region49: #{_decode_core.3} parent=43 // pred_check
        %p379 = pneg %p139
      $region50: #{_decode_core.3} parent=43 // pred_check_branch
        %381 = sbr.rel (%p379) target = $region52
      $region51: #{_decode_core.3} parent=43 // pred_region
        %p382 = scmp.lt.s32.totalorder %s17, 1
        %s383 = scalar_select %p382, %s17, 1
        %s384 = smul.addr %s383, 2
        %s385 = smul.addr %s384, 4
        %s386 = scalar_lea.vmem %s4, %s385
      $region52: #{_decode_core.3} parent=43 // pred_fallthru
        _
    $region44: #{_decode_core.3} parent=5 // pred_fallthru
      _
  $region6: #{_decode_core.3} parent=0 // loop_footer
    %s15 = sadd.s32 1, %s11
  $region7: #{_decode_core.3} parent=0 // loop_footer_branch
    %10 = sbr.rel target = $region3
  $region8: #{_decode_core.3} parent=0 // loop_exit
    _

// kernel: _decode_core.5
$region0: #{_decode_core.5}
  #allocation0 [shape = 'u32[]', space=smem, size = 0x4, offset = 0x4, fixed_abs, tag = 'smem constant byte address 0x4 - core index']
  #allocation1 [shape = 'u32[144,128]{1,0:T(1,128)}', space=vmem, size = 0x12000, scoped, tag = 'internal scratch']
  %s0 = inlined_call_operand.vmem [shape: f32[2,16,8], index: 0, kind: input, shape index: {}]
  %s1 = inlined_call_operand.vmem [shape: f32[2,8,256], index: 1, kind: input, shape index: {}]
  %s2 = inlined_call_operand.vmem [shape: f32[2,16,4], index: 2, kind: input, shape index: {}]
  %s3 = inlined_call_operand.vmem [shape: f32[2,256], index: 3, kind: input, shape index: {}]
  %s4 = inlined_call_operand.vmem [shape: f32[2,16,256], index: 4, kind: output, shape index: {}]
  %s5 = sld [smem:[#allocation0]]
  $region49: #{_decode_core.5} parent=0
    _
  %s7 = ssub.s32 1, %s5
  %s8 = scalar_select 0, %s7, %s5
  loop: start=0, step=1, limit=4
  $region2: #{_decode_core.5} parent=0 // loop_pre_header
    _
  $region3: #{_decode_core.5} parent=0 // loop_header
    %s10 = sphi 0, %s14
    %p11 = scmp.ge.s32.totalorder %s10, 4
    %s20 = sphi 0, %s22
    %s23 = sphi 0, %s20
    %s24 = sphi 0, %s23
    %s40 = sphi 0, %s24
    %s46 = sphi 0, %s48
    %s49 = sphi 0, %s46
    %s50 = sphi 0, %s49
    %s66 = sphi 0, %s50
    %s72 = sphi 0, %s74
    %s75 = sphi 0, %s72
    %s76 = sphi 0, %s75
    %s92 = sphi 0, %s76
    %s96 = sphi 0, %s96
    %s98 = sphi 0, %s96
    %s99 = sphi 0, %s98
    %s113 = sphi 0, %s99
    %s119 = sphi 0, %s121
    %s122 = sphi 0, %s119
    %s123 = sphi 0, %s122
    %s139 = sphi 0, %s123
  $region4: #{_decode_core.5} parent=0 // loop_header_branch
    %13 = sbr.rel (%p11) target = $region8
  $region5: #{_decode_core.5} parent=0 // loop_body
    %s15 = ssub.s32 %s10, 1
    %s16 = ssub.s32 %s10, 2
    %s17 = sadd.s32 %s10, 1
    %s18 = ssub.s32 %s10, %s17
    %p19 = scmp.eq.s32.totalorder %s18, 0
    %s21 = sadd.s32 %s20, 1
    %s22 = scalar_select %p19, %s20, %s21
    %p25 = pneg %p19
    %p26 = scmp.eq.s32.totalorder %s10, 1
    %p27 = por %p25, %p26
    %p28 = scmp.ne.s32.totalorder %s20, %s23
    %p29 = scmp.eq.s32.totalorder %s10, 0
    %p30 = por %p28, %p29
    %p31 = scmp.ne.s32.totalorder %s20, %s23
    %p32 = scmp.eq.s32.totalorder %s15, 1
    %p33 = por %p31, %p32
    %p34 = scmp.ne.s32.totalorder %s23, %s24
    %p35 = scmp.eq.s32.totalorder %s15, 0
    %p36 = por %p34, %p35
    %p37 = scmp.ne.s32.totalorder %s23, %s24
    %p38 = scmp.eq.s32.totalorder %s16, 1
    %p39 = por %p37, %p38
    %p41 = scmp.ne.s32.totalorder %s24, %s40
    %p42 = scmp.eq.s32.totalorder %s16, 0
    %p43 = por %p41, %p42
    %s44 = ssub.s32 %s10, %s17
    %p45 = scmp.eq.s32.totalorder %s44, 0
    %s47 = sadd.s32 %s46, 1
    %s48 = scalar_select %p45, %s46, %s47
    %p51 = pneg %p45
    %p52 = scmp.eq.s32.totalorder %s10, 1
    %p53 = por %p51, %p52
    %p54 = scmp.ne.s32.totalorder %s46, %s49
    %p55 = scmp.eq.s32.totalorder %s10, 0
    %p56 = por %p54, %p55
    %p57 = scmp.ne.s32.totalorder %s46, %s49
    %p58 = scmp.eq.s32.totalorder %s15, 1
    %p59 = por %p57, %p58
    %p60 = scmp.ne.s32.totalorder %s49, %s50
    %p61 = scmp.eq.s32.totalorder %s15, 0
    %p62 = por %p60, %p61
    %p63 = scmp.ne.s32.totalorder %s49, %s50
    %p64 = scmp.eq.s32.totalorder %s16, 1
    %p65 = por %p63, %p64
    %p67 = scmp.ne.s32.totalorder %s50, %s66
    %p68 = scmp.eq.s32.totalorder %s16, 0
    %p69 = por %p67, %p68
    %s70 = ssub.s32 %s10, %s17
    %p71 = scmp.eq.s32.totalorder %s70, 0
    %s73 = sadd.s32 %s72, 1
    %s74 = scalar_select %p71, %s72, %s73
    %p77 = pneg %p71
    %p78 = scmp.eq.s32.totalorder %s10, 1
    %p79 = por %p77, %p78
    %p80 = scmp.ne.s32.totalorder %s72, %s75
    %p81 = scmp.eq.s32.totalorder %s10, 0
    %p82 = por %p80, %p81
    %p83 = scmp.ne.s32.totalorder %s72, %s75
    %p84 = scmp.eq.s32.totalorder %s15, 1
    %p85 = por %p83, %p84
    %p86 = scmp.ne.s32.totalorder %s75, %s76
    %p87 = scmp.eq.s32.totalorder %s15, 0
    %p88 = por %p86, %p87
    %p89 = scmp.ne.s32.totalorder %s75, %s76
    %p90 = scmp.eq.s32.totalorder %s16, 1
    %p91 = por %p89, %p90
    %p93 = scmp.ne.s32.totalorder %s76, %s92
    %p94 = scmp.eq.s32.totalorder %s16, 0
    %p95 = por %p93, %p94
    %s97 = sadd.s32 %s96, 1
    %p100 = scmp.eq.s32.totalorder %s10, 1
    %p101 = scmp.ne.s32.totalorder %s96, %s98
    %p102 = scmp.eq.s32.totalorder %s10, 0
    %p103 = por %p101, %p102
    %p104 = scmp.ne.s32.totalorder %s96, %s98
    %p105 = scmp.eq.s32.totalorder %s15, 1
    %p106 = por %p104, %p105
    %p107 = scmp.ne.s32.totalorder %s98, %s99
    %p108 = scmp.eq.s32.totalorder %s15, 0
    %p109 = por %p107, %p108
    %p110 = scmp.ne.s32.totalorder %s98, %s99
    %p111 = scmp.eq.s32.totalorder %s16, 1
    %p112 = por %p110, %p111
    %p114 = scmp.ne.s32.totalorder %s99, %s113
    %p115 = scmp.eq.s32.totalorder %s16, 0
    %p116 = por %p114, %p115
    %s117 = ssub.s32 %s10, %s17
    %p118 = scmp.eq.s32.totalorder %s117, 0
    %s120 = sadd.s32 %s119, 1
    %s121 = scalar_select %p118, %s119, %s120
    %p124 = pneg %p118
    %p125 = scmp.eq.s32.totalorder %s10, 1
    %p126 = por %p124, %p125
    %p127 = scmp.ne.s32.totalorder %s119, %s122
    %p128 = scmp.eq.s32.totalorder %s10, 0
    %p129 = por %p127, %p128
    %p130 = scmp.ne.s32.totalorder %s119, %s122
    %p131 = scmp.eq.s32.totalorder %s15, 1
    %p132 = por %p130, %p131
    %p133 = scmp.ne.s32.totalorder %s122, %s123
    %p134 = scmp.eq.s32.totalorder %s15, 0
    %p135 = por %p133, %p134
    %p136 = scmp.ne.s32.totalorder %s122, %s123
    %p137 = scmp.eq.s32.totalorder %s16, 1
    %p138 = por %p136, %p137
    %p140 = scmp.ne.s32.totalorder %s123, %s139
    %p141 = scmp.eq.s32.totalorder %s16, 0
    %p142 = por %p140, %p141
    %p143 = scmp.le.s32.totalorder 1, %s10
    %p144 = scmp.lt.s32.totalorder %s10, 3
    %p145 = pnand %p143, %p144
    %p146 = pneg %p145
    // Predicated region
    $region9: #{_decode_core.5} parent=5 // pred_check
      _
    $region10: #{_decode_core.5} parent=5 // pred_check_branch
      %148 = sbr.rel (%p145) target = $region12
    $region11: #{_decode_core.5} parent=5 // pred_region
      %s149 = ssub.s32 %s10, 1
      // Predicated region
      $region13: #{_decode_core.5} parent=11 // pred_check
        %p150 = pneg %p109
      $region14: #{_decode_core.5} parent=11 // pred_check_branch
        %152 = sbr.rel (%p150) target = $region16
      $region15: #{_decode_core.5} parent=11 // pred_region
        _
      $region16: #{_decode_core.5} parent=11 // pred_fallthru
        _
    $region12: #{_decode_core.5} parent=5 // pred_fallthru
      _
    %p153 = scmp.lt.s32.totalorder %s10, 2
    // Predicated region
    $region17: #{_decode_core.5} parent=5 // pred_check
      %p154 = pneg %p153
    $region18: #{_decode_core.5} parent=5 // pred_check_branch
      %156 = sbr.rel (%p154) target = $region20
    $region19: #{_decode_core.5} parent=5 // pred_region
      // Predicated region
      $region21: #{_decode_core.5} parent=19 // pred_check
        %p157 = pneg %p30
      $region22: #{_decode_core.5} parent=19 // pred_check_branch
        %159 = sbr.rel (%p157) target = $region24
      $region23: #{_decode_core.5} parent=19 // pred_region
        %p160 = scmp.lt.s32.totalorder %s10, 1
        %s161 = scalar_select %p160, %s10, 1
        %s162 = smul.addr %s161, 2
        %s163 = smul.addr %s162, 8
        %s164 = scalar_lea.vmem %s0, %s163
      $region24: #{_decode_core.5} parent=19 // pred_fallthru
        _
      // Predicated region
      $region25: #{_decode_core.5} parent=19 // pred_check
        %p165 = pneg %p56
      $region26: #{_decode_core.5} parent=19 // pred_check_branch
        %167 = sbr.rel (%p165) target = $region28
      $region27: #{_decode_core.5} parent=19 // pred_region
        %p168 = scmp.lt.s32.totalorder %s10, 1
        %s169 = scalar_select %p168, %s10, 1
        %s170 = smul.addr %s169, 2
        %s171 = smul.addr %s170, 8
        %s172 = scalar_lea.vmem %s1, %s171
      $region28: #{_decode_core.5} parent=19 // pred_fallthru
        _
      // Predicated region
      $region29: #{_decode_core.5} parent=19 // pred_check
        %p173 = pneg %p82
      $region30: #{_decode_core.5} parent=19 // pred_check_branch
        %175 = sbr.rel (%p173) target = $region32
      $region31: #{_decode_core.5} parent=19 // pred_region
        %p176 = scmp.lt.s32.totalorder %s10, 1
        %s177 = scalar_select %p176, %s10, 1
        %s178 = smul.addr %s177, 2
        %s179 = smul.addr %s178, 8
        %s180 = scalar_lea.vmem %s2, %s179
      $region32: #{_decode_core.5} parent=19 // pred_fallthru
        _
    $region20: #{_decode_core.5} parent=5 // pred_fallthru
      _
    %p181 = scmp.le.s32.totalorder 1, %s10
    %p182 = scmp.lt.s32.totalorder %s10, 3
    %p183 = pnand %p181, %p182
    %p184 = pneg %p183
    // Predicated region
    $region33: #{_decode_core.5} parent=5 // pred_check
      _
    $region34: #{_decode_core.5} parent=5 // pred_check_branch
      %186 = sbr.rel (%p183) target = $region36
    $region35: #{_decode_core.5} parent=5 // pred_region
      %s187 = ssub.s32 %s10, 1
      %p188 = scmp.lt.s32.totalorder %s15, 1
      %s189 = scalar_select %p188, %s15, 1
      %s190 = smul.addr %s189, 2
      %s191 = smul.addr %s190, 8
      %s192 = scalar_lea.vmem %s0, %s191
      %p193 = pneg %p36
      %p194 = pneg %p33
      %p195 = scmp.lt.s32.totalorder %s15, 1
      %s196 = scalar_select %p195, %s15, 1
      %s197 = smul.addr %s196, 2
      %s198 = smul.addr %s197, 8
      %s199 = scalar_lea.vmem %s1, %s198
      %p200 = pneg %p62
      %p201 = pneg %p59
      %p202 = scmp.lt.s32.totalorder %s15, 1
      %s203 = scalar_select %p202, %s15, 1
      %s204 = smul.addr %s203, 2
      %s205 = smul.addr %s204, 8
      %s206 = scalar_lea.vmem %s2, %s205
      %p207 = pneg %p88
      %p208 = pneg %p85
      %p209 = pneg %p109
      %p210 = pneg %p106
      %p211 = pneg %p135
      %p212 = pneg %p132
      %p213 = scmp.lt.s32.totalorder %s15, 1
      %s214 = scalar_select %p213, %s15, 1
      %s215 = smul.addr %s214, 4
      %s216 = smul.addr %s215, 8
      %s217 = scalar_lea.vmem %s4, %s216
      %p218 = scmp.lt.s32.totalorder %s15, 1
      %s219 = scalar_select %p218, %s15, 1
      %s220 = smul.addr %s219, 2
      %s221 = smul.addr %s220, 8
      %s222 = scalar_lea.vmem %s0, %s221
      %p223 = scmp.lt.s32.totalorder %s15, 1
      %s224 = scalar_select %p223, %s15, 1
      %s225 = smul.addr %s224, 2
      %s226 = smul.addr %s225, 8
      %s227 = scalar_lea.vmem %s1, %s226
      %p228 = scmp.lt.s32.totalorder %s15, 1
      %s229 = scalar_select %p228, %s15, 1
      %s230 = smul.addr %s229, 2
      %s231 = smul.addr %s230, 8
      %s232 = scalar_lea.vmem %s2, %s231
      %p233 = scmp.lt.s32.totalorder %s15, 1
      %s234 = scalar_select %p233, %s15, 1
      %s235 = smul.addr %s234, 4
      %s236 = smul.addr %s235, 8
      %s237 = scalar_lea.vmem %s4, %s236
      %v238 = vld [vmem:[%s222] sm:$0xff]
      %v239 = vld [vmem:[%s222 + $0x8] sm:$0xff]
      %v240 = vld [vmem:[%s227] sm:$0xff]
      %v241 = vld [vmem:[%s227 + $0x8] sm:$0xff]
      %vm242 = vcmask 64512
      %v244 = vsel %vm242, %v238, 0
      %v247 = vsel %vm242, %v239, 0
      %249 = vmatprep.subr.mxu0 %v241
      %250 = vmatpush1.msra.mxu0 %v240
      %251 = vmatprep.subr.mxu0 0.0
      %252 = vmatpush1.msra.mxu0 0.0
      %253 = vmatprep.subr.mxu0 0.0
      %254 = vmatpush1.msra.mxu0 0.0
      %255 = vmatprep.subr.mxu0 0.0
      %256 = vmatpush1.msra.mxu0 0.0
      %257 = vmatprep.subr.mxu0 0.0
      %258 = vmatpush1.msra.mxu0 0.0
      %259 = vmatprep.subr.mxu0 0.0
      %260 = vmatpush1.msra.mxu0 0.0
      %261 = vmatprep.subr.mxu0 0.0
      %262 = vmatpush1.msra.mxu0 0.0
      %263 = vmatprep.subr.mxu0 0.0
      %264 = vmatpush1.msra.mxu0 0.0
      %265 = vmatprep.subr.mxu0 0.0
      %266 = vmatpush1.msra.mxu0 0.0
      %267 = vmatprep.subr.mxu0 0.0
      %268 = vmatpush1.msra.mxu0 0.0
      %269 = vmatprep.subr.mxu0 0.0
      %270 = vmatpush1.msra.mxu0 0.0
      %271 = vmatprep.subr.mxu0 0.0
      %272 = vmatpush1.msra.mxu0 0.0
      %273 = vmatprep.subr.mxu0 0.0
      %274 = vmatpush1.msra.mxu0 0.0
      %275 = vmatprep.subr.mxu0 0.0
      %276 = vmatpush1.msra.mxu0 0.0
      %277 = vmatprep.subr.mxu0 0.0
      %278 = vmatpush1.msra.mxu0 0.0
      %279 = vmatprep.subr.mxu0 0.0
      %280 = vmatpush1.msra.mxu0 0.0
      %281 = vmatprep.subr.mxu0 0.0
      %282 = vmatpush1.msra.mxu0 0.0
      %283 = vmatprep.subr.mxu0 0.0
      %284 = vmatpush1.msra.mxu0 0.0
      %285 = vmatprep.subr.mxu0 0.0
      %286 = vmatpush1.msra.mxu0 0.0
      %287 = vmatprep.subr.mxu0 0.0
      %288 = vmatpush1.msra.mxu0 0.0
      %289 = vmatprep.subr.mxu0 0.0
      %290 = vmatpush1.msra.mxu0 0.0
      %291 = vmatprep.subr.mxu0 0.0
      %292 = vmatpush1.msra.mxu0 0.0
      %293 = vmatprep.subr.mxu0 0.0
      %294 = vmatpush1.msra.mxu0 0.0
      %295 = vmatprep.subr.mxu0 0.0
      %296 = vmatpush1.msra.mxu0 0.0
      %297 = vmatprep.subr.mxu0 0.0
      %298 = vmatpush1.msra.mxu0 0.0
      %299 = vmatprep.subr.mxu0 0.0
      %300 = vmatpush1.msra.mxu0 0.0
      %301 = vmatprep.subr.mxu0 0.0
      %302 = vmatpush1.msra.mxu0 0.0
      %303 = vmatprep.subr.mxu0 0.0
      %304 = vmatpush1.msra.mxu0 0.0
      %305 = vmatprep.subr.mxu0 0.0
      %306 = vmatpush1.msra.mxu0 0.0
      %307 = vmatprep.subr.mxu0 0.0
      %308 = vmatpush1.msra.mxu0 0.0
      %309 = vmatprep.subr.mxu0 0.0
      %310 = vmatpush1.msra.mxu0 0.0
      %311 = vmatprep.subr.mxu0 0.0
      %312 = vmatpush1.msra.mxu0 0.0
      %313 = vmatprep.mubr.f32.mxu0 0.0
      %314 = vmatmul.mubr.f32.gmra.mrb[0].mxu0 %v244
      %v315 = vpop.f32.mrb[0].mxu0
      %v316 = vadd.f32 0.0, %v315
      %v317 = vpop.f32.mrb[0].mxu0
      %v318 = vadd.f32 0.0, %v317
      %319 = vmatprep.mubr.f32.mxu0 0.0
      %320 = vmatmul.mubr.f32.gmra.mrb[0].mxu0 %v247
      %v321 = vpop.f32.mrb[0].mxu0
      %v322 = vadd.f32 0.0, %v321
      %v323 = vpop.f32.mrb[0].mxu0
      %v324 = vadd.f32 0.0, %v323
      %325 = vdwg.mxu0
      %v326 = vxor.u32 %v316, 2147483648
      %v327 = vxor.u32 %v318, 2147483648
      %v328 = vxor.u32 %v322, 2147483648
      %v329 = vxor.u32 %v324, 2147483648
      %v330 = vmul.f32 %v326, 1.442695
      %v331 = vpow.pop %v330
      %v332 = vmul.f32 %v327, 1.442695
      %v333 = vpow.pop %v332
      %v334 = vmul.f32 %v328, 1.442695
      %v335 = vpow.pop %v334
      %v336 = vmul.f32 %v329, 1.442695
      %v337 = vpow.pop %v336
      %v338 = vadd.f32 %v331, 1.0
      %v339 = vadd.f32 %v333, 1.0
      %v340 = vadd.f32 %v335, 1.0
      %v341 = vadd.f32 %v337, 1.0
      %v342 = vrcp.pop %v338
      %v343 = vmul.f32 1.0, %v342
      %v344 = vrcp.pop %v339
      %v345 = vmul.f32 1.0, %v344
      %v346 = vrcp.pop %v340
      %v347 = vmul.f32 1.0, %v346
      %v348 = vrcp.pop %v341
      %v349 = vmul.f32 1.0, %v348
      %v350 = vld [vmem:[%s3] ss:$2 sm:$0x3]
      %s351 = scalar_lea.vmem %s3, 1
      %v352 = vld [vmem:[%s351] ss:$2 sm:$0x3]
      %v353 = vld [vmem:[%s232] sm:$0xff]
      %v354 = vld [vmem:[%s232 + $0x8] sm:$0xff]
      %v355 = vmul.f32 %v353, 16.0
      %v356 = vmul.f32 %v354, 16.0
      %359 = vrot.lane.b32.xlu0 %v355, 126
      %v360 = vpop.permute.xlu0 %359
      %361 = vrot.lane.b32.xlu0 %v356, 126
      %v362 = vpop.permute.xlu0 %361
      %v365 = vmin.f32 %v355, %v360
      %v366 = vmin.f32 %v356, %v362
      %v367 = vsub.f32 %v365, 1.0
      %v368 = vsub.f32 %v366, 1.0
      %v369 = vmax.f32 %v367, 0.0
      %v370 = vmax.f32 %v368, 0.0
      %v371 = vmax.f32 %v355, %v360
      %v372 = vmax.f32 %v356, %v362
      %v373 = vadd.f32 %v371, 1.0
      %v374 = vadd.f32 %v372, 1.0
      %v375 = vmin.f32 %v373, 16.0
      %v376 = vmin.f32 %v374, 16.0
      %v378 = vlaneseq
      %v379 = vshrl.u32 %v378, 7
      %v380 = vsub.s32 0, %v379
      %v381 = vrot.slane %v350, %v380
      %v382 = vlaneseq
      %v383 = vshrl.u32 %v382, 7
      %v384 = vsub.s32 1, %v383
      %v385 = vrot.slane %v350, %v384
      %389 = vset.pattern.permute.xlu0 0
      %390 = vperm.xlu0 %389, %v369
      %v391 = vpop.permute.xlu0 %390
      %394 = vset.pattern.permute.xlu0 0
      %395 = vperm.xlu0 %394, %v370
      %v396 = vpop.permute.xlu0 %395
      %vm398 = vcmp.ge.f32.partialorder %v381, %v391
      %vm399 = vcmp.ge.f32.partialorder %v385, %v391
      %vm400 = vcmp.ge.f32.partialorder %v381, %v396
      %vm401 = vcmp.ge.f32.partialorder %v385, %v396
      %403 = vset.pattern.permute.xlu0 0
      %404 = vperm.xlu0 %403, %v375
      %v405 = vpop.permute.xlu0 %404
      %408 = vset.pattern.permute.xlu0 0
      %409 = vperm.xlu0 %408, %v376
      %v410 = vpop.permute.xlu0 %409
      %vm412 = vcmp.lt.f32.partialorder %v381, %v405
      %vm413 = vcmp.lt.f32.partialorder %v385, %v405
      %vm414 = vcmp.lt.f32.partialorder %v381, %v410
      %vm415 = vcmp.lt.f32.partialorder %v385, %v410
      %vm416 = vmand %vm398, %vm412
      %vm417 = vmand %vm399, %vm413
      %vm418 = vmand %vm400, %vm414
      %vm419 = vmand %vm401, %vm415
      %v421 = vlaneseq
      %v422 = vshrl.u32 %v421, 7
      %v423 = vsub.s32 0, %v422
      %v424 = vrot.slane %v352, %v423
      %v425 = vlaneseq
      %v426 = vshrl.u32 %v425, 7
      %v427 = vsub.s32 1, %v426
      %v428 = vrot.slane %v352, %v427
      %431 = vset.pattern.permute.xlu0 1
      %432 = vperm.xlu0 %431, %v369
      %v433 = vpop.permute.xlu0 %432
      %435 = vset.pattern.permute.xlu0 1
      %436 = vperm.xlu0 %435, %v370
      %v437 = vpop.permute.xlu0 %436
      %vm439 = vcmp.ge.f32.partialorder %v424, %v433
      %vm440 = vcmp.ge.f32.partialorder %v428, %v433
      %vm441 = vcmp.ge.f32.partialorder %v424, %v437
      %vm442 = vcmp.ge.f32.partialorder %v428, %v437
      %vm443 = vmand %vm416, %vm439
      %vm444 = vmand %vm417, %vm440
      %vm445 = vmand %vm418, %vm441
      %vm446 = vmand %vm419, %vm442
      %447 = vset.pattern.permute.xlu0 1
      %448 = vperm.xlu0 %447, %v375
      %v449 = vpop.permute.xlu0 %448
      %451 = vset.pattern.permute.xlu0 1
      %452 = vperm.xlu0 %451, %v376
      %v453 = vpop.permute.xlu0 %452
      %vm455 = vcmp.lt.f32.partialorder %v424, %v449
      %vm456 = vcmp.lt.f32.partialorder %v428, %v449
      %vm457 = vcmp.lt.f32.partialorder %v424, %v453
      %vm458 = vcmp.lt.f32.partialorder %v428, %v453
      %vm459 = vmand %vm443, %vm455
      %vm460 = vmand %vm444, %vm456
      %vm461 = vmand %vm445, %vm457
      %vm462 = vmand %vm446, %vm458
      %v463 = vsel %vm459, 1, 0
      %v464 = vsel %vm460, 1, 0
      %v465 = vsel %vm461, 1, 0
      %v466 = vsel %vm462, 1, 0
      %v467 = vcvt.s32.f32 %v463
      %v468 = vcvt.s32.f32 %v464
      %v469 = vcvt.s32.f32 %v465
      %v470 = vcvt.s32.f32 %v466
      %v471 = vmul.f32 %v343, %v467
      %v472 = vmul.f32 %v345, %v468
      %v473 = vmul.f32 %v347, %v469
      %v474 = vmul.f32 %v349, %v470
      %475 = vst [vmem:[%s237] sm:$0xff] %v471
      %476 = vst [vmem:[%s237 + $0x8] sm:$0xff] %v472
      %477 = vst [vmem:[%s237 + $0x10] sm:$0xff] %v473
      %478 = vst [vmem:[%s237 + $0x18] sm:$0xff] %v474
      %p479 = scmp.lt.s32.totalorder %s15, 1
      %s480 = scalar_select %p479, %s15, 1
      %s481 = smul.addr %s480, 4
      %s482 = smul.addr %s481, 8
      %s483 = scalar_lea.vmem %s4, %s482
      // Predicated region
      $region37: #{_decode_core.5} parent=35 // pred_check
        %p484 = pneg %p132
      $region38: #{_decode_core.5} parent=35 // pred_check_branch
        %486 = sbr.rel (%p484) target = $region40
      $region39: #{_decode_core.5} parent=35 // pred_region
        _
      $region40: #{_decode_core.5} parent=35 // pred_fallthru
        _
    $region36: #{_decode_core.5} parent=5 // pred_fallthru
      _
    %p487 = scmp.le.s32.totalorder 2, %s10
    // Predicated region
    $region41: #{_decode_core.5} parent=5 // pred_check
      %p488 = pneg %p487
    $region42: #{_decode_core.5} parent=5 // pred_check_branch
      %490 = sbr.rel (%p488) target = $region44
    $region43: #{_decode_core.5} parent=5 // pred_region
      %s491 = ssub.s32 %s10, 2
      // Predicated region
      $region45: #{_decode_core.5} parent=43 // pred_check
        %p492 = pneg %p138
      $region46: #{_decode_core.5} parent=43 // pred_check_branch
        %494 = sbr.rel (%p492) target = $region48
      $region47: #{_decode_core.5} parent=43 // pred_region
        %p495 = scmp.lt.s32.totalorder %s16, 1
        %s496 = scalar_select %p495, %s16, 1
        %s497 = smul.addr %s496, 4
        %s498 = smul.addr %s497, 8
        %s499 = scalar_lea.vmem %s4, %s498
      $region48: #{_decode_core.5} parent=43 // pred_fallthru
        _
    $region44: #{_decode_core.5} parent=5 // pred_fallthru
      _
  $region6: #{_decode_core.5} parent=0 // loop_footer
    %s14 = sadd.s32 1, %s10
  $region7: #{_decode_core.5} parent=0 // loop_footer_branch
    %9 = sbr.rel target = $region3
  $region8: #{_decode_core.5} parent=0 // loop_exit
    _

// kernel: _decode_core.4
$region0: #{_decode_core.4}
  #allocation0 [shape = 'u32[]', space=smem, size = 0x4, offset = 0x4, fixed_abs, tag = 'smem constant byte address 0x4 - core index']
  #allocation1 [shape = 'u32[144,128]{1,0:T(1,128)}', space=vmem, size = 0x12000, scoped, tag = 'internal scratch']
  %s0 = inlined_call_operand.vmem [shape: f32[2,4,256], index: 0, kind: input, shape index: {}]
  %s1 = inlined_call_operand.vmem [shape: s32[2,7,64], index: 1, kind: input, shape index: {}]
  %s2 = inlined_call_operand.vmem [shape: f32[2,7,64], index: 2, kind: input, shape index: {}]
  %s3 = inlined_call_operand.vmem [shape: f32[2,7,64], index: 3, kind: output, shape index: {}]
  %s4 = sld [smem:[#allocation0]]
  $region45: #{_decode_core.4} parent=0
    _
  %s6 = ssub.s32 1, %s4
  %s7 = scalar_select 0, %s6, %s4
  loop: start=0, step=1, limit=4
  $region2: #{_decode_core.4} parent=0 // loop_pre_header
    _
  $region3: #{_decode_core.4} parent=0 // loop_header
    %s9 = sphi 0, %s13
    %p10 = scmp.ge.s32.totalorder %s9, 4
    %s19 = sphi 0, %s21
    %s22 = sphi 0, %s19
    %s23 = sphi 0, %s22
    %s39 = sphi 0, %s23
    %s45 = sphi 0, %s47
    %s48 = sphi 0, %s45
    %s49 = sphi 0, %s48
    %s65 = sphi 0, %s49
    %s71 = sphi 0, %s73
    %s74 = sphi 0, %s71
    %s75 = sphi 0, %s74
    %s91 = sphi 0, %s75
    %s97 = sphi 0, %s99
    %s100 = sphi 0, %s97
    %s101 = sphi 0, %s100
    %s117 = sphi 0, %s101
  $region4: #{_decode_core.4} parent=0 // loop_header_branch
    %12 = sbr.rel (%p10) target = $region8
  $region5: #{_decode_core.4} parent=0 // loop_body
    %s14 = ssub.s32 %s9, 1
    %s15 = ssub.s32 %s9, 2
    %s16 = sadd.s32 %s9, 1
    %s17 = ssub.s32 %s9, %s16
    %p18 = scmp.eq.s32.totalorder %s17, 0
    %s20 = sadd.s32 %s19, 1
    %s21 = scalar_select %p18, %s19, %s20
    %p24 = pneg %p18
    %p25 = scmp.eq.s32.totalorder %s9, 1
    %p26 = por %p24, %p25
    %p27 = scmp.ne.s32.totalorder %s19, %s22
    %p28 = scmp.eq.s32.totalorder %s9, 0
    %p29 = por %p27, %p28
    %p30 = scmp.ne.s32.totalorder %s19, %s22
    %p31 = scmp.eq.s32.totalorder %s14, 1
    %p32 = por %p30, %p31
    %p33 = scmp.ne.s32.totalorder %s22, %s23
    %p34 = scmp.eq.s32.totalorder %s14, 0
    %p35 = por %p33, %p34
    %p36 = scmp.ne.s32.totalorder %s22, %s23
    %p37 = scmp.eq.s32.totalorder %s15, 1
    %p38 = por %p36, %p37
    %p40 = scmp.ne.s32.totalorder %s23, %s39
    %p41 = scmp.eq.s32.totalorder %s15, 0
    %p42 = por %p40, %p41
    %s43 = ssub.s32 %s9, %s16
    %p44 = scmp.eq.s32.totalorder %s43, 0
    %s46 = sadd.s32 %s45, 1
    %s47 = scalar_select %p44, %s45, %s46
    %p50 = pneg %p44
    %p51 = scmp.eq.s32.totalorder %s9, 1
    %p52 = por %p50, %p51
    %p53 = scmp.ne.s32.totalorder %s45, %s48
    %p54 = scmp.eq.s32.totalorder %s9, 0
    %p55 = por %p53, %p54
    %p56 = scmp.ne.s32.totalorder %s45, %s48
    %p57 = scmp.eq.s32.totalorder %s14, 1
    %p58 = por %p56, %p57
    %p59 = scmp.ne.s32.totalorder %s48, %s49
    %p60 = scmp.eq.s32.totalorder %s14, 0
    %p61 = por %p59, %p60
    %p62 = scmp.ne.s32.totalorder %s48, %s49
    %p63 = scmp.eq.s32.totalorder %s15, 1
    %p64 = por %p62, %p63
    %p66 = scmp.ne.s32.totalorder %s49, %s65
    %p67 = scmp.eq.s32.totalorder %s15, 0
    %p68 = por %p66, %p67
    %s69 = ssub.s32 %s9, %s16
    %p70 = scmp.eq.s32.totalorder %s69, 0
    %s72 = sadd.s32 %s71, 1
    %s73 = scalar_select %p70, %s71, %s72
    %p76 = pneg %p70
    %p77 = scmp.eq.s32.totalorder %s9, 1
    %p78 = por %p76, %p77
    %p79 = scmp.ne.s32.totalorder %s71, %s74
    %p80 = scmp.eq.s32.totalorder %s9, 0
    %p81 = por %p79, %p80
    %p82 = scmp.ne.s32.totalorder %s71, %s74
    %p83 = scmp.eq.s32.totalorder %s14, 1
    %p84 = por %p82, %p83
    %p85 = scmp.ne.s32.totalorder %s74, %s75
    %p86 = scmp.eq.s32.totalorder %s14, 0
    %p87 = por %p85, %p86
    %p88 = scmp.ne.s32.totalorder %s74, %s75
    %p89 = scmp.eq.s32.totalorder %s15, 1
    %p90 = por %p88, %p89
    %p92 = scmp.ne.s32.totalorder %s75, %s91
    %p93 = scmp.eq.s32.totalorder %s15, 0
    %p94 = por %p92, %p93
    %s95 = ssub.s32 %s9, %s16
    %p96 = scmp.eq.s32.totalorder %s95, 0
    %s98 = sadd.s32 %s97, 1
    %s99 = scalar_select %p96, %s97, %s98
    %p102 = pneg %p96
    %p103 = scmp.eq.s32.totalorder %s9, 1
    %p104 = por %p102, %p103
    %p105 = scmp.ne.s32.totalorder %s97, %s100
    %p106 = scmp.eq.s32.totalorder %s9, 0
    %p107 = por %p105, %p106
    %p108 = scmp.ne.s32.totalorder %s97, %s100
    %p109 = scmp.eq.s32.totalorder %s14, 1
    %p110 = por %p108, %p109
    %p111 = scmp.ne.s32.totalorder %s100, %s101
    %p112 = scmp.eq.s32.totalorder %s14, 0
    %p113 = por %p111, %p112
    %p114 = scmp.ne.s32.totalorder %s100, %s101
    %p115 = scmp.eq.s32.totalorder %s15, 1
    %p116 = por %p114, %p115
    %p118 = scmp.ne.s32.totalorder %s101, %s117
    %p119 = scmp.eq.s32.totalorder %s15, 0
    %p120 = por %p118, %p119
    %p121 = scmp.le.s32.totalorder 1, %s9
    %p122 = scmp.lt.s32.totalorder %s9, 3
    %p123 = pnand %p121, %p122
    %p124 = pneg %p123
    // Predicated region
    $region9: #{_decode_core.4} parent=5 // pred_check
      _
    $region10: #{_decode_core.4} parent=5 // pred_check_branch
      %126 = sbr.rel (%p123) target = $region12
    $region11: #{_decode_core.4} parent=5 // pred_region
      %s127 = ssub.s32 %s9, 1
    $region12: #{_decode_core.4} parent=5 // pred_fallthru
      _
    %p128 = scmp.lt.s32.totalorder %s9, 2
    // Predicated region
    $region13: #{_decode_core.4} parent=5 // pred_check
      %p129 = pneg %p128
    $region14: #{_decode_core.4} parent=5 // pred_check_branch
      %131 = sbr.rel (%p129) target = $region16
    $region15: #{_decode_core.4} parent=5 // pred_region
      // Predicated region
      $region17: #{_decode_core.4} parent=15 // pred_check
        %p132 = pneg %p29
      $region18: #{_decode_core.4} parent=15 // pred_check_branch
        %134 = sbr.rel (%p132) target = $region20
      $region19: #{_decode_core.4} parent=15 // pred_region
        %p135 = scmp.lt.s32.totalorder %s9, 1
        %s136 = scalar_select %p135, %s9, 1
        %s137 = smul.addr %s136, 2
        %s138 = smul.addr %s137, 4
        %s139 = scalar_lea.vmem %s0, %s138
      $region20: #{_decode_core.4} parent=15 // pred_fallthru
        _
      // Predicated region
      $region21: #{_decode_core.4} parent=15 // pred_check
        %p140 = pneg %p55
      $region22: #{_decode_core.4} parent=15 // pred_check_branch
        %142 = sbr.rel (%p140) target = $region24
      $region23: #{_decode_core.4} parent=15 // pred_region
        %p143 = scmp.lt.s32.totalorder %s9, 1
        %s144 = scalar_select %p143, %s9, 1
        %s145 = smul.addr %s144, 8
        %s146 = scalar_lea.vmem %s1, %s145
      $region24: #{_decode_core.4} parent=15 // pred_fallthru
        _
      // Predicated region
      $region25: #{_decode_core.4} parent=15 // pred_check
        %p147 = pneg %p81
      $region26: #{_decode_core.4} parent=15 // pred_check_branch
        %149 = sbr.rel (%p147) target = $region28
      $region27: #{_decode_core.4} parent=15 // pred_region
        %p150 = scmp.lt.s32.totalorder %s9, 1
        %s151 = scalar_select %p150, %s9, 1
        %s152 = smul.addr %s151, 8
        %s153 = scalar_lea.vmem %s2, %s152
      $region28: #{_decode_core.4} parent=15 // pred_fallthru
        _
    $region16: #{_decode_core.4} parent=5 // pred_fallthru
      _
    %p154 = scmp.le.s32.totalorder 1, %s9
    %p155 = scmp.lt.s32.totalorder %s9, 3
    %p156 = pnand %p154, %p155
    %p157 = pneg %p156
    // Predicated region
    $region29: #{_decode_core.4} parent=5 // pred_check
      _
    $region30: #{_decode_core.4} parent=5 // pred_check_branch
      %159 = sbr.rel (%p156) target = $region32
    $region31: #{_decode_core.4} parent=5 // pred_region
      %s160 = ssub.s32 %s9, 1
      %p161 = scmp.lt.s32.totalorder %s14, 1
      %s162 = scalar_select %p161, %s14, 1
      %s163 = smul.addr %s162, 2
      %s164 = smul.addr %s163, 4
      %s165 = scalar_lea.vmem %s0, %s164
      %p166 = pneg %p35
      %p167 = pneg %p32
      %p168 = scmp.lt.s32.totalorder %s14, 1
      %s169 = scalar_select %p168, %s14, 1
      %s170 = smul.addr %s169, 8
      %s171 = scalar_lea.vmem %s1, %s170
      %p172 = pneg %p61
      %p173 = pneg %p58
      %p174 = scmp.lt.s32.totalorder %s14, 1
      %s175 = scalar_select %p174, %s14, 1
      %s176 = smul.addr %s175, 8
      %s177 = scalar_lea.vmem %s2, %s176
      %p178 = pneg %p87
      %p179 = pneg %p84
      %p180 = pneg %p113
      %p181 = pneg %p110
      %p182 = scmp.lt.s32.totalorder %s14, 1
      %s183 = scalar_select %p182, %s14, 1
      %s184 = smul.addr %s183, 8
      %s185 = scalar_lea.vmem %s3, %s184
      %p186 = scmp.lt.s32.totalorder %s14, 1
      %s187 = scalar_select %p186, %s14, 1
      %s188 = smul.addr %s187, 2
      %s189 = smul.addr %s188, 4
      %s190 = scalar_lea.vmem %s0, %s189
      %p191 = scmp.lt.s32.totalorder %s14, 1
      %s192 = scalar_select %p191, %s14, 1
      %s193 = smul.addr %s192, 8
      %s194 = scalar_lea.vmem %s1, %s193
      %p195 = scmp.lt.s32.totalorder %s14, 1
      %s196 = scalar_select %p195, %s14, 1
      %s197 = smul.addr %s196, 8
      %s198 = scalar_lea.vmem %s2, %s197
      %p199 = scmp.lt.s32.totalorder %s14, 1
      %s200 = scalar_select %p199, %s14, 1
      %s201 = smul.addr %s200, 8
      %s202 = scalar_lea.vmem %s3, %s201
      %v203 = vld [vmem:[%s190] sm:$0xff]
      %v204 = vld [vmem:[%s194] sm:$0x7f]
      %v205 = vlaneseq
      %v206 = vand.u32 %v205, 127
      %v207 = vadd.s32 %v206, 128
      %v208 = vlaneseq
      %v209 = vshrl.u32 %v208, 7
      %v210 = vsub.s32 0, %v209
      %v211 = vrot.slane %v204, %v210
      %213 = vbcast.lane.b32.xlu0 %v211, 256
      %v214 = vpop.permute.xlu0 %213
      %s216 = sor.u32 256, 8
      %217 = vbcast.lane.b32.xlu0 %v211, %s216
      %v218 = vpop.permute.xlu0 %217
      %s220 = sor.u32 256, 16
      %221 = vbcast.lane.b32.xlu0 %v211, %s220
      %v222 = vpop.permute.xlu0 %221
      %s224 = sor.u32 256, 24
      %225 = vbcast.lane.b32.xlu0 %v211, %s224
      %v226 = vpop.permute.xlu0 %225
      %s228 = sor.u32 256, 32
      %229 = vbcast.lane.b32.xlu0 %v211, %s228
      %v230 = vpop.permute.xlu0 %229
      %s232 = sor.u32 256, 40
      %233 = vbcast.lane.b32.xlu0 %v211, %s232
      %v234 = vpop.permute.xlu0 %233
      %s236 = sor.u32 256, 48
      %237 = vbcast.lane.b32.xlu0 %v211, %s236
      %v238 = vpop.permute.xlu0 %237
      %s240 = sor.u32 256, 56
      %241 = vbcast.lane.b32.xlu0 %v211, %s240
      %v242 = vpop.permute.xlu0 %241
      %v243 = vlaneseq
      %v244 = vshrl.u32 %v243, 7
      %v245 = vsub.s32 1, %v244
      %v246 = vrot.slane %v204, %v245
      %248 = vbcast.lane.b32.xlu0 %v246, 256
      %v249 = vpop.permute.xlu0 %248
      %s251 = sor.u32 256, 8
      %252 = vbcast.lane.b32.xlu0 %v246, %s251
      %v253 = vpop.permute.xlu0 %252
      %s255 = sor.u32 256, 16
      %256 = vbcast.lane.b32.xlu0 %v246, %s255
      %v257 = vpop.permute.xlu0 %256
      %s259 = sor.u32 256, 24
      %260 = vbcast.lane.b32.xlu0 %v246, %s259
      %v261 = vpop.permute.xlu0 %260
      %s263 = sor.u32 256, 32
      %264 = vbcast.lane.b32.xlu0 %v246, %s263
      %v265 = vpop.permute.xlu0 %264
      %s267 = sor.u32 256, 40
      %268 = vbcast.lane.b32.xlu0 %v246, %s267
      %v269 = vpop.permute.xlu0 %268
      %s271 = sor.u32 256, 48
      %272 = vbcast.lane.b32.xlu0 %v246, %s271
      %v273 = vpop.permute.xlu0 %272
      %s275 = sor.u32 256, 56
      %276 = vbcast.lane.b32.xlu0 %v246, %s275
      %v277 = vpop.permute.xlu0 %276
      %v278 = vlaneseq
      %v279 = vshrl.u32 %v278, 7
      %v280 = vsub.s32 2, %v279
      %v281 = vrot.slane %v204, %v280
      %283 = vbcast.lane.b32.xlu0 %v281, 256
      %v284 = vpop.permute.xlu0 %283
      %s286 = sor.u32 256, 8
      %287 = vbcast.lane.b32.xlu0 %v281, %s286
      %v288 = vpop.permute.xlu0 %287
      %s290 = sor.u32 256, 16
      %291 = vbcast.lane.b32.xlu0 %v281, %s290
      %v292 = vpop.permute.xlu0 %291
      %s294 = sor.u32 256, 24
      %295 = vbcast.lane.b32.xlu0 %v281, %s294
      %v296 = vpop.permute.xlu0 %295
      %s298 = sor.u32 256, 32
      %299 = vbcast.lane.b32.xlu0 %v281, %s298
      %v300 = vpop.permute.xlu0 %299
      %s302 = sor.u32 256, 40
      %303 = vbcast.lane.b32.xlu0 %v281, %s302
      %v304 = vpop.permute.xlu0 %303
      %s306 = sor.u32 256, 48
      %307 = vbcast.lane.b32.xlu0 %v281, %s306
      %v308 = vpop.permute.xlu0 %307
      %s310 = sor.u32 256, 56
      %311 = vbcast.lane.b32.xlu0 %v281, %s310
      %v312 = vpop.permute.xlu0 %311
      %v313 = vlaneseq
      %v314 = vshrl.u32 %v313, 7
      %v315 = vsub.s32 3, %v314
      %v316 = vrot.slane %v204, %v315
      %318 = vbcast.lane.b32.xlu0 %v316, 256
      %v319 = vpop.permute.xlu0 %318
      %s321 = sor.u32 256, 8
      %322 = vbcast.lane.b32.xlu0 %v316, %s321
      %v323 = vpop.permute.xlu0 %322
      %s325 = sor.u32 256, 16
      %326 = vbcast.lane.b32.xlu0 %v316, %s325
      %v327 = vpop.permute.xlu0 %326
      %s329 = sor.u32 256, 24
      %330 = vbcast.lane.b32.xlu0 %v316, %s329
      %v331 = vpop.permute.xlu0 %330
      %s333 = sor.u32 256, 32
      %334 = vbcast.lane.b32.xlu0 %v316, %s333
      %v335 = vpop.permute.xlu0 %334
      %s337 = sor.u32 256, 40
      %338 = vbcast.lane.b32.xlu0 %v316, %s337
      %v339 = vpop.permute.xlu0 %338
      %s341 = sor.u32 256, 48
      %342 = vbcast.lane.b32.xlu0 %v316, %s341
      %v343 = vpop.permute.xlu0 %342
      %s345 = sor.u32 256, 56
      %346 = vbcast.lane.b32.xlu0 %v316, %s345
      %v347 = vpop.permute.xlu0 %346
      %v348 = vlaneseq
      %v349 = vshrl.u32 %v348, 7
      %v350 = vsub.s32 4, %v349
      %v351 = vrot.slane %v204, %v350
      %353 = vbcast.lane.b32.xlu0 %v351, 256
      %v354 = vpop.permute.xlu0 %353
      %s356 = sor.u32 256, 8
      %357 = vbcast.lane.b32.xlu0 %v351, %s356
      %v358 = vpop.permute.xlu0 %357
      %s360 = sor.u32 256, 16
      %361 = vbcast.lane.b32.xlu0 %v351, %s360
      %v362 = vpop.permute.xlu0 %361
      %s364 = sor.u32 256, 24
      %365 = vbcast.lane.b32.xlu0 %v351, %s364
      %v366 = vpop.permute.xlu0 %365
      %s368 = sor.u32 256, 32
      %369 = vbcast.lane.b32.xlu0 %v351, %s368
      %v370 = vpop.permute.xlu0 %369
      %s372 = sor.u32 256, 40
      %373 = vbcast.lane.b32.xlu0 %v351, %s372
      %v374 = vpop.permute.xlu0 %373
      %s376 = sor.u32 256, 48
      %377 = vbcast.lane.b32.xlu0 %v351, %s376
      %v378 = vpop.permute.xlu0 %377
      %s380 = sor.u32 256, 56
      %381 = vbcast.lane.b32.xlu0 %v351, %s380
      %v382 = vpop.permute.xlu0 %381
      %v383 = vlaneseq
      %v384 = vshrl.u32 %v383, 7
      %v385 = vsub.s32 5, %v384
      %v386 = vrot.slane %v204, %v385
      %388 = vbcast.lane.b32.xlu0 %v386, 256
      %v389 = vpop.permute.xlu0 %388
      %s391 = sor.u32 256, 8
      %392 = vbcast.lane.b32.xlu0 %v386, %s391
      %v393 = vpop.permute.xlu0 %392
      %s395 = sor.u32 256, 16
      %396 = vbcast.lane.b32.xlu0 %v386, %s395
      %v397 = vpop.permute.xlu0 %396
      %s399 = sor.u32 256, 24
      %400 = vbcast.lane.b32.xlu0 %v386, %s399
      %v401 = vpop.permute.xlu0 %400
      %s403 = sor.u32 256, 32
      %404 = vbcast.lane.b32.xlu0 %v386, %s403
      %v405 = vpop.permute.xlu0 %404
      %s407 = sor.u32 256, 40
      %408 = vbcast.lane.b32.xlu0 %v386, %s407
      %v409 = vpop.permute.xlu0 %408
      %s411 = sor.u32 256, 48
      %412 = vbcast.lane.b32.xlu0 %v386, %s411
      %v413 = vpop.permute.xlu0 %412
      %s415 = sor.u32 256, 56
      %416 = vbcast.lane.b32.xlu0 %v386, %s415
      %v417 = vpop.permute.xlu0 %416
      %v418 = vlaneseq
      %v419 = vshrl.u32 %v418, 7
      %v420 = vsub.s32 6, %v419
      %v421 = vrot.slane %v204, %v420
      %423 = vbcast.lane.b32.xlu0 %v421, 256
      %v424 = vpop.permute.xlu0 %423
      %s426 = sor.u32 256, 8
      %427 = vbcast.lane.b32.xlu0 %v421, %s426
      %v428 = vpop.permute.xlu0 %427
      %s430 = sor.u32 256, 16
      %431 = vbcast.lane.b32.xlu0 %v421, %s430
      %v432 = vpop.permute.xlu0 %431
      %s434 = sor.u32 256, 24
      %435 = vbcast.lane.b32.xlu0 %v421, %s434
      %v436 = vpop.permute.xlu0 %435
      %s438 = sor.u32 256, 32
      %439 = vbcast.lane.b32.xlu0 %v421, %s438
      %v440 = vpop.permute.xlu0 %439
      %s442 = sor.u32 256, 40
      %443 = vbcast.lane.b32.xlu0 %v421, %s442
      %v444 = vpop.permute.xlu0 %443
      %s446 = sor.u32 256, 48
      %447 = vbcast.lane.b32.xlu0 %v421, %s446
      %v448 = vpop.permute.xlu0 %447
      %s450 = sor.u32 256, 56
      %451 = vbcast.lane.b32.xlu0 %v421, %s450
      %v452 = vpop.permute.xlu0 %451
      %vm453 = vcmp.eq.s32.totalorder %v214, %v206
      %vm454 = vcmp.eq.s32.totalorder %v214, %v207
      %vm455 = vcmp.eq.s32.totalorder %v218, %v206
      %vm456 = vcmp.eq.s32.totalorder %v218, %v207
      %vm457 = vcmp.eq.s32.totalorder %v222, %v206
      %vm458 = vcmp.eq.s32.totalorder %v222, %v207
      %vm459 = vcmp.eq.s32.totalorder %v226, %v206
      %vm460 = vcmp.eq.s32.totalorder %v226, %v207
      %vm461 = vcmp.eq.s32.totalorder %v230, %v206
      %vm462 = vcmp.eq.s32.totalorder %v230, %v207
      %vm463 = vcmp.eq.s32.totalorder %v234, %v206
      %vm464 = vcmp.eq.s32.totalorder %v234, %v207
      %vm465 = vcmp.eq.s32.totalorder %v238, %v206
      %vm466 = vcmp.eq.s32.totalorder %v238, %v207
      %vm467 = vcmp.eq.s32.totalorder %v242, %v206
      %vm468 = vcmp.eq.s32.totalorder %v242, %v207
      %vm469 = vcmp.eq.s32.totalorder %v249, %v206
      %vm470 = vcmp.eq.s32.totalorder %v249, %v207
      %vm471 = vcmp.eq.s32.totalorder %v253, %v206
      %vm472 = vcmp.eq.s32.totalorder %v253, %v207
      %vm473 = vcmp.eq.s32.totalorder %v257, %v206
      %vm474 = vcmp.eq.s32.totalorder %v257, %v207
      %vm475 = vcmp.eq.s32.totalorder %v261, %v206
      %vm476 = vcmp.eq.s32.totalorder %v261, %v207
      %vm477 = vcmp.eq.s32.totalorder %v265, %v206
      %vm478 = vcmp.eq.s32.totalorder %v265, %v207
      %vm479 = vcmp.eq.s32.totalorder %v269, %v206
      %vm480 = vcmp.eq.s32.totalorder %v269, %v207
      %vm481 = vcmp.eq.s32.totalorder %v273, %v206
      %vm482 = vcmp.eq.s32.totalorder %v273, %v207
      %vm483 = vcmp.eq.s32.totalorder %v277, %v206
      %vm484 = vcmp.eq.s32.totalorder %v277, %v207
      %vm485 = vcmp.eq.s32.totalorder %v284, %v206
      %vm486 = vcmp.eq.s32.totalorder %v284, %v207
      %vm487 = vcmp.eq.s32.totalorder %v288, %v206
      %vm488 = vcmp.eq.s32.totalorder %v288, %v207
      %vm489 = vcmp.eq.s32.totalorder %v292, %v206
      %vm490 = vcmp.eq.s32.totalorder %v292, %v207
      %vm491 = vcmp.eq.s32.totalorder %v296, %v206
      %vm492 = vcmp.eq.s32.totalorder %v296, %v207
      %vm493 = vcmp.eq.s32.totalorder %v300, %v206
      %vm494 = vcmp.eq.s32.totalorder %v300, %v207
      %vm495 = vcmp.eq.s32.totalorder %v304, %v206
      %vm496 = vcmp.eq.s32.totalorder %v304, %v207
      %vm497 = vcmp.eq.s32.totalorder %v308, %v206
      %vm498 = vcmp.eq.s32.totalorder %v308, %v207
      %vm499 = vcmp.eq.s32.totalorder %v312, %v206
      %vm500 = vcmp.eq.s32.totalorder %v312, %v207
      %vm501 = vcmp.eq.s32.totalorder %v319, %v206
      %vm502 = vcmp.eq.s32.totalorder %v319, %v207
      %vm503 = vcmp.eq.s32.totalorder %v323, %v206
      %vm504 = vcmp.eq.s32.totalorder %v323, %v207
      %vm505 = vcmp.eq.s32.totalorder %v327, %v206
      %vm506 = vcmp.eq.s32.totalorder %v327, %v207
      %vm507 = vcmp.eq.s32.totalorder %v331, %v206
      %vm508 = vcmp.eq.s32.totalorder %v331, %v207
      %vm509 = vcmp.eq.s32.totalorder %v335, %v206
      %vm510 = vcmp.eq.s32.totalorder %v335, %v207
      %vm511 = vcmp.eq.s32.totalorder %v339, %v206
      %vm512 = vcmp.eq.s32.totalorder %v339, %v207
      %vm513 = vcmp.eq.s32.totalorder %v343, %v206
      %vm514 = vcmp.eq.s32.totalorder %v343, %v207
      %vm515 = vcmp.eq.s32.totalorder %v347, %v206
      %vm516 = vcmp.eq.s32.totalorder %v347, %v207
      %vm517 = vcmp.eq.s32.totalorder %v354, %v206
      %vm518 = vcmp.eq.s32.totalorder %v354, %v207
      %vm519 = vcmp.eq.s32.totalorder %v358, %v206
      %vm520 = vcmp.eq.s32.totalorder %v358, %v207
      %vm521 = vcmp.eq.s32.totalorder %v362, %v206
      %vm522 = vcmp.eq.s32.totalorder %v362, %v207
      %vm523 = vcmp.eq.s32.totalorder %v366, %v206
      %vm524 = vcmp.eq.s32.totalorder %v366, %v207
      %vm525 = vcmp.eq.s32.totalorder %v370, %v206
      %vm526 = vcmp.eq.s32.totalorder %v370, %v207
      %vm527 = vcmp.eq.s32.totalorder %v374, %v206
      %vm528 = vcmp.eq.s32.totalorder %v374, %v207
      %vm529 = vcmp.eq.s32.totalorder %v378, %v206
      %vm530 = vcmp.eq.s32.totalorder %v378, %v207
      %vm531 = vcmp.eq.s32.totalorder %v382, %v206
      %vm532 = vcmp.eq.s32.totalorder %v382, %v207
      %vm533 = vcmp.eq.s32.totalorder %v389, %v206
      %vm534 = vcmp.eq.s32.totalorder %v389, %v207
      %vm535 = vcmp.eq.s32.totalorder %v393, %v206
      %vm536 = vcmp.eq.s32.totalorder %v393, %v207
      %vm537 = vcmp.eq.s32.totalorder %v397, %v206
      %vm538 = vcmp.eq.s32.totalorder %v397, %v207
      %vm539 = vcmp.eq.s32.totalorder %v401, %v206
      %vm540 = vcmp.eq.s32.totalorder %v401, %v207
      %vm541 = vcmp.eq.s32.totalorder %v405, %v206
      %vm542 = vcmp.eq.s32.totalorder %v405, %v207
      %vm543 = vcmp.eq.s32.totalorder %v409, %v206
      %vm544 = vcmp.eq.s32.totalorder %v409, %v207
      %vm545 = vcmp.eq.s32.totalorder %v413, %v206
      %vm546 = vcmp.eq.s32.totalorder %v413, %v207
      %vm547 = vcmp.eq.s32.totalorder %v417, %v206
      %vm548 = vcmp.eq.s32.totalorder %v417, %v207
      %vm549 = vcmp.eq.s32.totalorder %v424, %v206
      %vm550 = vcmp.eq.s32.totalorder %v424, %v207
      %vm551 = vcmp.eq.s32.totalorder %v428, %v206
      %vm552 = vcmp.eq.s32.totalorder %v428, %v207
      %vm553 = vcmp.eq.s32.totalorder %v432, %v206
      %vm554 = vcmp.eq.s32.totalorder %v432, %v207
      %vm555 = vcmp.eq.s32.totalorder %v436, %v206
      %vm556 = vcmp.eq.s32.totalorder %v436, %v207
      %vm557 = vcmp.eq.s32.totalorder %v440, %v206
      %vm558 = vcmp.eq.s32.totalorder %v440, %v207
      %vm559 = vcmp.eq.s32.totalorder %v444, %v206
      %vm560 = vcmp.eq.s32.totalorder %v444, %v207
      %vm561 = vcmp.eq.s32.totalorder %v448, %v206
      %vm562 = vcmp.eq.s32.totalorder %v448, %v207
      %vm563 = vcmp.eq.s32.totalorder %v452, %v206
      %vm564 = vcmp.eq.s32.totalorder %v452, %v207
      %v566 = vlaneseq
      %v567 = vshrl.u32 %v566, 7
      %v568 = vsub.s32 0, %v567
      %v569 = vrot.slane %v203, %v568
      %v570 = vlaneseq
      %v571 = vshrl.u32 %v570, 7
      %v572 = vsub.s32 4, %v571
      %v573 = vrot.slane %v203, %v572
      %v576 = vlaneseq
      %v577 = vshrl.u32 %v576, 7
      %v578 = vsub.s32 0, %v577
      %v579 = vrot.slane %v569, %v578
      %v580 = vlaneseq
      %v581 = vshrl.u32 %v580, 7
      %v582 = vsub.s32 0, %v581
      %v583 = vrot.slane %v573, %v582
      %v584 = vsel %vm453, %v579, 0.0
      %v585 = vsel %vm454, %v583, 0.0
      %v586 = vsel %vm455, %v579, 0.0
      %v587 = vsel %vm456, %v583, 0.0
      %v588 = vsel %vm457, %v579, 0.0
      %v589 = vsel %vm458, %v583, 0.0
      %v590 = vsel %vm459, %v579, 0.0
      %v591 = vsel %vm460, %v583, 0.0
      %v592 = vsel %vm461, %v579, 0.0
      %v593 = vsel %vm462, %v583, 0.0
      %v594 = vsel %vm463, %v579, 0.0
      %v595 = vsel %vm464, %v583, 0.0
      %v596 = vsel %vm465, %v579, 0.0
      %v597 = vsel %vm466, %v583, 0.0
      %v598 = vsel %vm467, %v579, 0.0
      %v599 = vsel %vm468, %v583, 0.0
      %v600 = vsel %vm469, %v579, 0.0
      %v601 = vsel %vm470, %v583, 0.0
      %v602 = vsel %vm471, %v579, 0.0
      %v603 = vsel %vm472, %v583, 0.0
      %v604 = vsel %vm473, %v579, 0.0
      %v605 = vsel %vm474, %v583, 0.0
      %v606 = vsel %vm475, %v579, 0.0
      %v607 = vsel %vm476, %v583, 0.0
      %v608 = vsel %vm477, %v579, 0.0
      %v609 = vsel %vm478, %v583, 0.0
      %v610 = vsel %vm479, %v579, 0.0
      %v611 = vsel %vm480, %v583, 0.0
      %v612 = vsel %vm481, %v579, 0.0
      %v613 = vsel %vm482, %v583, 0.0
      %v614 = vsel %vm483, %v579, 0.0
      %v615 = vsel %vm484, %v583, 0.0
      %v616 = vsel %vm485, %v579, 0.0
      %v617 = vsel %vm486, %v583, 0.0
      %v618 = vsel %vm487, %v579, 0.0
      %v619 = vsel %vm488, %v583, 0.0
      %v620 = vsel %vm489, %v579, 0.0
      %v621 = vsel %vm490, %v583, 0.0
      %v622 = vsel %vm491, %v579, 0.0
      %v623 = vsel %vm492, %v583, 0.0
      %v624 = vsel %vm493, %v579, 0.0
      %v625 = vsel %vm494, %v583, 0.0
      %v626 = vsel %vm495, %v579, 0.0
      %v627 = vsel %vm496, %v583, 0.0
      %v628 = vsel %vm497, %v579, 0.0
      %v629 = vsel %vm498, %v583, 0.0
      %v630 = vsel %vm499, %v579, 0.0
      %v631 = vsel %vm500, %v583, 0.0
      %v632 = vsel %vm501, %v579, 0.0
      %v633 = vsel %vm502, %v583, 0.0
      %v634 = vsel %vm503, %v579, 0.0
      %v635 = vsel %vm504, %v583, 0.0
      %v636 = vsel %vm505, %v579, 0.0
      %v637 = vsel %vm506, %v583, 0.0
      %v638 = vsel %vm507, %v579, 0.0
      %v639 = vsel %vm508, %v583, 0.0
      %v640 = vsel %vm509, %v579, 0.0
      %v641 = vsel %vm510, %v583, 0.0
      %v642 = vsel %vm511, %v579, 0.0
      %v643 = vsel %vm512, %v583, 0.0
      %v644 = vsel %vm513, %v579, 0.0
      %v645 = vsel %vm514, %v583, 0.0
      %v646 = vsel %vm515, %v579, 0.0
      %v647 = vsel %vm516, %v583, 0.0
      %v648 = vsel %vm517, %v579, 0.0
      %v649 = vsel %vm518, %v583, 0.0
      %v650 = vsel %vm519, %v579, 0.0
      %v651 = vsel %vm520, %v583, 0.0
      %v652 = vsel %vm521, %v579, 0.0
      %v653 = vsel %vm522, %v583, 0.0
      %v654 = vsel %vm523, %v579, 0.0
      %v655 = vsel %vm524, %v583, 0.0
      %v656 = vsel %vm525, %v579, 0.0
      %v657 = vsel %vm526, %v583, 0.0
      %v658 = vsel %vm527, %v579, 0.0
      %v659 = vsel %vm528, %v583, 0.0
      %v660 = vsel %vm529, %v579, 0.0
      %v661 = vsel %vm530, %v583, 0.0
      %v662 = vsel %vm531, %v579, 0.0
      %v663 = vsel %vm532, %v583, 0.0
      %v664 = vsel %vm533, %v579, 0.0
      %v665 = vsel %vm534, %v583, 0.0
      %v666 = vsel %vm535, %v579, 0.0
      %v667 = vsel %vm536, %v583, 0.0
      %v668 = vsel %vm537, %v579, 0.0
      %v669 = vsel %vm538, %v583, 0.0
      %v670 = vsel %vm539, %v579, 0.0
      %v671 = vsel %vm540, %v583, 0.0
      %v672 = vsel %vm541, %v579, 0.0
      %v673 = vsel %vm542, %v583, 0.0
      %v674 = vsel %vm543, %v579, 0.0
      %v675 = vsel %vm544, %v583, 0.0
      %v676 = vsel %vm545, %v579, 0.0
      %v677 = vsel %vm546, %v583, 0.0
      %v678 = vsel %vm547, %v579, 0.0
      %v679 = vsel %vm548, %v583, 0.0
      %v680 = vsel %vm549, %v579, 0.0
      %v681 = vsel %vm550, %v583, 0.0
      %v682 = vsel %vm551, %v579, 0.0
      %v683 = vsel %vm552, %v583, 0.0
      %v684 = vsel %vm553, %v579, 0.0
      %v685 = vsel %vm554, %v583, 0.0
      %v686 = vsel %vm555, %v579, 0.0
      %v687 = vsel %vm556, %v583, 0.0
      %v688 = vsel %vm557, %v579, 0.0
      %v689 = vsel %vm558, %v583, 0.0
      %v690 = vsel %vm559, %v579, 0.0
      %v691 = vsel %vm560, %v583, 0.0
      %v692 = vsel %vm561, %v579, 0.0
      %v693 = vsel %vm562, %v583, 0.0
      %v694 = vsel %vm563, %v579, 0.0
      %v695 = vsel %vm564, %v583, 0.0
      %v696 = vadd.f32 %v584, %v585
      %697 = vadd.xlane.f32.xlu0 %v696
      %v698 = vpop.xlane.xlu0 %697
      %v699 = vadd.f32 %v586, %v587
      %700 = vadd.xlane.f32.xlu0 %v699
      %v701 = vpop.xlane.xlu0 %700
      %v702 = vadd.f32 %v588, %v589
      %703 = vadd.xlane.f32.xlu0 %v702
      %v704 = vpop.xlane.xlu0 %703
      %v705 = vadd.f32 %v590, %v591
      %706 = vadd.xlane.f32.xlu0 %v705
      %v707 = vpop.xlane.xlu0 %706
      %v708 = vadd.f32 %v592, %v593
      %709 = vadd.xlane.f32.xlu0 %v708
      %v710 = vpop.xlane.xlu0 %709
      %v711 = vadd.f32 %v594, %v595
      %712 = vadd.xlane.f32.xlu0 %v711
      %v713 = vpop.xlane.xlu0 %712
      %v714 = vadd.f32 %v596, %v597
      %715 = vadd.xlane.f32.xlu0 %v714
      %v716 = vpop.xlane.xlu0 %715
      %v717 = vadd.f32 %v598, %v599
      %718 = vadd.xlane.f32.xlu0 %v717
      %v719 = vpop.xlane.xlu0 %718
      %v720 = vadd.f32 %v600, %v601
      %721 = vadd.xlane.f32.xlu0 %v720
      %v722 = vpop.xlane.xlu0 %721
      %v723 = vadd.f32 %v602, %v603
      %724 = vadd.xlane.f32.xlu0 %v723
      %v725 = vpop.xlane.xlu0 %724
      %v726 = vadd.f32 %v604, %v605
      %727 = vadd.xlane.f32.xlu0 %v726
      %v728 = vpop.xlane.xlu0 %727
      %v729 = vadd.f32 %v606, %v607
      %730 = vadd.xlane.f32.xlu0 %v729
      %v731 = vpop.xlane.xlu0 %730
      %v732 = vadd.f32 %v608, %v609
      %733 = vadd.xlane.f32.xlu0 %v732
      %v734 = vpop.xlane.xlu0 %733
      %v735 = vadd.f32 %v610, %v611
      %736 = vadd.xlane.f32.xlu0 %v735
      %v737 = vpop.xlane.xlu0 %736
      %v738 = vadd.f32 %v612, %v613
      %739 = vadd.xlane.f32.xlu0 %v738
      %v740 = vpop.xlane.xlu0 %739
      %v741 = vadd.f32 %v614, %v615
      %742 = vadd.xlane.f32.xlu0 %v741
      %v743 = vpop.xlane.xlu0 %742
      %v744 = vadd.f32 %v616, %v617
      %745 = vadd.xlane.f32.xlu0 %v744
      %v746 = vpop.xlane.xlu0 %745
      %v747 = vadd.f32 %v618, %v619
      %748 = vadd.xlane.f32.xlu0 %v747
      %v749 = vpop.xlane.xlu0 %748
      %v750 = vadd.f32 %v620, %v621
      %751 = vadd.xlane.f32.xlu0 %v750
      %v752 = vpop.xlane.xlu0 %751
      %v753 = vadd.f32 %v622, %v623
      %754 = vadd.xlane.f32.xlu0 %v753
      %v755 = vpop.xlane.xlu0 %754
      %v756 = vadd.f32 %v624, %v625
      %757 = vadd.xlane.f32.xlu0 %v756
      %v758 = vpop.xlane.xlu0 %757
      %v759 = vadd.f32 %v626, %v627
      %760 = vadd.xlane.f32.xlu0 %v759
      %v761 = vpop.xlane.xlu0 %760
      %v762 = vadd.f32 %v628, %v629
      %763 = vadd.xlane.f32.xlu0 %v762
      %v764 = vpop.xlane.xlu0 %763
      %v765 = vadd.f32 %v630, %v631
      %766 = vadd.xlane.f32.xlu0 %v765
      %v767 = vpop.xlane.xlu0 %766
      %v768 = vadd.f32 %v632, %v633
      %769 = vadd.xlane.f32.xlu0 %v768
      %v770 = vpop.xlane.xlu0 %769
      %v771 = vadd.f32 %v634, %v635
      %772 = vadd.xlane.f32.xlu0 %v771
      %v773 = vpop.xlane.xlu0 %772
      %v774 = vadd.f32 %v636, %v637
      %775 = vadd.xlane.f32.xlu0 %v774
      %v776 = vpop.xlane.xlu0 %775
      %v777 = vadd.f32 %v638, %v639
      %778 = vadd.xlane.f32.xlu0 %v777
      %v779 = vpop.xlane.xlu0 %778
      %v780 = vadd.f32 %v640, %v641
      %781 = vadd.xlane.f32.xlu0 %v780
      %v782 = vpop.xlane.xlu0 %781
      %v783 = vadd.f32 %v642, %v643
      %784 = vadd.xlane.f32.xlu0 %v783
      %v785 = vpop.xlane.xlu0 %784
      %v786 = vadd.f32 %v644, %v645
      %787 = vadd.xlane.f32.xlu0 %v786
      %v788 = vpop.xlane.xlu0 %787
      %v789 = vadd.f32 %v646, %v647
      %790 = vadd.xlane.f32.xlu0 %v789
      %v791 = vpop.xlane.xlu0 %790
      %v792 = vadd.f32 %v648, %v649
      %793 = vadd.xlane.f32.xlu0 %v792
      %v794 = vpop.xlane.xlu0 %793
      %v795 = vadd.f32 %v650, %v651
      %796 = vadd.xlane.f32.xlu0 %v795
      %v797 = vpop.xlane.xlu0 %796
      %v798 = vadd.f32 %v652, %v653
      %799 = vadd.xlane.f32.xlu0 %v798
      %v800 = vpop.xlane.xlu0 %799
      %v801 = vadd.f32 %v654, %v655
      %802 = vadd.xlane.f32.xlu0 %v801
      %v803 = vpop.xlane.xlu0 %802
      %v804 = vadd.f32 %v656, %v657
      %805 = vadd.xlane.f32.xlu0 %v804
      %v806 = vpop.xlane.xlu0 %805
      %v807 = vadd.f32 %v658, %v659
      %808 = vadd.xlane.f32.xlu0 %v807
      %v809 = vpop.xlane.xlu0 %808
      %v810 = vadd.f32 %v660, %v661
      %811 = vadd.xlane.f32.xlu0 %v810
      %v812 = vpop.xlane.xlu0 %811
      %v813 = vadd.f32 %v662, %v663
      %814 = vadd.xlane.f32.xlu0 %v813
      %v815 = vpop.xlane.xlu0 %814
      %v816 = vadd.f32 %v664, %v665
      %817 = vadd.xlane.f32.xlu0 %v816
      %v818 = vpop.xlane.xlu0 %817
      %v819 = vadd.f32 %v666, %v667
      %820 = vadd.xlane.f32.xlu0 %v819
      %v821 = vpop.xlane.xlu0 %820
      %v822 = vadd.f32 %v668, %v669
      %823 = vadd.xlane.f32.xlu0 %v822
      %v824 = vpop.xlane.xlu0 %823
      %v825 = vadd.f32 %v670, %v671
      %826 = vadd.xlane.f32.xlu0 %v825
      %v827 = vpop.xlane.xlu0 %826
      %v828 = vadd.f32 %v672, %v673
      %829 = vadd.xlane.f32.xlu0 %v828
      %v830 = vpop.xlane.xlu0 %829
      %v831 = vadd.f32 %v674, %v675
      %832 = vadd.xlane.f32.xlu0 %v831
      %v833 = vpop.xlane.xlu0 %832
      %v834 = vadd.f32 %v676, %v677
      %835 = vadd.xlane.f32.xlu0 %v834
      %v836 = vpop.xlane.xlu0 %835
      %v837 = vadd.f32 %v678, %v679
      %838 = vadd.xlane.f32.xlu0 %v837
      %v839 = vpop.xlane.xlu0 %838
      %v840 = vadd.f32 %v680, %v681
      %841 = vadd.xlane.f32.xlu0 %v840
      %v842 = vpop.xlane.xlu0 %841
      %v843 = vadd.f32 %v682, %v683
      %844 = vadd.xlane.f32.xlu0 %v843
      %v845 = vpop.xlane.xlu0 %844
      %v846 = vadd.f32 %v684, %v685
      %847 = vadd.xlane.f32.xlu0 %v846
      %v848 = vpop.xlane.xlu0 %847
      %v849 = vadd.f32 %v686, %v687
      %850 = vadd.xlane.f32.xlu0 %v849
      %v851 = vpop.xlane.xlu0 %850
      %v852 = vadd.f32 %v688, %v689
      %853 = vadd.xlane.f32.xlu0 %v852
      %v854 = vpop.xlane.xlu0 %853
      %v855 = vadd.f32 %v690, %v691
      %856 = vadd.xlane.f32.xlu0 %v855
      %v857 = vpop.xlane.xlu0 %856
      %v858 = vadd.f32 %v692, %v693
      %859 = vadd.xlane.f32.xlu0 %v858
      %v860 = vpop.xlane.xlu0 %859
      %v861 = vadd.f32 %v694, %v695
      %862 = vadd.xlane.f32.xlu0 %v861
      %v863 = vpop.xlane.xlu0 %862
      %v864 = vlaneseq
      %v865 = vshrl.u32 %v864, 7
      %v866 = vsub.s32 1, %v865
      %v867 = vrot.slane %v203, %v866
      %v868 = vlaneseq
      %v869 = vshrl.u32 %v868, 7
      %v870 = vsub.s32 5, %v869
      %v871 = vrot.slane %v203, %v870
      %v874 = vlaneseq
      %v875 = vshrl.u32 %v874, 7
      %v876 = vsub.s32 1, %v875
      %v877 = vrot.slane %v867, %v876
      %v878 = vlaneseq
      %v879 = vshrl.u32 %v878, 7
      %v880 = vsub.s32 1, %v879
      %v881 = vrot.slane %v871, %v880
      %v882 = vsel %vm453, %v877, 0.0
      %v883 = vsel %vm454, %v881, 0.0
      %v884 = vsel %vm455, %v877, 0.0
      %v885 = vsel %vm456, %v881, 0.0
      %v886 = vsel %vm457, %v877, 0.0
      %v887 = vsel %vm458, %v881, 0.0
      %v888 = vsel %vm459, %v877, 0.0
      %v889 = vsel %vm460, %v881, 0.0
      %v890 = vsel %vm461, %v877, 0.0
      %v891 = vsel %vm462, %v881, 0.0
      %v892 = vsel %vm463, %v877, 0.0
      %v893 = vsel %vm464, %v881, 0.0
      %v894 = vsel %vm465, %v877, 0.0
      %v895 = vsel %vm466, %v881, 0.0
      %v896 = vsel %vm467, %v877, 0.0
      %v897 = vsel %vm468, %v881, 0.0
      %v898 = vsel %vm469, %v877, 0.0
      %v899 = vsel %vm470, %v881, 0.0
      %v900 = vsel %vm471, %v877, 0.0
      %v901 = vsel %vm472, %v881, 0.0
      %v902 = vsel %vm473, %v877, 0.0
      %v903 = vsel %vm474, %v881, 0.0
      %v904 = vsel %vm475, %v877, 0.0
      %v905 = vsel %vm476, %v881, 0.0
      %v906 = vsel %vm477, %v877, 0.0
      %v907 = vsel %vm478, %v881, 0.0
      %v908 = vsel %vm479, %v877, 0.0
      %v909 = vsel %vm480, %v881, 0.0
      %v910 = vsel %vm481, %v877, 0.0
      %v911 = vsel %vm482, %v881, 0.0
      %v912 = vsel %vm483, %v877, 0.0
      %v913 = vsel %vm484, %v881, 0.0
      %v914 = vsel %vm485, %v877, 0.0
      %v915 = vsel %vm486, %v881, 0.0
      %v916 = vsel %vm487, %v877, 0.0
      %v917 = vsel %vm488, %v881, 0.0
      %v918 = vsel %vm489, %v877, 0.0
      %v919 = vsel %vm490, %v881, 0.0
      %v920 = vsel %vm491, %v877, 0.0
      %v921 = vsel %vm492, %v881, 0.0
      %v922 = vsel %vm493, %v877, 0.0
      %v923 = vsel %vm494, %v881, 0.0
      %v924 = vsel %vm495, %v877, 0.0
      %v925 = vsel %vm496, %v881, 0.0
      %v926 = vsel %vm497, %v877, 0.0
      %v927 = vsel %vm498, %v881, 0.0
      %v928 = vsel %vm499, %v877, 0.0
      %v929 = vsel %vm500, %v881, 0.0
      %v930 = vsel %vm501, %v877, 0.0
      %v931 = vsel %vm502, %v881, 0.0
      %v932 = vsel %vm503, %v877, 0.0
      %v933 = vsel %vm504, %v881, 0.0
      %v934 = vsel %vm505, %v877, 0.0
      %v935 = vsel %vm506, %v881, 0.0
      %v936 = vsel %vm507, %v877, 0.0
      %v937 = vsel %vm508, %v881, 0.0
      %v938 = vsel %vm509, %v877, 0.0
      %v939 = vsel %vm510, %v881, 0.0
      %v940 = vsel %vm511, %v877, 0.0
      %v941 = vsel %vm512, %v881, 0.0
      %v942 = vsel %vm513, %v877, 0.0
      %v943 = vsel %vm514, %v881, 0.0
      %v944 = vsel %vm515, %v877, 0.0
      %v945 = vsel %vm516, %v881, 0.0
      %v946 = vsel %vm517, %v877, 0.0
      %v947 = vsel %vm518, %v881, 0.0
      %v948 = vsel %vm519, %v877, 0.0
      %v949 = vsel %vm520, %v881, 0.0
      %v950 = vsel %vm521, %v877, 0.0
      %v951 = vsel %vm522, %v881, 0.0
      %v952 = vsel %vm523, %v877, 0.0
      %v953 = vsel %vm524, %v881, 0.0
      %v954 = vsel %vm525, %v877, 0.0
      %v955 = vsel %vm526, %v881, 0.0
      %v956 = vsel %vm527, %v877, 0.0
      %v957 = vsel %vm528, %v881, 0.0
      %v958 = vsel %vm529, %v877, 0.0
      %v959 = vsel %vm530, %v881, 0.0
      %v960 = vsel %vm531, %v877, 0.0
      %v961 = vsel %vm532, %v881, 0.0
      %v962 = vsel %vm533, %v877, 0.0
      %v963 = vsel %vm534, %v881, 0.0
      %v964 = vsel %vm535, %v877, 0.0
      %v965 = vsel %vm536, %v881, 0.0
      %v966 = vsel %vm537, %v877, 0.0
      %v967 = vsel %vm538, %v881, 0.0
      %v968 = vsel %vm539, %v877, 0.0
      %v969 = vsel %vm540, %v881, 0.0
      %v970 = vsel %vm541, %v877, 0.0
      %v971 = vsel %vm542, %v881, 0.0
      %v972 = vsel %vm543, %v877, 0.0
      %v973 = vsel %vm544, %v881, 0.0
      %v974 = vsel %vm545, %v877, 0.0
      %v975 = vsel %vm546, %v881, 0.0
      %v976 = vsel %vm547, %v877, 0.0
      %v977 = vsel %vm548, %v881, 0.0
      %v978 = vsel %vm549, %v877, 0.0
      %v979 = vsel %vm550, %v881, 0.0
      %v980 = vsel %vm551, %v877, 0.0
      %v981 = vsel %vm552, %v881, 0.0
      %v982 = vsel %vm553, %v877, 0.0
      %v983 = vsel %vm554, %v881, 0.0
      %v984 = vsel %vm555, %v877, 0.0
      %v985 = vsel %vm556, %v881, 0.0
      %v986 = vsel %vm557, %v877, 0.0
      %v987 = vsel %vm558, %v881, 0.0
      %v988 = vsel %vm559, %v877, 0.0
      %v989 = vsel %vm560, %v881, 0.0
      %v990 = vsel %vm561, %v877, 0.0
      %v991 = vsel %vm562, %v881, 0.0
      %v992 = vsel %vm563, %v877, 0.0
      %v993 = vsel %vm564, %v881, 0.0
      %v994 = vadd.f32 %v882, %v883
      %995 = vadd.xlane.f32.xlu0 %v994
      %v996 = vpop.xlane.xlu0 %995
      %v997 = vadd.f32 %v884, %v885
      %998 = vadd.xlane.f32.xlu0 %v997
      %v999 = vpop.xlane.xlu0 %998
      %v1000 = vadd.f32 %v886, %v887
      %1001 = vadd.xlane.f32.xlu0 %v1000
      %v1002 = vpop.xlane.xlu0 %1001
      %v1003 = vadd.f32 %v888, %v889
      %1004 = vadd.xlane.f32.xlu0 %v1003
      %v1005 = vpop.xlane.xlu0 %1004
      %v1006 = vadd.f32 %v890, %v891
      %1007 = vadd.xlane.f32.xlu0 %v1006
      %v1008 = vpop.xlane.xlu0 %1007
      %v1009 = vadd.f32 %v892, %v893
      %1010 = vadd.xlane.f32.xlu0 %v1009
      %v1011 = vpop.xlane.xlu0 %1010
      %v1012 = vadd.f32 %v894, %v895
      %1013 = vadd.xlane.f32.xlu0 %v1012
      %v1014 = vpop.xlane.xlu0 %1013
      %v1015 = vadd.f32 %v896, %v897
      %1016 = vadd.xlane.f32.xlu0 %v1015
      %v1017 = vpop.xlane.xlu0 %1016
      %v1018 = vadd.f32 %v898, %v899
      %1019 = vadd.xlane.f32.xlu0 %v1018
      %v1020 = vpop.xlane.xlu0 %1019
      %v1021 = vadd.f32 %v900, %v901
      %1022 = vadd.xlane.f32.xlu0 %v1021
      %v1023 = vpop.xlane.xlu0 %1022
      %v1024 = vadd.f32 %v902, %v903
      %1025 = vadd.xlane.f32.xlu0 %v1024
      %v1026 = vpop.xlane.xlu0 %1025
      %v1027 = vadd.f32 %v904, %v905
      %1028 = vadd.xlane.f32.xlu0 %v1027
      %v1029 = vpop.xlane.xlu0 %1028
      %v1030 = vadd.f32 %v906, %v907
      %1031 = vadd.xlane.f32.xlu0 %v1030
      %v1032 = vpop.xlane.xlu0 %1031
      %v1033 = vadd.f32 %v908, %v909
      %1034 = vadd.xlane.f32.xlu0 %v1033
      %v1035 = vpop.xlane.xlu0 %1034
      %v1036 = vadd.f32 %v910, %v911
      %1037 = vadd.xlane.f32.xlu0 %v1036
      %v1038 = vpop.xlane.xlu0 %1037
      %v1039 = vadd.f32 %v912, %v913
      %1040 = vadd.xlane.f32.xlu0 %v1039
      %v1041 = vpop.xlane.xlu0 %1040
      %v1042 = vadd.f32 %v914, %v915
      %1043 = vadd.xlane.f32.xlu0 %v1042
      %v1044 = vpop.xlane.xlu0 %1043
      %v1045 = vadd.f32 %v916, %v917
      %1046 = vadd.xlane.f32.xlu0 %v1045
      %v1047 = vpop.xlane.xlu0 %1046
      %v1048 = vadd.f32 %v918, %v919
      %1049 = vadd.xlane.f32.xlu0 %v1048
      %v1050 = vpop.xlane.xlu0 %1049
      %v1051 = vadd.f32 %v920, %v921
      %1052 = vadd.xlane.f32.xlu0 %v1051
      %v1053 = vpop.xlane.xlu0 %1052
      %v1054 = vadd.f32 %v922, %v923
      %1055 = vadd.xlane.f32.xlu0 %v1054
      %v1056 = vpop.xlane.xlu0 %1055
      %v1057 = vadd.f32 %v924, %v925
      %1058 = vadd.xlane.f32.xlu0 %v1057
      %v1059 = vpop.xlane.xlu0 %1058
      %v1060 = vadd.f32 %v926, %v927
      %1061 = vadd.xlane.f32.xlu0 %v1060
      %v1062 = vpop.xlane.xlu0 %1061
      %v1063 = vadd.f32 %v928, %v929
      %1064 = vadd.xlane.f32.xlu0 %v1063
      %v1065 = vpop.xlane.xlu0 %1064
      %v1066 = vadd.f32 %v930, %v931
      %1067 = vadd.xlane.f32.xlu0 %v1066
      %v1068 = vpop.xlane.xlu0 %1067
      %v1069 = vadd.f32 %v932, %v933
      %1070 = vadd.xlane.f32.xlu0 %v1069
      %v1071 = vpop.xlane.xlu0 %1070
      %v1072 = vadd.f32 %v934, %v935
      %1073 = vadd.xlane.f32.xlu0 %v1072
      %v1074 = vpop.xlane.xlu0 %1073
      %v1075 = vadd.f32 %v936, %v937
      %1076 = vadd.xlane.f32.xlu0 %v1075
      %v1077 = vpop.xlane.xlu0 %1076
      %v1078 = vadd.f32 %v938, %v939
      %1079 = vadd.xlane.f32.xlu0 %v1078
      %v1080 = vpop.xlane.xlu0 %1079
      %v1081 = vadd.f32 %v940, %v941
      %1082 = vadd.xlane.f32.xlu0 %v1081
      %v1083 = vpop.xlane.xlu0 %1082
      %v1084 = vadd.f32 %v942, %v943
      %1085 = vadd.xlane.f32.xlu0 %v1084
      %v1086 = vpop.xlane.xlu0 %1085
      %v1087 = vadd.f32 %v944, %v945
      %1088 = vadd.xlane.f32.xlu0 %v1087
      %v1089 = vpop.xlane.xlu0 %1088
      %v1090 = vadd.f32 %v946, %v947
      %1091 = vadd.xlane.f32.xlu0 %v1090
      %v1092 = vpop.xlane.xlu0 %1091
      %v1093 = vadd.f32 %v948, %v949
      %1094 = vadd.xlane.f32.xlu0 %v1093
      %v1095 = vpop.xlane.xlu0 %1094
      %v1096 = vadd.f32 %v950, %v951
      %1097 = vadd.xlane.f32.xlu0 %v1096
      %v1098 = vpop.xlane.xlu0 %1097
      %v1099 = vadd.f32 %v952, %v953
      %1100 = vadd.xlane.f32.xlu0 %v1099
      %v1101 = vpop.xlane.xlu0 %1100
      %v1102 = vadd.f32 %v954, %v955
      %1103 = vadd.xlane.f32.xlu0 %v1102
      %v1104 = vpop.xlane.xlu0 %1103
      %v1105 = vadd.f32 %v956, %v957
      %1106 = vadd.xlane.f32.xlu0 %v1105
      %v1107 = vpop.xlane.xlu0 %1106
      %v1108 = vadd.f32 %v958, %v959
      %1109 = vadd.xlane.f32.xlu0 %v1108
      %v1110 = vpop.xlane.xlu0 %1109
      %v1111 = vadd.f32 %v960, %v961
      %1112 = vadd.xlane.f32.xlu0 %v1111
      %v1113 = vpop.xlane.xlu0 %1112
      %v1114 = vadd.f32 %v962, %v963
      %1115 = vadd.xlane.f32.xlu0 %v1114
      %v1116 = vpop.xlane.xlu0 %1115
      %v1117 = vadd.f32 %v964, %v965
      %1118 = vadd.xlane.f32.xlu0 %v1117
      %v1119 = vpop.xlane.xlu0 %1118
      %v1120 = vadd.f32 %v966, %v967
      %1121 = vadd.xlane.f32.xlu0 %v1120
      %v1122 = vpop.xlane.xlu0 %1121
      %v1123 = vadd.f32 %v968, %v969
      %1124 = vadd.xlane.f32.xlu0 %v1123
      %v1125 = vpop.xlane.xlu0 %1124
      %v1126 = vadd.f32 %v970, %v971
      %1127 = vadd.xlane.f32.xlu0 %v1126
      %v1128 = vpop.xlane.xlu0 %1127
      %v1129 = vadd.f32 %v972, %v973
      %1130 = vadd.xlane.f32.xlu0 %v1129
      %v1131 = vpop.xlane.xlu0 %1130
      %v1132 = vadd.f32 %v974, %v975
      %1133 = vadd.xlane.f32.xlu0 %v1132
      %v1134 = vpop.xlane.xlu0 %1133
      %v1135 = vadd.f32 %v976, %v977
      %1136 = vadd.xlane.f32.xlu0 %v1135
      %v1137 = vpop.xlane.xlu0 %1136
      %v1138 = vadd.f32 %v978, %v979
      %1139 = vadd.xlane.f32.xlu0 %v1138
      %v1140 = vpop.xlane.xlu0 %1139
      %v1141 = vadd.f32 %v980, %v981
      %1142 = vadd.xlane.f32.xlu0 %v1141
      %v1143 = vpop.xlane.xlu0 %1142
      %v1144 = vadd.f32 %v982, %v983
      %1145 = vadd.xlane.f32.xlu0 %v1144
      %v1146 = vpop.xlane.xlu0 %1145
      %v1147 = vadd.f32 %v984, %v985
      %1148 = vadd.xlane.f32.xlu0 %v1147
      %v1149 = vpop.xlane.xlu0 %1148
      %v1150 = vadd.f32 %v986, %v987
      %1151 = vadd.xlane.f32.xlu0 %v1150
      %v1152 = vpop.xlane.xlu0 %1151
      %v1153 = vadd.f32 %v988, %v989
      %1154 = vadd.xlane.f32.xlu0 %v1153
      %v1155 = vpop.xlane.xlu0 %1154
      %v1156 = vadd.f32 %v990, %v991
      %1157 = vadd.xlane.f32.xlu0 %v1156
      %v1158 = vpop.xlane.xlu0 %1157
      %v1159 = vadd.f32 %v992, %v993
      %1160 = vadd.xlane.f32.xlu0 %v1159
      %v1161 = vpop.xlane.xlu0 %1160
      %v1162 = vlaneseq
      %v1163 = vshrl.u32 %v1162, 7
      %v1164 = vsub.s32 2, %v1163
      %v1165 = vrot.slane %v203, %v1164
      %v1166 = vlaneseq
      %v1167 = vshrl.u32 %v1166, 7
      %v1168 = vsub.s32 6, %v1167
      %v1169 = vrot.slane %v203, %v1168
      %v1172 = vlaneseq
      %v1173 = vshrl.u32 %v1172, 7
      %v1174 = vsub.s32 2, %v1173
      %v1175 = vrot.slane %v1165, %v1174
      %v1176 = vlaneseq
      %v1177 = vshrl.u32 %v1176, 7
      %v1178 = vsub.s32 2, %v1177
      %v1179 = vrot.slane %v1169, %v1178
      %v1180 = vsel %vm453, %v1175, 0.0
      %v1181 = vsel %vm454, %v1179, 0.0
      %v1182 = vsel %vm455, %v1175, 0.0
      %v1183 = vsel %vm456, %v1179, 0.0
      %v1184 = vsel %vm457, %v1175, 0.0
      %v1185 = vsel %vm458, %v1179, 0.0
      %v1186 = vsel %vm459, %v1175, 0.0
      %v1187 = vsel %vm460, %v1179, 0.0
      %v1188 = vsel %vm461, %v1175, 0.0
      %v1189 = vsel %vm462, %v1179, 0.0
      %v1190 = vsel %vm463, %v1175, 0.0
      %v1191 = vsel %vm464, %v1179, 0.0
      %v1192 = vsel %vm465, %v1175, 0.0
      %v1193 = vsel %vm466, %v1179, 0.0
      %v1194 = vsel %vm467, %v1175, 0.0
      %v1195 = vsel %vm468, %v1179, 0.0
      %v1196 = vsel %vm469, %v1175, 0.0
      %v1197 = vsel %vm470, %v1179, 0.0
      %v1198 = vsel %vm471, %v1175, 0.0
      %v1199 = vsel %vm472, %v1179, 0.0
      %v1200 = vsel %vm473, %v1175, 0.0
      %v1201 = vsel %vm474, %v1179, 0.0
      %v1202 = vsel %vm475, %v1175, 0.0
      %v1203 = vsel %vm476, %v1179, 0.0
      %v1204 = vsel %vm477, %v1175, 0.0
      %v1205 = vsel %vm478, %v1179, 0.0
      %v1206 = vsel %vm479, %v1175, 0.0
      %v1207 = vsel %vm480, %v1179, 0.0
      %v1208 = vsel %vm481, %v1175, 0.0
      %v1209 = vsel %vm482, %v1179, 0.0
      %v1210 = vsel %vm483, %v1175, 0.0
      %v1211 = vsel %vm484, %v1179, 0.0
      %v1212 = vsel %vm485, %v1175, 0.0
      %v1213 = vsel %vm486, %v1179, 0.0
      %v1214 = vsel %vm487, %v1175, 0.0
      %v1215 = vsel %vm488, %v1179, 0.0
      %v1216 = vsel %vm489, %v1175, 0.0
      %v1217 = vsel %vm490, %v1179, 0.0
      %v1218 = vsel %vm491, %v1175, 0.0
      %v1219 = vsel %vm492, %v1179, 0.0
      %v1220 = vsel %vm493, %v1175, 0.0
      %v1221 = vsel %vm494, %v1179, 0.0
      %v1222 = vsel %vm495, %v1175, 0.0
      %v1223 = vsel %vm496, %v1179, 0.0
      %v1224 = vsel %vm497, %v1175, 0.0
      %v1225 = vsel %vm498, %v1179, 0.0
      %v1226 = vsel %vm499, %v1175, 0.0
      %v1227 = vsel %vm500, %v1179, 0.0
      %v1228 = vsel %vm501, %v1175, 0.0
      %v1229 = vsel %vm502, %v1179, 0.0
      %v1230 = vsel %vm503, %v1175, 0.0
      %v1231 = vsel %vm504, %v1179, 0.0
      %v1232 = vsel %vm505, %v1175, 0.0
      %v1233 = vsel %vm506, %v1179, 0.0
      %v1234 = vsel %vm507, %v1175, 0.0
      %v1235 = vsel %vm508, %v1179, 0.0
      %v1236 = vsel %vm509, %v1175, 0.0
      %v1237 = vsel %vm510, %v1179, 0.0
      %v1238 = vsel %vm511, %v1175, 0.0
      %v1239 = vsel %vm512, %v1179, 0.0
      %v1240 = vsel %vm513, %v1175, 0.0
      %v1241 = vsel %vm514, %v1179, 0.0
      %v1242 = vsel %vm515, %v1175, 0.0
      %v1243 = vsel %vm516, %v1179, 0.0
      %v1244 = vsel %vm517, %v1175, 0.0
      %v1245 = vsel %vm518, %v1179, 0.0
      %v1246 = vsel %vm519, %v1175, 0.0
      %v1247 = vsel %vm520, %v1179, 0.0
      %v1248 = vsel %vm521, %v1175, 0.0
      %v1249 = vsel %vm522, %v1179, 0.0
      %v1250 = vsel %vm523, %v1175, 0.0
      %v1251 = vsel %vm524, %v1179, 0.0
      %v1252 = vsel %vm525, %v1175, 0.0
      %v1253 = vsel %vm526, %v1179, 0.0
      %v1254 = vsel %vm527, %v1175, 0.0
      %v1255 = vsel %vm528, %v1179, 0.0
      %v1256 = vsel %vm529, %v1175, 0.0
      %v1257 = vsel %vm530, %v1179, 0.0
      %v1258 = vsel %vm531, %v1175, 0.0
      %v1259 = vsel %vm532, %v1179, 0.0
      %v1260 = vsel %vm533, %v1175, 0.0
      %v1261 = vsel %vm534, %v1179, 0.0
      %v1262 = vsel %vm535, %v1175, 0.0
      %v1263 = vsel %vm536, %v1179, 0.0
      %v1264 = vsel %vm537, %v1175, 0.0
      %v1265 = vsel %vm538, %v1179, 0.0
      %v1266 = vsel %vm539, %v1175, 0.0
      %v1267 = vsel %vm540, %v1179, 0.0
      %v1268 = vsel %vm541, %v1175, 0.0
      %v1269 = vsel %vm542, %v1179, 0.0
      %v1270 = vsel %vm543, %v1175, 0.0
      %v1271 = vsel %vm544, %v1179, 0.0
      %v1272 = vsel %vm545, %v1175, 0.0
      %v1273 = vsel %vm546, %v1179, 0.0
      %v1274 = vsel %vm547, %v1175, 0.0
      %v1275 = vsel %vm548, %v1179, 0.0
      %v1276 = vsel %vm549, %v1175, 0.0
      %v1277 = vsel %vm550, %v1179, 0.0
      %v1278 = vsel %vm551, %v1175, 0.0
      %v1279 = vsel %vm552, %v1179, 0.0
      %v1280 = vsel %vm553, %v1175, 0.0
      %v1281 = vsel %vm554, %v1179, 0.0
      %v1282 = vsel %vm555, %v1175, 0.0
      %v1283 = vsel %vm556, %v1179, 0.0
      %v1284 = vsel %vm557, %v1175, 0.0
      %v1285 = vsel %vm558, %v1179, 0.0
      %v1286 = vsel %vm559, %v1175, 0.0
      %v1287 = vsel %vm560, %v1179, 0.0
      %v1288 = vsel %vm561, %v1175, 0.0
      %v1289 = vsel %vm562, %v1179, 0.0
      %v1290 = vsel %vm563, %v1175, 0.0
      %v1291 = vsel %vm564, %v1179, 0.0
      %v1292 = vadd.f32 %v1180, %v1181
      %1293 = vadd.xlane.f32.xlu0 %v1292
      %v1294 = vpop.xlane.xlu0 %1293
      %v1295 = vadd.f32 %v1182, %v1183
      %1296 = vadd.xlane.f32.xlu0 %v1295
      %v1297 = vpop.xlane.xlu0 %1296
      %v1298 = vadd.f32 %v1184, %v1185
      %1299 = vadd.xlane.f32.xlu0 %v1298
      %v1300 = vpop.xlane.xlu0 %1299
      %v1301 = vadd.f32 %v1186, %v1187
      %1302 = vadd.xlane.f32.xlu0 %v1301
      %v1303 = vpop.xlane.xlu0 %1302
      %v1304 = vadd.f32 %v1188, %v1189
      %1305 = vadd.xlane.f32.xlu0 %v1304
      %v1306 = vpop.xlane.xlu0 %1305
      %v1307 = vadd.f32 %v1190, %v1191
      %1308 = vadd.xlane.f32.xlu0 %v1307
      %v1309 = vpop.xlane.xlu0 %1308
      %v1310 = vadd.f32 %v1192, %v1193
      %1311 = vadd.xlane.f32.xlu0 %v1310
      %v1312 = vpop.xlane.xlu0 %1311
      %v1313 = vadd.f32 %v1194, %v1195
      %1314 = vadd.xlane.f32.xlu0 %v1313
      %v1315 = vpop.xlane.xlu0 %1314
      %v1316 = vadd.f32 %v1196, %v1197
      %1317 = vadd.xlane.f32.xlu0 %v1316
      %v1318 = vpop.xlane.xlu0 %1317
      %v1319 = vadd.f32 %v1198, %v1199
      %1320 = vadd.xlane.f32.xlu0 %v1319
      %v1321 = vpop.xlane.xlu0 %1320
      %v1322 = vadd.f32 %v1200, %v1201
      %1323 = vadd.xlane.f32.xlu0 %v1322
      %v1324 = vpop.xlane.xlu0 %1323
      %v1325 = vadd.f32 %v1202, %v1203
      %1326 = vadd.xlane.f32.xlu0 %v1325
      %v1327 = vpop.xlane.xlu0 %1326
      %v1328 = vadd.f32 %v1204, %v1205
      %1329 = vadd.xlane.f32.xlu0 %v1328
      %v1330 = vpop.xlane.xlu0 %1329
      %v1331 = vadd.f32 %v1206, %v1207
      %1332 = vadd.xlane.f32.xlu0 %v1331
      %v1333 = vpop.xlane.xlu0 %1332
      %v1334 = vadd.f32 %v1208, %v1209
      %1335 = vadd.xlane.f32.xlu0 %v1334
      %v1336 = vpop.xlane.xlu0 %1335
      %v1337 = vadd.f32 %v1210, %v1211
      %1338 = vadd.xlane.f32.xlu0 %v1337
      %v1339 = vpop.xlane.xlu0 %1338
      %v1340 = vadd.f32 %v1212, %v1213
      %1341 = vadd.xlane.f32.xlu0 %v1340
      %v1342 = vpop.xlane.xlu0 %1341
      %v1343 = vadd.f32 %v1214, %v1215
      %1344 = vadd.xlane.f32.xlu0 %v1343
      %v1345 = vpop.xlane.xlu0 %1344
      %v1346 = vadd.f32 %v1216, %v1217
      %1347 = vadd.xlane.f32.xlu0 %v1346
      %v1348 = vpop.xlane.xlu0 %1347
      %v1349 = vadd.f32 %v1218, %v1219
      %1350 = vadd.xlane.f32.xlu0 %v1349
      %v1351 = vpop.xlane.xlu0 %1350
      %v1352 = vadd.f32 %v1220, %v1221
      %1353 = vadd.xlane.f32.xlu0 %v1352
      %v1354 = vpop.xlane.xlu0 %1353
      %v1355 = vadd.f32 %v1222, %v1223
      %1356 = vadd.xlane.f32.xlu0 %v1355
      %v1357 = vpop.xlane.xlu0 %1356
      %v1358 = vadd.f32 %v1224, %v1225
      %1359 = vadd.xlane.f32.xlu0 %v1358
      %v1360 = vpop.xlane.xlu0 %1359
      %v1361 = vadd.f32 %v1226, %v1227
      %1362 = vadd.xlane.f32.xlu0 %v1361
      %v1363 = vpop.xlane.xlu0 %1362
      %v1364 = vadd.f32 %v1228, %v1229
      %1365 = vadd.xlane.f32.xlu0 %v1364
      %v1366 = vpop.xlane.xlu0 %1365
      %v1367 = vadd.f32 %v1230, %v1231
      %1368 = vadd.xlane.f32.xlu0 %v1367
      %v1369 = vpop.xlane.xlu0 %1368
      %v1370 = vadd.f32 %v1232, %v1233
      %1371 = vadd.xlane.f32.xlu0 %v1370
      %v1372 = vpop.xlane.xlu0 %1371
      %v1373 = vadd.f32 %v1234, %v1235
      %1374 = vadd.xlane.f32.xlu0 %v1373
      %v1375 = vpop.xlane.xlu0 %1374
      %v1376 = vadd.f32 %v1236, %v1237
      %1377 = vadd.xlane.f32.xlu0 %v1376
      %v1378 = vpop.xlane.xlu0 %1377
      %v1379 = vadd.f32 %v1238, %v1239
      %1380 = vadd.xlane.f32.xlu0 %v1379
      %v1381 = vpop.xlane.xlu0 %1380
      %v1382 = vadd.f32 %v1240, %v1241
      %1383 = vadd.xlane.f32.xlu0 %v1382
      %v1384 = vpop.xlane.xlu0 %1383
      %v1385 = vadd.f32 %v1242, %v1243
      %1386 = vadd.xlane.f32.xlu0 %v1385
      %v1387 = vpop.xlane.xlu0 %1386
      %v1388 = vadd.f32 %v1244, %v1245
      %1389 = vadd.xlane.f32.xlu0 %v1388
      %v1390 = vpop.xlane.xlu0 %1389
      %v1391 = vadd.f32 %v1246, %v1247
      %1392 = vadd.xlane.f32.xlu0 %v1391
      %v1393 = vpop.xlane.xlu0 %1392
      %v1394 = vadd.f32 %v1248, %v1249
      %1395 = vadd.xlane.f32.xlu0 %v1394
      %v1396 = vpop.xlane.xlu0 %1395
      %v1397 = vadd.f32 %v1250, %v1251
      %1398 = vadd.xlane.f32.xlu0 %v1397
      %v1399 = vpop.xlane.xlu0 %1398
      %v1400 = vadd.f32 %v1252, %v1253
      %1401 = vadd.xlane.f32.xlu0 %v1400
      %v1402 = vpop.xlane.xlu0 %1401
      %v1403 = vadd.f32 %v1254, %v1255
      %1404 = vadd.xlane.f32.xlu0 %v1403
      %v1405 = vpop.xlane.xlu0 %1404
      %v1406 = vadd.f32 %v1256, %v1257
      %1407 = vadd.xlane.f32.xlu0 %v1406
      %v1408 = vpop.xlane.xlu0 %1407
      %v1409 = vadd.f32 %v1258, %v1259
      %1410 = vadd.xlane.f32.xlu0 %v1409
      %v1411 = vpop.xlane.xlu0 %1410
      %v1412 = vadd.f32 %v1260, %v1261
      %1413 = vadd.xlane.f32.xlu0 %v1412
      %v1414 = vpop.xlane.xlu0 %1413
      %v1415 = vadd.f32 %v1262, %v1263
      %1416 = vadd.xlane.f32.xlu0 %v1415
      %v1417 = vpop.xlane.xlu0 %1416
      %v1418 = vadd.f32 %v1264, %v1265
      %1419 = vadd.xlane.f32.xlu0 %v1418
      %v1420 = vpop.xlane.xlu0 %1419
      %v1421 = vadd.f32 %v1266, %v1267
      %1422 = vadd.xlane.f32.xlu0 %v1421
      %v1423 = vpop.xlane.xlu0 %1422
      %v1424 = vadd.f32 %v1268, %v1269
      %1425 = vadd.xlane.f32.xlu0 %v1424
      %v1426 = vpop.xlane.xlu0 %1425
      %v1427 = vadd.f32 %v1270, %v1271
      %1428 = vadd.xlane.f32.xlu0 %v1427
      %v1429 = vpop.xlane.xlu0 %1428
      %v1430 = vadd.f32 %v1272, %v1273
      %1431 = vadd.xlane.f32.xlu0 %v1430
      %v1432 = vpop.xlane.xlu0 %1431
      %v1433 = vadd.f32 %v1274, %v1275
      %1434 = vadd.xlane.f32.xlu0 %v1433
      %v1435 = vpop.xlane.xlu0 %1434
      %v1436 = vadd.f32 %v1276, %v1277
      %1437 = vadd.xlane.f32.xlu0 %v1436
      %v1438 = vpop.xlane.xlu0 %1437
      %v1439 = vadd.f32 %v1278, %v1279
      %1440 = vadd.xlane.f32.xlu0 %v1439
      %v1441 = vpop.xlane.xlu0 %1440
      %v1442 = vadd.f32 %v1280, %v1281
      %1443 = vadd.xlane.f32.xlu0 %v1442
      %v1444 = vpop.xlane.xlu0 %1443
      %v1445 = vadd.f32 %v1282, %v1283
      %1446 = vadd.xlane.f32.xlu0 %v1445
      %v1447 = vpop.xlane.xlu0 %1446
      %v1448 = vadd.f32 %v1284, %v1285
      %1449 = vadd.xlane.f32.xlu0 %v1448
      %v1450 = vpop.xlane.xlu0 %1449
      %v1451 = vadd.f32 %v1286, %v1287
      %1452 = vadd.xlane.f32.xlu0 %v1451
      %v1453 = vpop.xlane.xlu0 %1452
      %v1454 = vadd.f32 %v1288, %v1289
      %1455 = vadd.xlane.f32.xlu0 %v1454
      %v1456 = vpop.xlane.xlu0 %1455
      %v1457 = vadd.f32 %v1290, %v1291
      %1458 = vadd.xlane.f32.xlu0 %v1457
      %v1459 = vpop.xlane.xlu0 %1458
      %v1460 = vlaneseq
      %v1461 = vshrl.u32 %v1460, 7
      %v1462 = vsub.s32 3, %v1461
      %v1463 = vrot.slane %v203, %v1462
      %v1464 = vlaneseq
      %v1465 = vshrl.u32 %v1464, 7
      %v1466 = vsub.s32 7, %v1465
      %v1467 = vrot.slane %v203, %v1466
      %v1470 = vlaneseq
      %v1471 = vshrl.u32 %v1470, 7
      %v1472 = vsub.s32 3, %v1471
      %v1473 = vrot.slane %v1463, %v1472
      %v1474 = vlaneseq
      %v1475 = vshrl.u32 %v1474, 7
      %v1476 = vsub.s32 3, %v1475
      %v1477 = vrot.slane %v1467, %v1476
      %v1478 = vsel %vm453, %v1473, 0.0
      %v1479 = vsel %vm454, %v1477, 0.0
      %v1480 = vsel %vm455, %v1473, 0.0
      %v1481 = vsel %vm456, %v1477, 0.0
      %v1482 = vsel %vm457, %v1473, 0.0
      %v1483 = vsel %vm458, %v1477, 0.0
      %v1484 = vsel %vm459, %v1473, 0.0
      %v1485 = vsel %vm460, %v1477, 0.0
      %v1486 = vsel %vm461, %v1473, 0.0
      %v1487 = vsel %vm462, %v1477, 0.0
      %v1488 = vsel %vm463, %v1473, 0.0
      %v1489 = vsel %vm464, %v1477, 0.0
      %v1490 = vsel %vm465, %v1473, 0.0
      %v1491 = vsel %vm466, %v1477, 0.0
      %v1492 = vsel %vm467, %v1473, 0.0
      %v1493 = vsel %vm468, %v1477, 0.0
      %v1494 = vsel %vm469, %v1473, 0.0
      %v1495 = vsel %vm470, %v1477, 0.0
      %v1496 = vsel %vm471, %v1473, 0.0
      %v1497 = vsel %vm472, %v1477, 0.0
      %v1498 = vsel %vm473, %v1473, 0.0
      %v1499 = vsel %vm474, %v1477, 0.0
      %v1500 = vsel %vm475, %v1473, 0.0
      %v1501 = vsel %vm476, %v1477, 0.0
      %v1502 = vsel %vm477, %v1473, 0.0
      %v1503 = vsel %vm478, %v1477, 0.0
      %v1504 = vsel %vm479, %v1473, 0.0
      %v1505 = vsel %vm480, %v1477, 0.0
      %v1506 = vsel %vm481, %v1473, 0.0
      %v1507 = vsel %vm482, %v1477, 0.0
      %v1508 = vsel %vm483, %v1473, 0.0
      %v1509 = vsel %vm484, %v1477, 0.0
      %v1510 = vsel %vm485, %v1473, 0.0
      %v1511 = vsel %vm486, %v1477, 0.0
      %v1512 = vsel %vm487, %v1473, 0.0
      %v1513 = vsel %vm488, %v1477, 0.0
      %v1514 = vsel %vm489, %v1473, 0.0
      %v1515 = vsel %vm490, %v1477, 0.0
      %v1516 = vsel %vm491, %v1473, 0.0
      %v1517 = vsel %vm492, %v1477, 0.0
      %v1518 = vsel %vm493, %v1473, 0.0
      %v1519 = vsel %vm494, %v1477, 0.0
      %v1520 = vsel %vm495, %v1473, 0.0
      %v1521 = vsel %vm496, %v1477, 0.0
      %v1522 = vsel %vm497, %v1473, 0.0
      %v1523 = vsel %vm498, %v1477, 0.0
      %v1524 = vsel %vm499, %v1473, 0.0
      %v1525 = vsel %vm500, %v1477, 0.0
      %v1526 = vsel %vm501, %v1473, 0.0
      %v1527 = vsel %vm502, %v1477, 0.0
      %v1528 = vsel %vm503, %v1473, 0.0
      %v1529 = vsel %vm504, %v1477, 0.0
      %v1530 = vsel %vm505, %v1473, 0.0
      %v1531 = vsel %vm506, %v1477, 0.0
      %v1532 = vsel %vm507, %v1473, 0.0
      %v1533 = vsel %vm508, %v1477, 0.0
      %v1534 = vsel %vm509, %v1473, 0.0
      %v1535 = vsel %vm510, %v1477, 0.0
      %v1536 = vsel %vm511, %v1473, 0.0
      %v1537 = vsel %vm512, %v1477, 0.0
      %v1538 = vsel %vm513, %v1473, 0.0
      %v1539 = vsel %vm514, %v1477, 0.0
      %v1540 = vsel %vm515, %v1473, 0.0
      %v1541 = vsel %vm516, %v1477, 0.0
      %v1542 = vsel %vm517, %v1473, 0.0
      %v1543 = vsel %vm518, %v1477, 0.0
      %v1544 = vsel %vm519, %v1473, 0.0
      %v1545 = vsel %vm520, %v1477, 0.0
      %v1546 = vsel %vm521, %v1473, 0.0
      %v1547 = vsel %vm522, %v1477, 0.0
      %v1548 = vsel %vm523, %v1473, 0.0
      %v1549 = vsel %vm524, %v1477, 0.0
      %v1550 = vsel %vm525, %v1473, 0.0
      %v1551 = vsel %vm526, %v1477, 0.0
      %v1552 = vsel %vm527, %v1473, 0.0
      %v1553 = vsel %vm528, %v1477, 0.0
      %v1554 = vsel %vm529, %v1473, 0.0
      %v1555 = vsel %vm530, %v1477, 0.0
      %v1556 = vsel %vm531, %v1473, 0.0
      %v1557 = vsel %vm532, %v1477, 0.0
      %v1558 = vsel %vm533, %v1473, 0.0
      %v1559 = vsel %vm534, %v1477, 0.0
      %v1560 = vsel %vm535, %v1473, 0.0
      %v1561 = vsel %vm536, %v1477, 0.0
      %v1562 = vsel %vm537, %v1473, 0.0
      %v1563 = vsel %vm538, %v1477, 0.0
      %v1564 = vsel %vm539, %v1473, 0.0
      %v1565 = vsel %vm540, %v1477, 0.0
      %v1566 = vsel %vm541, %v1473, 0.0
      %v1567 = vsel %vm542, %v1477, 0.0
      %v1568 = vsel %vm543, %v1473, 0.0
      %v1569 = vsel %vm544, %v1477, 0.0
      %v1570 = vsel %vm545, %v1473, 0.0
      %v1571 = vsel %vm546, %v1477, 0.0
      %v1572 = vsel %vm547, %v1473, 0.0
      %v1573 = vsel %vm548, %v1477, 0.0
      %v1574 = vsel %vm549, %v1473, 0.0
      %v1575 = vsel %vm550, %v1477, 0.0
      %v1576 = vsel %vm551, %v1473, 0.0
      %v1577 = vsel %vm552, %v1477, 0.0
      %v1578 = vsel %vm553, %v1473, 0.0
      %v1579 = vsel %vm554, %v1477, 0.0
      %v1580 = vsel %vm555, %v1473, 0.0
      %v1581 = vsel %vm556, %v1477, 0.0
      %v1582 = vsel %vm557, %v1473, 0.0
      %v1583 = vsel %vm558, %v1477, 0.0
      %v1584 = vsel %vm559, %v1473, 0.0
      %v1585 = vsel %vm560, %v1477, 0.0
      %v1586 = vsel %vm561, %v1473, 0.0
      %v1587 = vsel %vm562, %v1477, 0.0
      %v1588 = vsel %vm563, %v1473, 0.0
      %v1589 = vsel %vm564, %v1477, 0.0
      %v1590 = vadd.f32 %v1478, %v1479
      %1591 = vadd.xlane.f32.xlu0 %v1590
      %v1592 = vpop.xlane.xlu0 %1591
      %v1593 = vadd.f32 %v1480, %v1481
      %1594 = vadd.xlane.f32.xlu0 %v1593
      %v1595 = vpop.xlane.xlu0 %1594
      %v1596 = vadd.f32 %v1482, %v1483
      %1597 = vadd.xlane.f32.xlu0 %v1596
      %v1598 = vpop.xlane.xlu0 %1597
      %v1599 = vadd.f32 %v1484, %v1485
      %1600 = vadd.xlane.f32.xlu0 %v1599
      %v1601 = vpop.xlane.xlu0 %1600
      %v1602 = vadd.f32 %v1486, %v1487
      %1603 = vadd.xlane.f32.xlu0 %v1602
      %v1604 = vpop.xlane.xlu0 %1603
      %v1605 = vadd.f32 %v1488, %v1489
      %1606 = vadd.xlane.f32.xlu0 %v1605
      %v1607 = vpop.xlane.xlu0 %1606
      %v1608 = vadd.f32 %v1490, %v1491
      %1609 = vadd.xlane.f32.xlu0 %v1608
      %v1610 = vpop.xlane.xlu0 %1609
      %v1611 = vadd.f32 %v1492, %v1493
      %1612 = vadd.xlane.f32.xlu0 %v1611
      %v1613 = vpop.xlane.xlu0 %1612
      %v1614 = vadd.f32 %v1494, %v1495
      %1615 = vadd.xlane.f32.xlu0 %v1614
      %v1616 = vpop.xlane.xlu0 %1615
      %v1617 = vadd.f32 %v1496, %v1497
      %1618 = vadd.xlane.f32.xlu0 %v1617
      %v1619 = vpop.xlane.xlu0 %1618
      %v1620 = vadd.f32 %v1498, %v1499
      %1621 = vadd.xlane.f32.xlu0 %v1620
      %v1622 = vpop.xlane.xlu0 %1621
      %v1623 = vadd.f32 %v1500, %v1501
      %1624 = vadd.xlane.f32.xlu0 %v1623
      %v1625 = vpop.xlane.xlu0 %1624
      %v1626 = vadd.f32 %v1502, %v1503
      %1627 = vadd.xlane.f32.xlu0 %v1626
      %v1628 = vpop.xlane.xlu0 %1627
      %v1629 = vadd.f32 %v1504, %v1505
      %1630 = vadd.xlane.f32.xlu0 %v1629
      %v1631 = vpop.xlane.xlu0 %1630
      %v1632 = vadd.f32 %v1506, %v1507
      %1633 = vadd.xlane.f32.xlu0 %v1632
      %v1634 = vpop.xlane.xlu0 %1633
      %v1635 = vadd.f32 %v1508, %v1509
      %1636 = vadd.xlane.f32.xlu0 %v1635
      %v1637 = vpop.xlane.xlu0 %1636
      %v1638 = vadd.f32 %v1510, %v1511
      %1639 = vadd.xlane.f32.xlu0 %v1638
      %v1640 = vpop.xlane.xlu0 %1639
      %v1641 = vadd.f32 %v1512, %v1513
      %1642 = vadd.xlane.f32.xlu0 %v1641
      %v1643 = vpop.xlane.xlu0 %1642
      %v1644 = vadd.f32 %v1514, %v1515
      %1645 = vadd.xlane.f32.xlu0 %v1644
      %v1646 = vpop.xlane.xlu0 %1645
      %v1647 = vadd.f32 %v1516, %v1517
      %1648 = vadd.xlane.f32.xlu0 %v1647
      %v1649 = vpop.xlane.xlu0 %1648
      %v1650 = vadd.f32 %v1518, %v1519
      %1651 = vadd.xlane.f32.xlu0 %v1650
      %v1652 = vpop.xlane.xlu0 %1651
      %v1653 = vadd.f32 %v1520, %v1521
      %1654 = vadd.xlane.f32.xlu0 %v1653
      %v1655 = vpop.xlane.xlu0 %1654
      %v1656 = vadd.f32 %v1522, %v1523
      %1657 = vadd.xlane.f32.xlu0 %v1656
      %v1658 = vpop.xlane.xlu0 %1657
      %v1659 = vadd.f32 %v1524, %v1525
      %1660 = vadd.xlane.f32.xlu0 %v1659
      %v1661 = vpop.xlane.xlu0 %1660
      %v1662 = vadd.f32 %v1526, %v1527
      %1663 = vadd.xlane.f32.xlu0 %v1662
      %v1664 = vpop.xlane.xlu0 %1663
      %v1665 = vadd.f32 %v1528, %v1529
      %1666 = vadd.xlane.f32.xlu0 %v1665
      %v1667 = vpop.xlane.xlu0 %1666
      %v1668 = vadd.f32 %v1530, %v1531
      %1669 = vadd.xlane.f32.xlu0 %v1668
      %v1670 = vpop.xlane.xlu0 %1669
      %v1671 = vadd.f32 %v1532, %v1533
      %1672 = vadd.xlane.f32.xlu0 %v1671
      %v1673 = vpop.xlane.xlu0 %1672
      %v1674 = vadd.f32 %v1534, %v1535
      %1675 = vadd.xlane.f32.xlu0 %v1674
      %v1676 = vpop.xlane.xlu0 %1675
      %v1677 = vadd.f32 %v1536, %v1537
      %1678 = vadd.xlane.f32.xlu0 %v1677
      %v1679 = vpop.xlane.xlu0 %1678
      %v1680 = vadd.f32 %v1538, %v1539
      %1681 = vadd.xlane.f32.xlu0 %v1680
      %v1682 = vpop.xlane.xlu0 %1681
      %v1683 = vadd.f32 %v1540, %v1541
      %1684 = vadd.xlane.f32.xlu0 %v1683
      %v1685 = vpop.xlane.xlu0 %1684
      %v1686 = vadd.f32 %v1542, %v1543
      %1687 = vadd.xlane.f32.xlu0 %v1686
      %v1688 = vpop.xlane.xlu0 %1687
      %v1689 = vadd.f32 %v1544, %v1545
      %1690 = vadd.xlane.f32.xlu0 %v1689
      %v1691 = vpop.xlane.xlu0 %1690
      %v1692 = vadd.f32 %v1546, %v1547
      %1693 = vadd.xlane.f32.xlu0 %v1692
      %v1694 = vpop.xlane.xlu0 %1693
      %v1695 = vadd.f32 %v1548, %v1549
      %1696 = vadd.xlane.f32.xlu0 %v1695
      %v1697 = vpop.xlane.xlu0 %1696
      %v1698 = vadd.f32 %v1550, %v1551
      %1699 = vadd.xlane.f32.xlu0 %v1698
      %v1700 = vpop.xlane.xlu0 %1699
      %v1701 = vadd.f32 %v1552, %v1553
      %1702 = vadd.xlane.f32.xlu0 %v1701
      %v1703 = vpop.xlane.xlu0 %1702
      %v1704 = vadd.f32 %v1554, %v1555
      %1705 = vadd.xlane.f32.xlu0 %v1704
      %v1706 = vpop.xlane.xlu0 %1705
      %v1707 = vadd.f32 %v1556, %v1557
      %1708 = vadd.xlane.f32.xlu0 %v1707
      %v1709 = vpop.xlane.xlu0 %1708
      %v1710 = vadd.f32 %v1558, %v1559
      %1711 = vadd.xlane.f32.xlu0 %v1710
      %v1712 = vpop.xlane.xlu0 %1711
      %v1713 = vadd.f32 %v1560, %v1561
      %1714 = vadd.xlane.f32.xlu0 %v1713
      %v1715 = vpop.xlane.xlu0 %1714
      %v1716 = vadd.f32 %v1562, %v1563
      %1717 = vadd.xlane.f32.xlu0 %v1716
      %v1718 = vpop.xlane.xlu0 %1717
      %v1719 = vadd.f32 %v1564, %v1565
      %1720 = vadd.xlane.f32.xlu0 %v1719
      %v1721 = vpop.xlane.xlu0 %1720
      %v1722 = vadd.f32 %v1566, %v1567
      %1723 = vadd.xlane.f32.xlu0 %v1722
      %v1724 = vpop.xlane.xlu0 %1723
      %v1725 = vadd.f32 %v1568, %v1569
      %1726 = vadd.xlane.f32.xlu0 %v1725
      %v1727 = vpop.xlane.xlu0 %1726
      %v1728 = vadd.f32 %v1570, %v1571
      %1729 = vadd.xlane.f32.xlu0 %v1728
      %v1730 = vpop.xlane.xlu0 %1729
      %v1731 = vadd.f32 %v1572, %v1573
      %1732 = vadd.xlane.f32.xlu0 %v1731
      %v1733 = vpop.xlane.xlu0 %1732
      %v1734 = vadd.f32 %v1574, %v1575
      %1735 = vadd.xlane.f32.xlu0 %v1734
      %v1736 = vpop.xlane.xlu0 %1735
      %v1737 = vadd.f32 %v1576, %v1577
      %1738 = vadd.xlane.f32.xlu0 %v1737
      %v1739 = vpop.xlane.xlu0 %1738
      %v1740 = vadd.f32 %v1578, %v1579
      %1741 = vadd.xlane.f32.xlu0 %v1740
      %v1742 = vpop.xlane.xlu0 %1741
      %v1743 = vadd.f32 %v1580, %v1581
      %1744 = vadd.xlane.f32.xlu0 %v1743
      %v1745 = vpop.xlane.xlu0 %1744
      %v1746 = vadd.f32 %v1582, %v1583
      %1747 = vadd.xlane.f32.xlu0 %v1746
      %v1748 = vpop.xlane.xlu0 %1747
      %v1749 = vadd.f32 %v1584, %v1585
      %1750 = vadd.xlane.f32.xlu0 %v1749
      %v1751 = vpop.xlane.xlu0 %1750
      %v1752 = vadd.f32 %v1586, %v1587
      %1753 = vadd.xlane.f32.xlu0 %v1752
      %v1754 = vpop.xlane.xlu0 %1753
      %v1755 = vadd.f32 %v1588, %v1589
      %1756 = vadd.xlane.f32.xlu0 %v1755
      %v1757 = vpop.xlane.xlu0 %1756
      %v1758 = vsub.f32 %v1294, %v698
      %v1759 = vsub.f32 %v1297, %v701
      %v1760 = vsub.f32 %v1300, %v704
      %v1761 = vsub.f32 %v1303, %v707
      %v1762 = vsub.f32 %v1306, %v710
      %v1763 = vsub.f32 %v1309, %v713
      %v1764 = vsub.f32 %v1312, %v716
      %v1765 = vsub.f32 %v1315, %v719
      %v1766 = vsub.f32 %v1318, %v722
      %v1767 = vsub.f32 %v1321, %v725
      %v1768 = vsub.f32 %v1324, %v728
      %v1769 = vsub.f32 %v1327, %v731
      %v1770 = vsub.f32 %v1330, %v734
      %v1771 = vsub.f32 %v1333, %v737
      %v1772 = vsub.f32 %v1336, %v740
      %v1773 = vsub.f32 %v1339, %v743
      %v1774 = vsub.f32 %v1342, %v746
      %v1775 = vsub.f32 %v1345, %v749
      %v1776 = vsub.f32 %v1348, %v752
      %v1777 = vsub.f32 %v1351, %v755
      %v1778 = vsub.f32 %v1354, %v758
      %v1779 = vsub.f32 %v1357, %v761
      %v1780 = vsub.f32 %v1360, %v764
      %v1781 = vsub.f32 %v1363, %v767
      %v1782 = vsub.f32 %v1366, %v770
      %v1783 = vsub.f32 %v1369, %v773
      %v1784 = vsub.f32 %v1372, %v776
      %v1785 = vsub.f32 %v1375, %v779
      %v1786 = vsub.f32 %v1378, %v782
      %v1787 = vsub.f32 %v1381, %v785
      %v1788 = vsub.f32 %v1384, %v788
      %v1789 = vsub.f32 %v1387, %v791
      %v1790 = vsub.f32 %v1390, %v794
      %v1791 = vsub.f32 %v1393, %v797
      %v1792 = vsub.f32 %v1396, %v800
      %v1793 = vsub.f32 %v1399, %v803
      %v1794 = vsub.f32 %v1402, %v806
      %v1795 = vsub.f32 %v1405, %v809
      %v1796 = vsub.f32 %v1408, %v812
      %v1797 = vsub.f32 %v1411, %v815
      %v1798 = vsub.f32 %v1414, %v818
      %v1799 = vsub.f32 %v1417, %v821
      %v1800 = vsub.f32 %v1420, %v824
      %v1801 = vsub.f32 %v1423, %v827
      %v1802 = vsub.f32 %v1426, %v830
      %v1803 = vsub.f32 %v1429, %v833
      %v1804 = vsub.f32 %v1432, %v836
      %v1805 = vsub.f32 %v1435, %v839
      %v1806 = vsub.f32 %v1438, %v842
      %v1807 = vsub.f32 %v1441, %v845
      %v1808 = vsub.f32 %v1444, %v848
      %v1809 = vsub.f32 %v1447, %v851
      %v1810 = vsub.f32 %v1450, %v854
      %v1811 = vsub.f32 %v1453, %v857
      %v1812 = vsub.f32 %v1456, %v860
      %v1813 = vsub.f32 %v1459, %v863
      %v1814 = vsub.f32 %v1592, %v996
      %v1815 = vsub.f32 %v1595, %v999
      %v1816 = vsub.f32 %v1598, %v1002
      %v1817 = vsub.f32 %v1601, %v1005
      %v1818 = vsub.f32 %v1604, %v1008
      %v1819 = vsub.f32 %v1607, %v1011
      %v1820 = vsub.f32 %v1610, %v1014
      %v1821 = vsub.f32 %v1613, %v1017
      %v1822 = vsub.f32 %v1616, %v1020
      %v1823 = vsub.f32 %v1619, %v1023
      %v1824 = vsub.f32 %v1622, %v1026
      %v1825 = vsub.f32 %v1625, %v1029
      %v1826 = vsub.f32 %v1628, %v1032
      %v1827 = vsub.f32 %v1631, %v1035
      %v1828 = vsub.f32 %v1634, %v1038
      %v1829 = vsub.f32 %v1637, %v1041
      %v1830 = vsub.f32 %v1640, %v1044
      %v1831 = vsub.f32 %v1643, %v1047
      %v1832 = vsub.f32 %v1646, %v1050
      %v1833 = vsub.f32 %v1649, %v1053
      %v1834 = vsub.f32 %v1652, %v1056
      %v1835 = vsub.f32 %v1655, %v1059
      %v1836 = vsub.f32 %v1658, %v1062
      %v1837 = vsub.f32 %v1661, %v1065
      %v1838 = vsub.f32 %v1664, %v1068
      %v1839 = vsub.f32 %v1667, %v1071
      %v1840 = vsub.f32 %v1670, %v1074
      %v1841 = vsub.f32 %v1673, %v1077
      %v1842 = vsub.f32 %v1676, %v1080
      %v1843 = vsub.f32 %v1679, %v1083
      %v1844 = vsub.f32 %v1682, %v1086
      %v1845 = vsub.f32 %v1685, %v1089
      %v1846 = vsub.f32 %v1688, %v1092
      %v1847 = vsub.f32 %v1691, %v1095
      %v1848 = vsub.f32 %v1694, %v1098
      %v1849 = vsub.f32 %v1697, %v1101
      %v1850 = vsub.f32 %v1700, %v1104
      %v1851 = vsub.f32 %v1703, %v1107
      %v1852 = vsub.f32 %v1706, %v1110
      %v1853 = vsub.f32 %v1709, %v1113
      %v1854 = vsub.f32 %v1712, %v1116
      %v1855 = vsub.f32 %v1715, %v1119
      %v1856 = vsub.f32 %v1718, %v1122
      %v1857 = vsub.f32 %v1721, %v1125
      %v1858 = vsub.f32 %v1724, %v1128
      %v1859 = vsub.f32 %v1727, %v1131
      %v1860 = vsub.f32 %v1730, %v1134
      %v1861 = vsub.f32 %v1733, %v1137
      %v1862 = vsub.f32 %v1736, %v1140
      %v1863 = vsub.f32 %v1739, %v1143
      %v1864 = vsub.f32 %v1742, %v1146
      %v1865 = vsub.f32 %v1745, %v1149
      %v1866 = vsub.f32 %v1748, %v1152
      %v1867 = vsub.f32 %v1751, %v1155
      %v1868 = vsub.f32 %v1754, %v1158
      %v1869 = vsub.f32 %v1757, %v1161
      %v1870 = vmul.f32 %v1758, %v1814
      %v1871 = vmul.f32 %v1759, %v1815
      %v1872 = vmul.f32 %v1760, %v1816
      %v1873 = vmul.f32 %v1761, %v1817
      %v1874 = vmul.f32 %v1762, %v1818
      %v1875 = vmul.f32 %v1763, %v1819
      %v1876 = vmul.f32 %v1764, %v1820
      %v1877 = vmul.f32 %v1765, %v1821
      %v1878 = vmul.f32 %v1766, %v1822
      %v1879 = vmul.f32 %v1767, %v1823
      %v1880 = vmul.f32 %v1768, %v1824
      %v1881 = vmul.f32 %v1769, %v1825
      %v1882 = vmul.f32 %v1770, %v1826
      %v1883 = vmul.f32 %v1771, %v1827
      %v1884 = vmul.f32 %v1772, %v1828
      %v1885 = vmul.f32 %v1773, %v1829
      %v1886 = vmul.f32 %v1774, %v1830
      %v1887 = vmul.f32 %v1775, %v1831
      %v1888 = vmul.f32 %v1776, %v1832
      %v1889 = vmul.f32 %v1777, %v1833
      %v1890 = vmul.f32 %v1778, %v1834
      %v1891 = vmul.f32 %v1779, %v1835
      %v1892 = vmul.f32 %v1780, %v1836
      %v1893 = vmul.f32 %v1781, %v1837
      %v1894 = vmul.f32 %v1782, %v1838
      %v1895 = vmul.f32 %v1783, %v1839
      %v1896 = vmul.f32 %v1784, %v1840
      %v1897 = vmul.f32 %v1785, %v1841
      %v1898 = vmul.f32 %v1786, %v1842
      %v1899 = vmul.f32 %v1787, %v1843
      %v1900 = vmul.f32 %v1788, %v1844
      %v1901 = vmul.f32 %v1789, %v1845
      %v1902 = vmul.f32 %v1790, %v1846
      %v1903 = vmul.f32 %v1791, %v1847
      %v1904 = vmul.f32 %v1792, %v1848
      %v1905 = vmul.f32 %v1793, %v1849
      %v1906 = vmul.f32 %v1794, %v1850
      %v1907 = vmul.f32 %v1795, %v1851
      %v1908 = vmul.f32 %v1796, %v1852
      %v1909 = vmul.f32 %v1797, %v1853
      %v1910 = vmul.f32 %v1798, %v1854
      %v1911 = vmul.f32 %v1799, %v1855
      %v1912 = vmul.f32 %v1800, %v1856
      %v1913 = vmul.f32 %v1801, %v1857
      %v1914 = vmul.f32 %v1802, %v1858
      %v1915 = vmul.f32 %v1803, %v1859
      %v1916 = vmul.f32 %v1804, %v1860
      %v1917 = vmul.f32 %v1805, %v1861
      %v1918 = vmul.f32 %v1806, %v1862
      %v1919 = vmul.f32 %v1807, %v1863
      %v1920 = vmul.f32 %v1808, %v1864
      %v1921 = vmul.f32 %v1809, %v1865
      %v1922 = vmul.f32 %v1810, %v1866
      %v1923 = vmul.f32 %v1811, %v1867
      %v1924 = vmul.f32 %v1812, %v1868
      %v1925 = vmul.f32 %v1813, %v1869
      %v1982 = vlaneseq
      %v1983 = vshrl.u32 %v1982, 7
      %v1984 = vsub.s32 %v206, %v1983
      %v1985 = vrot.slane %v1294, %v1984
      %v1986 = vadd.s32 %v206, 4294967288
      %v1987 = vlaneseq
      %v1988 = vshrl.u32 %v1987, 7
      %v1989 = vsub.s32 %v1986, %v1988
      %v1990 = vrot.slane %v1297, %v1989
      %vm1991 = vcmask 130112
      %v1992 = vsel %vm1991, %v1990, %v1985
      %v1993 = vadd.s32 %v206, 4294967280
      %v1994 = vlaneseq
      %v1995 = vshrl.u32 %v1994, 7
      %v1996 = vsub.s32 %v1993, %v1995
      %v1997 = vrot.slane %v1300, %v1996
      %vm1998 = vcmask 195712
      %v1999 = vsel %vm1998, %v1997, %v1992
      %v2000 = vadd.s32 %v206, 4294967272
      %v2001 = vlaneseq
      %v2002 = vshrl.u32 %v2001, 7
      %v2003 = vsub.s32 %v2000, %v2002
      %v2004 = vrot.slane %v1303, %v2003
      %vm2005 = vcmask 261312
      %v2006 = vsel %vm2005, %v2004, %v1999
      %v2007 = vadd.s32 %v206, 4294967264
      %v2008 = vlaneseq
      %v2009 = vshrl.u32 %v2008, 7
      %v2010 = vsub.s32 %v2007, %v2009
      %v2011 = vrot.slane %v1306, %v2010
      %vm2012 = vcmask 326912
      %v2013 = vsel %vm2012, %v2011, %v2006
      %v2014 = vadd.s32 %v206, 4294967256
      %v2015 = vlaneseq
      %v2016 = vshrl.u32 %v2015, 7
      %v2017 = vsub.s32 %v2014, %v2016
      %v2018 = vrot.slane %v1309, %v2017
      %vm2019 = vcmask 392512
      %v2020 = vsel %vm2019, %v2018, %v2013
      %v2021 = vadd.s32 %v206, 4294967248
      %v2022 = vlaneseq
      %v2023 = vshrl.u32 %v2022, 7
      %v2024 = vsub.s32 %v2021, %v2023
      %v2025 = vrot.slane %v1312, %v2024
      %vm2026 = vcmask 458112
      %v2027 = vsel %vm2026, %v2025, %v2020
      %v2028 = vadd.s32 %v206, 4294967240
      %v2029 = vlaneseq
      %v2030 = vshrl.u32 %v2029, 7
      %v2031 = vsub.s32 %v2028, %v2030
      %v2032 = vrot.slane %v1315, %v2031
      %vm2033 = vcmask 523712
      %v2034 = vsel %vm2033, %v2032, %v2027
      %v2035 = vlaneseq
      %v2036 = vshrl.u32 %v2035, 7
      %v2037 = vsub.s32 %v206, %v2036
      %v2038 = vrot.slane %v1318, %v2037
      %v2039 = vlaneseq
      %v2040 = vshrl.u32 %v2039, 7
      %v2041 = vsub.s32 %v1986, %v2040
      %v2042 = vrot.slane %v1321, %v2041
      %v2043 = vsel %vm1991, %v2042, %v2038
      %v2044 = vlaneseq
      %v2045 = vshrl.u32 %v2044, 7
      %v2046 = vsub.s32 %v1993, %v2045
      %v2047 = vrot.slane %v1324, %v2046
      %v2048 = vsel %vm1998, %v2047, %v2043
      %v2049 = vlaneseq
      %v2050 = vshrl.u32 %v2049, 7
      %v2051 = vsub.s32 %v2000, %v2050
      %v2052 = vrot.slane %v1327, %v2051
      %v2053 = vsel %vm2005, %v2052, %v2048
      %v2054 = vlaneseq
      %v2055 = vshrl.u32 %v2054, 7
      %v2056 = vsub.s32 %v2007, %v2055
      %v2057 = vrot.slane %v1330, %v2056
      %v2058 = vsel %vm2012, %v2057, %v2053
      %v2059 = vlaneseq
      %v2060 = vshrl.u32 %v2059, 7
      %v2061 = vsub.s32 %v2014, %v2060
      %v2062 = vrot.slane %v1333, %v2061
      %v2063 = vsel %vm2019, %v2062, %v2058
      %v2064 = vlaneseq
      %v2065 = vshrl.u32 %v2064, 7
      %v2066 = vsub.s32 %v2021, %v2065
      %v2067 = vrot.slane %v1336, %v2066
      %v2068 = vsel %vm2026, %v2067, %v2063
      %v2069 = vlaneseq
      %v2070 = vshrl.u32 %v2069, 7
      %v2071 = vsub.s32 %v2028, %v2070
      %v2072 = vrot.slane %v1339, %v2071
      %v2073 = vsel %vm2033, %v2072, %v2068
      %v2074 = vlaneseq
      %v2075 = vshrl.u32 %v2074, 7
      %v2076 = vsub.s32 %v206, %v2075
      %v2077 = vrot.slane %v1342, %v2076
      %v2078 = vlaneseq
      %v2079 = vshrl.u32 %v2078, 7
      %v2080 = vsub.s32 %v1986, %v2079
      %v2081 = vrot.slane %v1345, %v2080
      %v2082 = vsel %vm1991, %v2081, %v2077
      %v2083 = vlaneseq
      %v2084 = vshrl.u32 %v2083, 7
      %v2085 = vsub.s32 %v1993, %v2084
      %v2086 = vrot.slane %v1348, %v2085
      %v2087 = vsel %vm1998, %v2086, %v2082
      %v2088 = vlaneseq
      %v2089 = vshrl.u32 %v2088, 7
      %v2090 = vsub.s32 %v2000, %v2089
      %v2091 = vrot.slane %v1351, %v2090
      %v2092 = vsel %vm2005, %v2091, %v2087
      %v2093 = vlaneseq
      %v2094 = vshrl.u32 %v2093, 7
      %v2095 = vsub.s32 %v2007, %v2094
      %v2096 = vrot.slane %v1354, %v2095
      %v2097 = vsel %vm2012, %v2096, %v2092
      %v2098 = vlaneseq
      %v2099 = vshrl.u32 %v2098, 7
      %v2100 = vsub.s32 %v2014, %v2099
      %v2101 = vrot.slane %v1357, %v2100
      %v2102 = vsel %vm2019, %v2101, %v2097
      %v2103 = vlaneseq
      %v2104 = vshrl.u32 %v2103, 7
      %v2105 = vsub.s32 %v2021, %v2104
      %v2106 = vrot.slane %v1360, %v2105
      %v2107 = vsel %vm2026, %v2106, %v2102
      %v2108 = vlaneseq
      %v2109 = vshrl.u32 %v2108, 7
      %v2110 = vsub.s32 %v2028, %v2109
      %v2111 = vrot.slane %v1363, %v2110
      %v2112 = vsel %vm2033, %v2111, %v2107
      %v2113 = vlaneseq
      %v2114 = vshrl.u32 %v2113, 7
      %v2115 = vsub.s32 %v206, %v2114
      %v2116 = vrot.slane %v1366, %v2115
      %v2117 = vlaneseq
      %v2118 = vshrl.u32 %v2117, 7
      %v2119 = vsub.s32 %v1986, %v2118
      %v2120 = vrot.slane %v1369, %v2119
      %v2121 = vsel %vm1991, %v2120, %v2116
      %v2122 = vlaneseq
      %v2123 = vshrl.u32 %v2122, 7
      %v2124 = vsub.s32 %v1993, %v2123
      %v2125 = vrot.slane %v1372, %v2124
      %v2126 = vsel %vm1998, %v2125, %v2121
      %v2127 = vlaneseq
      %v2128 = vshrl.u32 %v2127, 7
      %v2129 = vsub.s32 %v2000, %v2128
      %v2130 = vrot.slane %v1375, %v2129
      %v2131 = vsel %vm2005, %v2130, %v2126
      %v2132 = vlaneseq
      %v2133 = vshrl.u32 %v2132, 7
      %v2134 = vsub.s32 %v2007, %v2133
      %v2135 = vrot.slane %v1378, %v2134
      %v2136 = vsel %vm2012, %v2135, %v2131
      %v2137 = vlaneseq
      %v2138 = vshrl.u32 %v2137, 7
      %v2139 = vsub.s32 %v2014, %v2138
      %v2140 = vrot.slane %v1381, %v2139
      %v2141 = vsel %vm2019, %v2140, %v2136
      %v2142 = vlaneseq
      %v2143 = vshrl.u32 %v2142, 7
      %v2144 = vsub.s32 %v2021, %v2143
      %v2145 = vrot.slane %v1384, %v2144
      %v2146 = vsel %vm2026, %v2145, %v2141
      %v2147 = vlaneseq
      %v2148 = vshrl.u32 %v2147, 7
      %v2149 = vsub.s32 %v2028, %v2148
      %v2150 = vrot.slane %v1387, %v2149
      %v2151 = vsel %vm2033, %v2150, %v2146
      %v2152 = vlaneseq
      %v2153 = vshrl.u32 %v2152, 7
      %v2154 = vsub.s32 %v206, %v2153
      %v2155 = vrot.slane %v1390, %v2154
      %v2156 = vlaneseq
      %v2157 = vshrl.u32 %v2156, 7
      %v2158 = vsub.s32 %v1986, %v2157
      %v2159 = vrot.slane %v1393, %v2158
      %v2160 = vsel %vm1991, %v2159, %v2155
      %v2161 = vlaneseq
      %v2162 = vshrl.u32 %v2161, 7
      %v2163 = vsub.s32 %v1993, %v2162
      %v2164 = vrot.slane %v1396, %v2163
      %v2165 = vsel %vm1998, %v2164, %v2160
      %v2166 = vlaneseq
      %v2167 = vshrl.u32 %v2166, 7
      %v2168 = vsub.s32 %v2000, %v2167
      %v2169 = vrot.slane %v1399, %v2168
      %v2170 = vsel %vm2005, %v2169, %v2165
      %v2171 = vlaneseq
      %v2172 = vshrl.u32 %v2171, 7
      %v2173 = vsub.s32 %v2007, %v2172
      %v2174 = vrot.slane %v1402, %v2173
      %v2175 = vsel %vm2012, %v2174, %v2170
      %v2176 = vlaneseq
      %v2177 = vshrl.u32 %v2176, 7
      %v2178 = vsub.s32 %v2014, %v2177
      %v2179 = vrot.slane %v1405, %v2178
      %v2180 = vsel %vm2019, %v2179, %v2175
      %v2181 = vlaneseq
      %v2182 = vshrl.u32 %v2181, 7
      %v2183 = vsub.s32 %v2021, %v2182
      %v2184 = vrot.slane %v1408, %v2183
      %v2185 = vsel %vm2026, %v2184, %v2180
      %v2186 = vlaneseq
      %v2187 = vshrl.u32 %v2186, 7
      %v2188 = vsub.s32 %v2028, %v2187
      %v2189 = vrot.slane %v1411, %v2188
      %v2190 = vsel %vm2033, %v2189, %v2185
      %v2191 = vlaneseq
      %v2192 = vshrl.u32 %v2191, 7
      %v2193 = vsub.s32 %v206, %v2192
      %v2194 = vrot.slane %v1414, %v2193
      %v2195 = vlaneseq
      %v2196 = vshrl.u32 %v2195, 7
      %v2197 = vsub.s32 %v1986, %v2196
      %v2198 = vrot.slane %v1417, %v2197
      %v2199 = vsel %vm1991, %v2198, %v2194
      %v2200 = vlaneseq
      %v2201 = vshrl.u32 %v2200, 7
      %v2202 = vsub.s32 %v1993, %v2201
      %v2203 = vrot.slane %v1420, %v2202
      %v2204 = vsel %vm1998, %v2203, %v2199
      %v2205 = vlaneseq
      %v2206 = vshrl.u32 %v2205, 7
      %v2207 = vsub.s32 %v2000, %v2206
      %v2208 = vrot.slane %v1423, %v2207
      %v2209 = vsel %vm2005, %v2208, %v2204
      %v2210 = vlaneseq
      %v2211 = vshrl.u32 %v2210, 7
      %v2212 = vsub.s32 %v2007, %v2211
      %v2213 = vrot.slane %v1426, %v2212
      %v2214 = vsel %vm2012, %v2213, %v2209
      %v2215 = vlaneseq
      %v2216 = vshrl.u32 %v2215, 7
      %v2217 = vsub.s32 %v2014, %v2216
      %v2218 = vrot.slane %v1429, %v2217
      %v2219 = vsel %vm2019, %v2218, %v2214
      %v2220 = vlaneseq
      %v2221 = vshrl.u32 %v2220, 7
      %v2222 = vsub.s32 %v2021, %v2221
      %v2223 = vrot.slane %v1432, %v2222
      %v2224 = vsel %vm2026, %v2223, %v2219
      %v2225 = vlaneseq
      %v2226 = vshrl.u32 %v2225, 7
      %v2227 = vsub.s32 %v2028, %v2226
      %v2228 = vrot.slane %v1435, %v2227
      %v2229 = vsel %vm2033, %v2228, %v2224
      %v2230 = vlaneseq
      %v2231 = vshrl.u32 %v2230, 7
      %v2232 = vsub.s32 %v206, %v2231
      %v2233 = vrot.slane %v1438, %v2232
      %v2234 = vlaneseq
      %v2235 = vshrl.u32 %v2234, 7
      %v2236 = vsub.s32 %v1986, %v2235
      %v2237 = vrot.slane %v1441, %v2236
      %v2238 = vsel %vm1991, %v2237, %v2233
      %v2239 = vlaneseq
      %v2240 = vshrl.u32 %v2239, 7
      %v2241 = vsub.s32 %v1993, %v2240
      %v2242 = vrot.slane %v1444, %v2241
      %v2243 = vsel %vm1998, %v2242, %v2238
      %v2244 = vlaneseq
      %v2245 = vshrl.u32 %v2244, 7
      %v2246 = vsub.s32 %v2000, %v2245
      %v2247 = vrot.slane %v1447, %v2246
      %v2248 = vsel %vm2005, %v2247, %v2243
      %v2249 = vlaneseq
      %v2250 = vshrl.u32 %v2249, 7
      %v2251 = vsub.s32 %v2007, %v2250
      %v2252 = vrot.slane %v1450, %v2251
      %v2253 = vsel %vm2012, %v2252, %v2248
      %v2254 = vlaneseq
      %v2255 = vshrl.u32 %v2254, 7
      %v2256 = vsub.s32 %v2014, %v2255
      %v2257 = vrot.slane %v1453, %v2256
      %v2258 = vsel %vm2019, %v2257, %v2253
      %v2259 = vlaneseq
      %v2260 = vshrl.u32 %v2259, 7
      %v2261 = vsub.s32 %v2021, %v2260
      %v2262 = vrot.slane %v1456, %v2261
      %v2263 = vsel %vm2026, %v2262, %v2258
      %v2264 = vlaneseq
      %v2265 = vshrl.u32 %v2264, 7
      %v2266 = vsub.s32 %v2028, %v2265
      %v2267 = vrot.slane %v1459, %v2266
      %v2268 = vsel %vm2033, %v2267, %v2263
      %vm2269 = vcmask 1041409
      %vm2270 = vcmask 1042434
      %v2271 = vsel %vm2270, %v2034, %v2034
      %vm2272 = vcmask 1043459
      %v2273 = vsel %vm2272, %v2034, %v2271
      %vm2274 = vcmask 1044484
      %v2275 = vsel %vm2274, %v2034, %v2273
      %vm2276 = vcmask 1045509
      %v2277 = vsel %vm2276, %v2034, %v2275
      %vm2278 = vcmask 1046534
      %v2279 = vsel %vm2278, %v2034, %v2277
      %vm2280 = vcmask 1047559
      %v2281 = vsel %vm2280, %v2034, %v2279
      %v2282 = vsel %vm2270, %v2073, %v2073
      %v2283 = vsel %vm2272, %v2073, %v2282
      %v2284 = vsel %vm2274, %v2073, %v2283
      %v2285 = vsel %vm2276, %v2073, %v2284
      %v2286 = vsel %vm2278, %v2073, %v2285
      %v2287 = vsel %vm2280, %v2073, %v2286
      %v2288 = vsel %vm2270, %v2112, %v2112
      %v2289 = vsel %vm2272, %v2112, %v2288
      %v2290 = vsel %vm2274, %v2112, %v2289
      %v2291 = vsel %vm2276, %v2112, %v2290
      %v2292 = vsel %vm2278, %v2112, %v2291
      %v2293 = vsel %vm2280, %v2112, %v2292
      %v2294 = vsel %vm2270, %v2151, %v2151
      %v2295 = vsel %vm2272, %v2151, %v2294
      %v2296 = vsel %vm2274, %v2151, %v2295
      %v2297 = vsel %vm2276, %v2151, %v2296
      %v2298 = vsel %vm2278, %v2151, %v2297
      %v2299 = vsel %vm2280, %v2151, %v2298
      %v2300 = vsel %vm2270, %v2190, %v2190
      %v2301 = vsel %vm2272, %v2190, %v2300
      %v2302 = vsel %vm2274, %v2190, %v2301
      %v2303 = vsel %vm2276, %v2190, %v2302
      %v2304 = vsel %vm2278, %v2190, %v2303
      %v2305 = vsel %vm2280, %v2190, %v2304
      %v2306 = vsel %vm2270, %v2229, %v2229
      %v2307 = vsel %vm2272, %v2229, %v2306
      %v2308 = vsel %vm2274, %v2229, %v2307
      %v2309 = vsel %vm2276, %v2229, %v2308
      %v2310 = vsel %vm2278, %v2229, %v2309
      %v2311 = vsel %vm2280, %v2229, %v2310
      %v2312 = vsel %vm2270, %v2268, %v2268
      %v2313 = vsel %vm2272, %v2268, %v2312
      %v2314 = vsel %vm2274, %v2268, %v2313
      %v2315 = vsel %vm2276, %v2268, %v2314
      %v2316 = vsel %vm2278, %v2268, %v2315
      %v2317 = vsel %vm2280, %v2268, %v2316
      %v2325 = vmin.f32 %v1294, %v2281
      %v2326 = vmin.f32 %v1297, %v2281
      %v2327 = vmin.f32 %v1300, %v2281
      %v2328 = vmin.f32 %v1303, %v2281
      %v2329 = vmin.f32 %v1306, %v2281
      %v2330 = vmin.f32 %v1309, %v2281
      %v2331 = vmin.f32 %v1312, %v2281
      %v2332 = vmin.f32 %v1315, %v2281
      %v2333 = vmin.f32 %v1318, %v2287
      %v2334 = vmin.f32 %v1321, %v2287
      %v2335 = vmin.f32 %v1324, %v2287
      %v2336 = vmin.f32 %v1327, %v2287
      %v2337 = vmin.f32 %v1330, %v2287
      %v2338 = vmin.f32 %v1333, %v2287
      %v2339 = vmin.f32 %v1336, %v2287
      %v2340 = vmin.f32 %v1339, %v2287
      %v2341 = vmin.f32 %v1342, %v2293
      %v2342 = vmin.f32 %v1345, %v2293
      %v2343 = vmin.f32 %v1348, %v2293
      %v2344 = vmin.f32 %v1351, %v2293
      %v2345 = vmin.f32 %v1354, %v2293
      %v2346 = vmin.f32 %v1357, %v2293
      %v2347 = vmin.f32 %v1360, %v2293
      %v2348 = vmin.f32 %v1363, %v2293
      %v2349 = vmin.f32 %v1366, %v2299
      %v2350 = vmin.f32 %v1369, %v2299
      %v2351 = vmin.f32 %v1372, %v2299
      %v2352 = vmin.f32 %v1375, %v2299
      %v2353 = vmin.f32 %v1378, %v2299
      %v2354 = vmin.f32 %v1381, %v2299
      %v2355 = vmin.f32 %v1384, %v2299
      %v2356 = vmin.f32 %v1387, %v2299
      %v2357 = vmin.f32 %v1390, %v2305
      %v2358 = vmin.f32 %v1393, %v2305
      %v2359 = vmin.f32 %v1396, %v2305
      %v2360 = vmin.f32 %v1399, %v2305
      %v2361 = vmin.f32 %v1402, %v2305
      %v2362 = vmin.f32 %v1405, %v2305
      %v2363 = vmin.f32 %v1408, %v2305
      %v2364 = vmin.f32 %v1411, %v2305
      %v2365 = vmin.f32 %v1414, %v2311
      %v2366 = vmin.f32 %v1417, %v2311
      %v2367 = vmin.f32 %v1420, %v2311
      %v2368 = vmin.f32 %v1423, %v2311
      %v2369 = vmin.f32 %v1426, %v2311
      %v2370 = vmin.f32 %v1429, %v2311
      %v2371 = vmin.f32 %v1432, %v2311
      %v2372 = vmin.f32 %v1435, %v2311
      %v2373 = vmin.f32 %v1438, %v2317
      %v2374 = vmin.f32 %v1441, %v2317
      %v2375 = vmin.f32 %v1444, %v2317
      %v2376 = vmin.f32 %v1447, %v2317
      %v2377 = vmin.f32 %v1450, %v2317
      %v2378 = vmin.f32 %v1453, %v2317
      %v2379 = vmin.f32 %v1456, %v2317
      %v2380 = vmin.f32 %v1459, %v2317
      %v2437 = vlaneseq
      %v2438 = vshrl.u32 %v2437, 7
      %v2439 = vsub.s32 %v206, %v2438
      %v2440 = vrot.slane %v698, %v2439
      %v2441 = vlaneseq
      %v2442 = vshrl.u32 %v2441, 7
      %v2443 = vsub.s32 %v1986, %v2442
      %v2444 = vrot.slane %v701, %v2443
      %v2445 = vsel %vm1991, %v2444, %v2440
      %v2446 = vlaneseq
      %v2447 = vshrl.u32 %v2446, 7
      %v2448 = vsub.s32 %v1993, %v2447
      %v2449 = vrot.slane %v704, %v2448
      %v2450 = vsel %vm1998, %v2449, %v2445
      %v2451 = vlaneseq
      %v2452 = vshrl.u32 %v2451, 7
      %v2453 = vsub.s32 %v2000, %v2452
      %v2454 = vrot.slane %v707, %v2453
      %v2455 = vsel %vm2005, %v2454, %v2450
      %v2456 = vlaneseq
      %v2457 = vshrl.u32 %v2456, 7
      %v2458 = vsub.s32 %v2007, %v2457
      %v2459 = vrot.slane %v710, %v2458
      %v2460 = vsel %vm2012, %v2459, %v2455
      %v2461 = vlaneseq
      %v2462 = vshrl.u32 %v2461, 7
      %v2463 = vsub.s32 %v2014, %v2462
      %v2464 = vrot.slane %v713, %v2463
      %v2465 = vsel %vm2019, %v2464, %v2460
      %v2466 = vlaneseq
      %v2467 = vshrl.u32 %v2466, 7
      %v2468 = vsub.s32 %v2021, %v2467
      %v2469 = vrot.slane %v716, %v2468
      %v2470 = vsel %vm2026, %v2469, %v2465
      %v2471 = vlaneseq
      %v2472 = vshrl.u32 %v2471, 7
      %v2473 = vsub.s32 %v2028, %v2472
      %v2474 = vrot.slane %v719, %v2473
      %v2475 = vsel %vm2033, %v2474, %v2470
      %v2476 = vlaneseq
      %v2477 = vshrl.u32 %v2476, 7
      %v2478 = vsub.s32 %v206, %v2477
      %v2479 = vrot.slane %v722, %v2478
      %v2480 = vlaneseq
      %v2481 = vshrl.u32 %v2480, 7
      %v2482 = vsub.s32 %v1986, %v2481
      %v2483 = vrot.slane %v725, %v2482
      %v2484 = vsel %vm1991, %v2483, %v2479
      %v2485 = vlaneseq
      %v2486 = vshrl.u32 %v2485, 7
      %v2487 = vsub.s32 %v1993, %v2486
      %v2488 = vrot.slane %v728, %v2487
      %v2489 = vsel %vm1998, %v2488, %v2484
      %v2490 = vlaneseq
      %v2491 = vshrl.u32 %v2490, 7
      %v2492 = vsub.s32 %v2000, %v2491
      %v2493 = vrot.slane %v731, %v2492
      %v2494 = vsel %vm2005, %v2493, %v2489
      %v2495 = vlaneseq
      %v2496 = vshrl.u32 %v2495, 7
      %v2497 = vsub.s32 %v2007, %v2496
      %v2498 = vrot.slane %v734, %v2497
      %v2499 = vsel %vm2012, %v2498, %v2494
      %v2500 = vlaneseq
      %v2501 = vshrl.u32 %v2500, 7
      %v2502 = vsub.s32 %v2014, %v2501
      %v2503 = vrot.slane %v737, %v2502
      %v2504 = vsel %vm2019, %v2503, %v2499
      %v2505 = vlaneseq
      %v2506 = vshrl.u32 %v2505, 7
      %v2507 = vsub.s32 %v2021, %v2506
      %v2508 = vrot.slane %v740, %v2507
      %v2509 = vsel %vm2026, %v2508, %v2504
      %v2510 = vlaneseq
      %v2511 = vshrl.u32 %v2510, 7
      %v2512 = vsub.s32 %v2028, %v2511
      %v2513 = vrot.slane %v743, %v2512
      %v2514 = vsel %vm2033, %v2513, %v2509
      %v2515 = vlaneseq
      %v2516 = vshrl.u32 %v2515, 7
      %v2517 = vsub.s32 %v206, %v2516
      %v2518 = vrot.slane %v746, %v2517
      %v2519 = vlaneseq
      %v2520 = vshrl.u32 %v2519, 7
      %v2521 = vsub.s32 %v1986, %v2520
      %v2522 = vrot.slane %v749, %v2521
      %v2523 = vsel %vm1991, %v2522, %v2518
      %v2524 = vlaneseq
      %v2525 = vshrl.u32 %v2524, 7
      %v2526 = vsub.s32 %v1993, %v2525
      %v2527 = vrot.slane %v752, %v2526
      %v2528 = vsel %vm1998, %v2527, %v2523
      %v2529 = vlaneseq
      %v2530 = vshrl.u32 %v2529, 7
      %v2531 = vsub.s32 %v2000, %v2530
      %v2532 = vrot.slane %v755, %v2531
      %v2533 = vsel %vm2005, %v2532, %v2528
      %v2534 = vlaneseq
      %v2535 = vshrl.u32 %v2534, 7
      %v2536 = vsub.s32 %v2007, %v2535
      %v2537 = vrot.slane %v758, %v2536
      %v2538 = vsel %vm2012, %v2537, %v2533
      %v2539 = vlaneseq
      %v2540 = vshrl.u32 %v2539, 7
      %v2541 = vsub.s32 %v2014, %v2540
      %v2542 = vrot.slane %v761, %v2541
      %v2543 = vsel %vm2019, %v2542, %v2538
      %v2544 = vlaneseq
      %v2545 = vshrl.u32 %v2544, 7
      %v2546 = vsub.s32 %v2021, %v2545
      %v2547 = vrot.slane %v764, %v2546
      %v2548 = vsel %vm2026, %v2547, %v2543
      %v2549 = vlaneseq
      %v2550 = vshrl.u32 %v2549, 7
      %v2551 = vsub.s32 %v2028, %v2550
      %v2552 = vrot.slane %v767, %v2551
      %v2553 = vsel %vm2033, %v2552, %v2548
      %v2554 = vlaneseq
      %v2555 = vshrl.u32 %v2554, 7
      %v2556 = vsub.s32 %v206, %v2555
      %v2557 = vrot.slane %v770, %v2556
      %v2558 = vlaneseq
      %v2559 = vshrl.u32 %v2558, 7
      %v2560 = vsub.s32 %v1986, %v2559
      %v2561 = vrot.slane %v773, %v2560
      %v2562 = vsel %vm1991, %v2561, %v2557
      %v2563 = vlaneseq
      %v2564 = vshrl.u32 %v2563, 7
      %v2565 = vsub.s32 %v1993, %v2564
      %v2566 = vrot.slane %v776, %v2565
      %v2567 = vsel %vm1998, %v2566, %v2562
      %v2568 = vlaneseq
      %v2569 = vshrl.u32 %v2568, 7
      %v2570 = vsub.s32 %v2000, %v2569
      %v2571 = vrot.slane %v779, %v2570
      %v2572 = vsel %vm2005, %v2571, %v2567
      %v2573 = vlaneseq
      %v2574 = vshrl.u32 %v2573, 7
      %v2575 = vsub.s32 %v2007, %v2574
      %v2576 = vrot.slane %v782, %v2575
      %v2577 = vsel %vm2012, %v2576, %v2572
      %v2578 = vlaneseq
      %v2579 = vshrl.u32 %v2578, 7
      %v2580 = vsub.s32 %v2014, %v2579
      %v2581 = vrot.slane %v785, %v2580
      %v2582 = vsel %vm2019, %v2581, %v2577
      %v2583 = vlaneseq
      %v2584 = vshrl.u32 %v2583, 7
      %v2585 = vsub.s32 %v2021, %v2584
      %v2586 = vrot.slane %v788, %v2585
      %v2587 = vsel %vm2026, %v2586, %v2582
      %v2588 = vlaneseq
      %v2589 = vshrl.u32 %v2588, 7
      %v2590 = vsub.s32 %v2028, %v2589
      %v2591 = vrot.slane %v791, %v2590
      %v2592 = vsel %vm2033, %v2591, %v2587
      %v2593 = vlaneseq
      %v2594 = vshrl.u32 %v2593, 7
      %v2595 = vsub.s32 %v206, %v2594
      %v2596 = vrot.slane %v794, %v2595
      %v2597 = vlaneseq
      %v2598 = vshrl.u32 %v2597, 7
      %v2599 = vsub.s32 %v1986, %v2598
      %v2600 = vrot.slane %v797, %v2599
      %v2601 = vsel %vm1991, %v2600, %v2596
      %v2602 = vlaneseq
      %v2603 = vshrl.u32 %v2602, 7
      %v2604 = vsub.s32 %v1993, %v2603
      %v2605 = vrot.slane %v800, %v2604
      %v2606 = vsel %vm1998, %v2605, %v2601
      %v2607 = vlaneseq
      %v2608 = vshrl.u32 %v2607, 7
      %v2609 = vsub.s32 %v2000, %v2608
      %v2610 = vrot.slane %v803, %v2609
      %v2611 = vsel %vm2005, %v2610, %v2606
      %v2612 = vlaneseq
      %v2613 = vshrl.u32 %v2612, 7
      %v2614 = vsub.s32 %v2007, %v2613
      %v2615 = vrot.slane %v806, %v2614
      %v2616 = vsel %vm2012, %v2615, %v2611
      %v2617 = vlaneseq
      %v2618 = vshrl.u32 %v2617, 7
      %v2619 = vsub.s32 %v2014, %v2618
      %v2620 = vrot.slane %v809, %v2619
      %v2621 = vsel %vm2019, %v2620, %v2616
      %v2622 = vlaneseq
      %v2623 = vshrl.u32 %v2622, 7
      %v2624 = vsub.s32 %v2021, %v2623
      %v2625 = vrot.slane %v812, %v2624
      %v2626 = vsel %vm2026, %v2625, %v2621
      %v2627 = vlaneseq
      %v2628 = vshrl.u32 %v2627, 7
      %v2629 = vsub.s32 %v2028, %v2628
      %v2630 = vrot.slane %v815, %v2629
      %v2631 = vsel %vm2033, %v2630, %v2626
      %v2632 = vlaneseq
      %v2633 = vshrl.u32 %v2632, 7
      %v2634 = vsub.s32 %v206, %v2633
      %v2635 = vrot.slane %v818, %v2634
      %v2636 = vlaneseq
      %v2637 = vshrl.u32 %v2636, 7
      %v2638 = vsub.s32 %v1986, %v2637
      %v2639 = vrot.slane %v821, %v2638
      %v2640 = vsel %vm1991, %v2639, %v2635
      %v2641 = vlaneseq
      %v2642 = vshrl.u32 %v2641, 7
      %v2643 = vsub.s32 %v1993, %v2642
      %v2644 = vrot.slane %v824, %v2643
      %v2645 = vsel %vm1998, %v2644, %v2640
      %v2646 = vlaneseq
      %v2647 = vshrl.u32 %v2646, 7
      %v2648 = vsub.s32 %v2000, %v2647
      %v2649 = vrot.slane %v827, %v2648
      %v2650 = vsel %vm2005, %v2649, %v2645
      %v2651 = vlaneseq
      %v2652 = vshrl.u32 %v2651, 7
      %v2653 = vsub.s32 %v2007, %v2652
      %v2654 = vrot.slane %v830, %v2653
      %v2655 = vsel %vm2012, %v2654, %v2650
      %v2656 = vlaneseq
      %v2657 = vshrl.u32 %v2656, 7
      %v2658 = vsub.s32 %v2014, %v2657
      %v2659 = vrot.slane %v833, %v2658
      %v2660 = vsel %vm2019, %v2659, %v2655
      %v2661 = vlaneseq
      %v2662 = vshrl.u32 %v2661, 7
      %v2663 = vsub.s32 %v2021, %v2662
      %v2664 = vrot.slane %v836, %v2663
      %v2665 = vsel %vm2026, %v2664, %v2660
      %v2666 = vlaneseq
      %v2667 = vshrl.u32 %v2666, 7
      %v2668 = vsub.s32 %v2028, %v2667
      %v2669 = vrot.slane %v839, %v2668
      %v2670 = vsel %vm2033, %v2669, %v2665
      %v2671 = vlaneseq
      %v2672 = vshrl.u32 %v2671, 7
      %v2673 = vsub.s32 %v206, %v2672
      %v2674 = vrot.slane %v842, %v2673
      %v2675 = vlaneseq
      %v2676 = vshrl.u32 %v2675, 7
      %v2677 = vsub.s32 %v1986, %v2676
      %v2678 = vrot.slane %v845, %v2677
      %v2679 = vsel %vm1991, %v2678, %v2674
      %v2680 = vlaneseq
      %v2681 = vshrl.u32 %v2680, 7
      %v2682 = vsub.s32 %v1993, %v2681
      %v2683 = vrot.slane %v848, %v2682
      %v2684 = vsel %vm1998, %v2683, %v2679
      %v2685 = vlaneseq
      %v2686 = vshrl.u32 %v2685, 7
      %v2687 = vsub.s32 %v2000, %v2686
      %v2688 = vrot.slane %v851, %v2687
      %v2689 = vsel %vm2005, %v2688, %v2684
      %v2690 = vlaneseq
      %v2691 = vshrl.u32 %v2690, 7
      %v2692 = vsub.s32 %v2007, %v2691
      %v2693 = vrot.slane %v854, %v2692
      %v2694 = vsel %vm2012, %v2693, %v2689
      %v2695 = vlaneseq
      %v2696 = vshrl.u32 %v2695, 7
      %v2697 = vsub.s32 %v2014, %v2696
      %v2698 = vrot.slane %v857, %v2697
      %v2699 = vsel %vm2019, %v2698, %v2694
      %v2700 = vlaneseq
      %v2701 = vshrl.u32 %v2700, 7
      %v2702 = vsub.s32 %v2021, %v2701
      %v2703 = vrot.slane %v860, %v2702
      %v2704 = vsel %vm2026, %v2703, %v2699
      %v2705 = vlaneseq
      %v2706 = vshrl.u32 %v2705, 7
      %v2707 = vsub.s32 %v2028, %v2706
      %v2708 = vrot.slane %v863, %v2707
      %v2709 = vsel %vm2033, %v2708, %v2704
      %v2710 = vsel %vm2270, %v2475, %v2475
      %v2711 = vsel %vm2272, %v2475, %v2710
      %v2712 = vsel %vm2274, %v2475, %v2711
      %v2713 = vsel %vm2276, %v2475, %v2712
      %v2714 = vsel %vm2278, %v2475, %v2713
      %v2715 = vsel %vm2280, %v2475, %v2714
      %v2716 = vsel %vm2270, %v2514, %v2514
      %v2717 = vsel %vm2272, %v2514, %v2716
      %v2718 = vsel %vm2274, %v2514, %v2717
      %v2719 = vsel %vm2276, %v2514, %v2718
      %v2720 = vsel %vm2278, %v2514, %v2719
      %v2721 = vsel %vm2280, %v2514, %v2720
      %v2722 = vsel %vm2270, %v2553, %v2553
      %v2723 = vsel %vm2272, %v2553, %v2722
      %v2724 = vsel %vm2274, %v2553, %v2723
      %v2725 = vsel %vm2276, %v2553, %v2724
      %v2726 = vsel %vm2278, %v2553, %v2725
      %v2727 = vsel %vm2280, %v2553, %v2726
      %v2728 = vsel %vm2270, %v2592, %v2592
      %v2729 = vsel %vm2272, %v2592, %v2728
      %v2730 = vsel %vm2274, %v2592, %v2729
      %v2731 = vsel %vm2276, %v2592, %v2730
      %v2732 = vsel %vm2278, %v2592, %v2731
      %v2733 = vsel %vm2280, %v2592, %v2732
      %v2734 = vsel %vm2270, %v2631, %v2631
      %v2735 = vsel %vm2272, %v2631, %v2734
      %v2736 = vsel %vm2274, %v2631, %v2735
      %v2737 = vsel %vm2276, %v2631, %v2736
      %v2738 = vsel %vm2278, %v2631, %v2737
      %v2739 = vsel %vm2280, %v2631, %v2738
      %v2740 = vsel %vm2270, %v2670, %v2670
      %v2741 = vsel %vm2272, %v2670, %v2740
      %v2742 = vsel %vm2274, %v2670, %v2741
      %v2743 = vsel %vm2276, %v2670, %v2742
      %v2744 = vsel %vm2278, %v2670, %v2743
      %v2745 = vsel %vm2280, %v2670, %v2744
      %v2746 = vsel %vm2270, %v2709, %v2709
      %v2747 = vsel %vm2272, %v2709, %v2746
      %v2748 = vsel %vm2274, %v2709, %v2747
      %v2749 = vsel %vm2276, %v2709, %v2748
      %v2750 = vsel %vm2278, %v2709, %v2749
      %v2751 = vsel %vm2280, %v2709, %v2750
      %v2759 = vmax.f32 %v698, %v2715
      %v2760 = vmax.f32 %v701, %v2715
      %v2761 = vmax.f32 %v704, %v2715
      %v2762 = vmax.f32 %v707, %v2715
      %v2763 = vmax.f32 %v710, %v2715
      %v2764 = vmax.f32 %v713, %v2715
      %v2765 = vmax.f32 %v716, %v2715
      %v2766 = vmax.f32 %v719, %v2715
      %v2767 = vmax.f32 %v722, %v2721
      %v2768 = vmax.f32 %v725, %v2721
      %v2769 = vmax.f32 %v728, %v2721
      %v2770 = vmax.f32 %v731, %v2721
      %v2771 = vmax.f32 %v734, %v2721
      %v2772 = vmax.f32 %v737, %v2721
      %v2773 = vmax.f32 %v740, %v2721
      %v2774 = vmax.f32 %v743, %v2721
      %v2775 = vmax.f32 %v746, %v2727
      %v2776 = vmax.f32 %v749, %v2727
      %v2777 = vmax.f32 %v752, %v2727
      %v2778 = vmax.f32 %v755, %v2727
      %v2779 = vmax.f32 %v758, %v2727
      %v2780 = vmax.f32 %v761, %v2727
      %v2781 = vmax.f32 %v764, %v2727
      %v2782 = vmax.f32 %v767, %v2727
      %v2783 = vmax.f32 %v770, %v2733
      %v2784 = vmax.f32 %v773, %v2733
      %v2785 = vmax.f32 %v776, %v2733
      %v2786 = vmax.f32 %v779, %v2733
      %v2787 = vmax.f32 %v782, %v2733
      %v2788 = vmax.f32 %v785, %v2733
      %v2789 = vmax.f32 %v788, %v2733
      %v2790 = vmax.f32 %v791, %v2733
      %v2791 = vmax.f32 %v794, %v2739
      %v2792 = vmax.f32 %v797, %v2739
      %v2793 = vmax.f32 %v800, %v2739
      %v2794 = vmax.f32 %v803, %v2739
      %v2795 = vmax.f32 %v806, %v2739
      %v2796 = vmax.f32 %v809, %v2739
      %v2797 = vmax.f32 %v812, %v2739
      %v2798 = vmax.f32 %v815, %v2739
      %v2799 = vmax.f32 %v818, %v2745
      %v2800 = vmax.f32 %v821, %v2745
      %v2801 = vmax.f32 %v824, %v2745
      %v2802 = vmax.f32 %v827, %v2745
      %v2803 = vmax.f32 %v830, %v2745
      %v2804 = vmax.f32 %v833, %v2745
      %v2805 = vmax.f32 %v836, %v2745
      %v2806 = vmax.f32 %v839, %v2745
      %v2807 = vmax.f32 %v842, %v2751
      %v2808 = vmax.f32 %v845, %v2751
      %v2809 = vmax.f32 %v848, %v2751
      %v2810 = vmax.f32 %v851, %v2751
      %v2811 = vmax.f32 %v854, %v2751
      %v2812 = vmax.f32 %v857, %v2751
      %v2813 = vmax.f32 %v860, %v2751
      %v2814 = vmax.f32 %v863, %v2751
      %v2815 = vsub.f32 %v2325, %v2759
      %v2816 = vsub.f32 %v2326, %v2760
      %v2817 = vsub.f32 %v2327, %v2761
      %v2818 = vsub.f32 %v2328, %v2762
      %v2819 = vsub.f32 %v2329, %v2763
      %v2820 = vsub.f32 %v2330, %v2764
      %v2821 = vsub.f32 %v2331, %v2765
      %v2822 = vsub.f32 %v2332, %v2766
      %v2823 = vsub.f32 %v2333, %v2767
      %v2824 = vsub.f32 %v2334, %v2768
      %v2825 = vsub.f32 %v2335, %v2769
      %v2826 = vsub.f32 %v2336, %v2770
      %v2827 = vsub.f32 %v2337, %v2771
      %v2828 = vsub.f32 %v2338, %v2772
      %v2829 = vsub.f32 %v2339, %v2773
      %v2830 = vsub.f32 %v2340, %v2774
      %v2831 = vsub.f32 %v2341, %v2775
      %v2832 = vsub.f32 %v2342, %v2776
      %v2833 = vsub.f32 %v2343, %v2777
      %v2834 = vsub.f32 %v2344, %v2778
      %v2835 = vsub.f32 %v2345, %v2779
      %v2836 = vsub.f32 %v2346, %v2780
      %v2837 = vsub.f32 %v2347, %v2781
      %v2838 = vsub.f32 %v2348, %v2782
      %v2839 = vsub.f32 %v2349, %v2783
      %v2840 = vsub.f32 %v2350, %v2784
      %v2841 = vsub.f32 %v2351, %v2785
      %v2842 = vsub.f32 %v2352, %v2786
      %v2843 = vsub.f32 %v2353, %v2787
      %v2844 = vsub.f32 %v2354, %v2788
      %v2845 = vsub.f32 %v2355, %v2789
      %v2846 = vsub.f32 %v2356, %v2790
      %v2847 = vsub.f32 %v2357, %v2791
      %v2848 = vsub.f32 %v2358, %v2792
      %v2849 = vsub.f32 %v2359, %v2793
      %v2850 = vsub.f32 %v2360, %v2794
      %v2851 = vsub.f32 %v2361, %v2795
      %v2852 = vsub.f32 %v2362, %v2796
      %v2853 = vsub.f32 %v2363, %v2797
      %v2854 = vsub.f32 %v2364, %v2798
      %v2855 = vsub.f32 %v2365, %v2799
      %v2856 = vsub.f32 %v2366, %v2800
      %v2857 = vsub.f32 %v2367, %v2801
      %v2858 = vsub.f32 %v2368, %v2802
      %v2859 = vsub.f32 %v2369, %v2803
      %v2860 = vsub.f32 %v2370, %v2804
      %v2861 = vsub.f32 %v2371, %v2805
      %v2862 = vsub.f32 %v2372, %v2806
      %v2863 = vsub.f32 %v2373, %v2807
      %v2864 = vsub.f32 %v2374, %v2808
      %v2865 = vsub.f32 %v2375, %v2809
      %v2866 = vsub.f32 %v2376, %v2810
      %v2867 = vsub.f32 %v2377, %v2811
      %v2868 = vsub.f32 %v2378, %v2812
      %v2869 = vsub.f32 %v2379, %v2813
      %v2870 = vsub.f32 %v2380, %v2814
      %v2871 = vmax.f32 %v2815, 0.0
      %v2872 = vmax.f32 %v2816, 0.0
      %v2873 = vmax.f32 %v2817, 0.0
      %v2874 = vmax.f32 %v2818, 0.0
      %v2875 = vmax.f32 %v2819, 0.0
      %v2876 = vmax.f32 %v2820, 0.0
      %v2877 = vmax.f32 %v2821, 0.0
      %v2878 = vmax.f32 %v2822, 0.0
      %v2879 = vmax.f32 %v2823, 0.0
      %v2880 = vmax.f32 %v2824, 0.0
      %v2881 = vmax.f32 %v2825, 0.0
      %v2882 = vmax.f32 %v2826, 0.0
      %v2883 = vmax.f32 %v2827, 0.0
      %v2884 = vmax.f32 %v2828, 0.0
      %v2885 = vmax.f32 %v2829, 0.0
      %v2886 = vmax.f32 %v2830, 0.0
      %v2887 = vmax.f32 %v2831, 0.0
      %v2888 = vmax.f32 %v2832, 0.0
      %v2889 = vmax.f32 %v2833, 0.0
      %v2890 = vmax.f32 %v2834, 0.0
      %v2891 = vmax.f32 %v2835, 0.0
      %v2892 = vmax.f32 %v2836, 0.0
      %v2893 = vmax.f32 %v2837, 0.0
      %v2894 = vmax.f32 %v2838, 0.0
      %v2895 = vmax.f32 %v2839, 0.0
      %v2896 = vmax.f32 %v2840, 0.0
      %v2897 = vmax.f32 %v2841, 0.0
      %v2898 = vmax.f32 %v2842, 0.0
      %v2899 = vmax.f32 %v2843, 0.0
      %v2900 = vmax.f32 %v2844, 0.0
      %v2901 = vmax.f32 %v2845, 0.0
      %v2902 = vmax.f32 %v2846, 0.0
      %v2903 = vmax.f32 %v2847, 0.0
      %v2904 = vmax.f32 %v2848, 0.0
      %v2905 = vmax.f32 %v2849, 0.0
      %v2906 = vmax.f32 %v2850, 0.0
      %v2907 = vmax.f32 %v2851, 0.0
      %v2908 = vmax.f32 %v2852, 0.0
      %v2909 = vmax.f32 %v2853, 0.0
      %v2910 = vmax.f32 %v2854, 0.0
      %v2911 = vmax.f32 %v2855, 0.0
      %v2912 = vmax.f32 %v2856, 0.0
      %v2913 = vmax.f32 %v2857, 0.0
      %v2914 = vmax.f32 %v2858, 0.0
      %v2915 = vmax.f32 %v2859, 0.0
      %v2916 = vmax.f32 %v2860, 0.0
      %v2917 = vmax.f32 %v2861, 0.0
      %v2918 = vmax.f32 %v2862, 0.0
      %v2919 = vmax.f32 %v2863, 0.0
      %v2920 = vmax.f32 %v2864, 0.0
      %v2921 = vmax.f32 %v2865, 0.0
      %v2922 = vmax.f32 %v2866, 0.0
      %v2923 = vmax.f32 %v2867, 0.0
      %v2924 = vmax.f32 %v2868, 0.0
      %v2925 = vmax.f32 %v2869, 0.0
      %v2926 = vmax.f32 %v2870, 0.0
      %v2983 = vlaneseq
      %v2984 = vshrl.u32 %v2983, 7
      %v2985 = vsub.s32 %v206, %v2984
      %v2986 = vrot.slane %v1592, %v2985
      %v2987 = vlaneseq
      %v2988 = vshrl.u32 %v2987, 7
      %v2989 = vsub.s32 %v1986, %v2988
      %v2990 = vrot.slane %v1595, %v2989
      %v2991 = vsel %vm1991, %v2990, %v2986
      %v2992 = vlaneseq
      %v2993 = vshrl.u32 %v2992, 7
      %v2994 = vsub.s32 %v1993, %v2993
      %v2995 = vrot.slane %v1598, %v2994
      %v2996 = vsel %vm1998, %v2995, %v2991
      %v2997 = vlaneseq
      %v2998 = vshrl.u32 %v2997, 7
      %v2999 = vsub.s32 %v2000, %v2998
      %v3000 = vrot.slane %v1601, %v2999
      %v3001 = vsel %vm2005, %v3000, %v2996
      %v3002 = vlaneseq
      %v3003 = vshrl.u32 %v3002, 7
      %v3004 = vsub.s32 %v2007, %v3003
      %v3005 = vrot.slane %v1604, %v3004
      %v3006 = vsel %vm2012, %v3005, %v3001
      %v3007 = vlaneseq
      %v3008 = vshrl.u32 %v3007, 7
      %v3009 = vsub.s32 %v2014, %v3008
      %v3010 = vrot.slane %v1607, %v3009
      %v3011 = vsel %vm2019, %v3010, %v3006
      %v3012 = vlaneseq
      %v3013 = vshrl.u32 %v3012, 7
      %v3014 = vsub.s32 %v2021, %v3013
      %v3015 = vrot.slane %v1610, %v3014
      %v3016 = vsel %vm2026, %v3015, %v3011
      %v3017 = vlaneseq
      %v3018 = vshrl.u32 %v3017, 7
      %v3019 = vsub.s32 %v2028, %v3018
      %v3020 = vrot.slane %v1613, %v3019
      %v3021 = vsel %vm2033, %v3020, %v3016
      %v3022 = vlaneseq
      %v3023 = vshrl.u32 %v3022, 7
      %v3024 = vsub.s32 %v206, %v3023
      %v3025 = vrot.slane %v1616, %v3024
      %v3026 = vlaneseq
      %v3027 = vshrl.u32 %v3026, 7
      %v3028 = vsub.s32 %v1986, %v3027
      %v3029 = vrot.slane %v1619, %v3028
      %v3030 = vsel %vm1991, %v3029, %v3025
      %v3031 = vlaneseq
      %v3032 = vshrl.u32 %v3031, 7
      %v3033 = vsub.s32 %v1993, %v3032
      %v3034 = vrot.slane %v1622, %v3033
      %v3035 = vsel %vm1998, %v3034, %v3030
      %v3036 = vlaneseq
      %v3037 = vshrl.u32 %v3036, 7
      %v3038 = vsub.s32 %v2000, %v3037
      %v3039 = vrot.slane %v1625, %v3038
      %v3040 = vsel %vm2005, %v3039, %v3035
      %v3041 = vlaneseq
      %v3042 = vshrl.u32 %v3041, 7
      %v3043 = vsub.s32 %v2007, %v3042
      %v3044 = vrot.slane %v1628, %v3043
      %v3045 = vsel %vm2012, %v3044, %v3040
      %v3046 = vlaneseq
      %v3047 = vshrl.u32 %v3046, 7
      %v3048 = vsub.s32 %v2014, %v3047
      %v3049 = vrot.slane %v1631, %v3048
      %v3050 = vsel %vm2019, %v3049, %v3045
      %v3051 = vlaneseq
      %v3052 = vshrl.u32 %v3051, 7
      %v3053 = vsub.s32 %v2021, %v3052
      %v3054 = vrot.slane %v1634, %v3053
      %v3055 = vsel %vm2026, %v3054, %v3050
      %v3056 = vlaneseq
      %v3057 = vshrl.u32 %v3056, 7
      %v3058 = vsub.s32 %v2028, %v3057
      %v3059 = vrot.slane %v1637, %v3058
      %v3060 = vsel %vm2033, %v3059, %v3055
      %v3061 = vlaneseq
      %v3062 = vshrl.u32 %v3061, 7
      %v3063 = vsub.s32 %v206, %v3062
      %v3064 = vrot.slane %v1640, %v3063
      %v3065 = vlaneseq
      %v3066 = vshrl.u32 %v3065, 7
      %v3067 = vsub.s32 %v1986, %v3066
      %v3068 = vrot.slane %v1643, %v3067
      %v3069 = vsel %vm1991, %v3068, %v3064
      %v3070 = vlaneseq
      %v3071 = vshrl.u32 %v3070, 7
      %v3072 = vsub.s32 %v1993, %v3071
      %v3073 = vrot.slane %v1646, %v3072
      %v3074 = vsel %vm1998, %v3073, %v3069
      %v3075 = vlaneseq
      %v3076 = vshrl.u32 %v3075, 7
      %v3077 = vsub.s32 %v2000, %v3076
      %v3078 = vrot.slane %v1649, %v3077
      %v3079 = vsel %vm2005, %v3078, %v3074
      %v3080 = vlaneseq
      %v3081 = vshrl.u32 %v3080, 7
      %v3082 = vsub.s32 %v2007, %v3081
      %v3083 = vrot.slane %v1652, %v3082
      %v3084 = vsel %vm2012, %v3083, %v3079
      %v3085 = vlaneseq
      %v3086 = vshrl.u32 %v3085, 7
      %v3087 = vsub.s32 %v2014, %v3086
      %v3088 = vrot.slane %v1655, %v3087
      %v3089 = vsel %vm2019, %v3088, %v3084
      %v3090 = vlaneseq
      %v3091 = vshrl.u32 %v3090, 7
      %v3092 = vsub.s32 %v2021, %v3091
      %v3093 = vrot.slane %v1658, %v3092
      %v3094 = vsel %vm2026, %v3093, %v3089
      %v3095 = vlaneseq
      %v3096 = vshrl.u32 %v3095, 7
      %v3097 = vsub.s32 %v2028, %v3096
      %v3098 = vrot.slane %v1661, %v3097
      %v3099 = vsel %vm2033, %v3098, %v3094
      %v3100 = vlaneseq
      %v3101 = vshrl.u32 %v3100, 7
      %v3102 = vsub.s32 %v206, %v3101
      %v3103 = vrot.slane %v1664, %v3102
      %v3104 = vlaneseq
      %v3105 = vshrl.u32 %v3104, 7
      %v3106 = vsub.s32 %v1986, %v3105
      %v3107 = vrot.slane %v1667, %v3106
      %v3108 = vsel %vm1991, %v3107, %v3103
      %v3109 = vlaneseq
      %v3110 = vshrl.u32 %v3109, 7
      %v3111 = vsub.s32 %v1993, %v3110
      %v3112 = vrot.slane %v1670, %v3111
      %v3113 = vsel %vm1998, %v3112, %v3108
      %v3114 = vlaneseq
      %v3115 = vshrl.u32 %v3114, 7
      %v3116 = vsub.s32 %v2000, %v3115
      %v3117 = vrot.slane %v1673, %v3116
      %v3118 = vsel %vm2005, %v3117, %v3113
      %v3119 = vlaneseq
      %v3120 = vshrl.u32 %v3119, 7
      %v3121 = vsub.s32 %v2007, %v3120
      %v3122 = vrot.slane %v1676, %v3121
      %v3123 = vsel %vm2012, %v3122, %v3118
      %v3124 = vlaneseq
      %v3125 = vshrl.u32 %v3124, 7
      %v3126 = vsub.s32 %v2014, %v3125
      %v3127 = vrot.slane %v1679, %v3126
      %v3128 = vsel %vm2019, %v3127, %v3123
      %v3129 = vlaneseq
      %v3130 = vshrl.u32 %v3129, 7
      %v3131 = vsub.s32 %v2021, %v3130
      %v3132 = vrot.slane %v1682, %v3131
      %v3133 = vsel %vm2026, %v3132, %v3128
      %v3134 = vlaneseq
      %v3135 = vshrl.u32 %v3134, 7
      %v3136 = vsub.s32 %v2028, %v3135
      %v3137 = vrot.slane %v1685, %v3136
      %v3138 = vsel %vm2033, %v3137, %v3133
      %v3139 = vlaneseq
      %v3140 = vshrl.u32 %v3139, 7
      %v3141 = vsub.s32 %v206, %v3140
      %v3142 = vrot.slane %v1688, %v3141
      %v3143 = vlaneseq
      %v3144 = vshrl.u32 %v3143, 7
      %v3145 = vsub.s32 %v1986, %v3144
      %v3146 = vrot.slane %v1691, %v3145
      %v3147 = vsel %vm1991, %v3146, %v3142
      %v3148 = vlaneseq
      %v3149 = vshrl.u32 %v3148, 7
      %v3150 = vsub.s32 %v1993, %v3149
      %v3151 = vrot.slane %v1694, %v3150
      %v3152 = vsel %vm1998, %v3151, %v3147
      %v3153 = vlaneseq
      %v3154 = vshrl.u32 %v3153, 7
      %v3155 = vsub.s32 %v2000, %v3154
      %v3156 = vrot.slane %v1697, %v3155
      %v3157 = vsel %vm2005, %v3156, %v3152
      %v3158 = vlaneseq
      %v3159 = vshrl.u32 %v3158, 7
      %v3160 = vsub.s32 %v2007, %v3159
      %v3161 = vrot.slane %v1700, %v3160
      %v3162 = vsel %vm2012, %v3161, %v3157
      %v3163 = vlaneseq
      %v3164 = vshrl.u32 %v3163, 7
      %v3165 = vsub.s32 %v2014, %v3164
      %v3166 = vrot.slane %v1703, %v3165
      %v3167 = vsel %vm2019, %v3166, %v3162
      %v3168 = vlaneseq
      %v3169 = vshrl.u32 %v3168, 7
      %v3170 = vsub.s32 %v2021, %v3169
      %v3171 = vrot.slane %v1706, %v3170
      %v3172 = vsel %vm2026, %v3171, %v3167
      %v3173 = vlaneseq
      %v3174 = vshrl.u32 %v3173, 7
      %v3175 = vsub.s32 %v2028, %v3174
      %v3176 = vrot.slane %v1709, %v3175
      %v3177 = vsel %vm2033, %v3176, %v3172
      %v3178 = vlaneseq
      %v3179 = vshrl.u32 %v3178, 7
      %v3180 = vsub.s32 %v206, %v3179
      %v3181 = vrot.slane %v1712, %v3180
      %v3182 = vlaneseq
      %v3183 = vshrl.u32 %v3182, 7
      %v3184 = vsub.s32 %v1986, %v3183
      %v3185 = vrot.slane %v1715, %v3184
      %v3186 = vsel %vm1991, %v3185, %v3181
      %v3187 = vlaneseq
      %v3188 = vshrl.u32 %v3187, 7
      %v3189 = vsub.s32 %v1993, %v3188
      %v3190 = vrot.slane %v1718, %v3189
      %v3191 = vsel %vm1998, %v3190, %v3186
      %v3192 = vlaneseq
      %v3193 = vshrl.u32 %v3192, 7
      %v3194 = vsub.s32 %v2000, %v3193
      %v3195 = vrot.slane %v1721, %v3194
      %v3196 = vsel %vm2005, %v3195, %v3191
      %v3197 = vlaneseq
      %v3198 = vshrl.u32 %v3197, 7
      %v3199 = vsub.s32 %v2007, %v3198
      %v3200 = vrot.slane %v1724, %v3199
      %v3201 = vsel %vm2012, %v3200, %v3196
      %v3202 = vlaneseq
      %v3203 = vshrl.u32 %v3202, 7
      %v3204 = vsub.s32 %v2014, %v3203
      %v3205 = vrot.slane %v1727, %v3204
      %v3206 = vsel %vm2019, %v3205, %v3201
      %v3207 = vlaneseq
      %v3208 = vshrl.u32 %v3207, 7
      %v3209 = vsub.s32 %v2021, %v3208
      %v3210 = vrot.slane %v1730, %v3209
      %v3211 = vsel %vm2026, %v3210, %v3206
      %v3212 = vlaneseq
      %v3213 = vshrl.u32 %v3212, 7
      %v3214 = vsub.s32 %v2028, %v3213
      %v3215 = vrot.slane %v1733, %v3214
      %v3216 = vsel %vm2033, %v3215, %v3211
      %v3217 = vlaneseq
      %v3218 = vshrl.u32 %v3217, 7
      %v3219 = vsub.s32 %v206, %v3218
      %v3220 = vrot.slane %v1736, %v3219
      %v3221 = vlaneseq
      %v3222 = vshrl.u32 %v3221, 7
      %v3223 = vsub.s32 %v1986, %v3222
      %v3224 = vrot.slane %v1739, %v3223
      %v3225 = vsel %vm1991, %v3224, %v3220
      %v3226 = vlaneseq
      %v3227 = vshrl.u32 %v3226, 7
      %v3228 = vsub.s32 %v1993, %v3227
      %v3229 = vrot.slane %v1742, %v3228
      %v3230 = vsel %vm1998, %v3229, %v3225
      %v3231 = vlaneseq
      %v3232 = vshrl.u32 %v3231, 7
      %v3233 = vsub.s32 %v2000, %v3232
      %v3234 = vrot.slane %v1745, %v3233
      %v3235 = vsel %vm2005, %v3234, %v3230
      %v3236 = vlaneseq
      %v3237 = vshrl.u32 %v3236, 7
      %v3238 = vsub.s32 %v2007, %v3237
      %v3239 = vrot.slane %v1748, %v3238
      %v3240 = vsel %vm2012, %v3239, %v3235
      %v3241 = vlaneseq
      %v3242 = vshrl.u32 %v3241, 7
      %v3243 = vsub.s32 %v2014, %v3242
      %v3244 = vrot.slane %v1751, %v3243
      %v3245 = vsel %vm2019, %v3244, %v3240
      %v3246 = vlaneseq
      %v3247 = vshrl.u32 %v3246, 7
      %v3248 = vsub.s32 %v2021, %v3247
      %v3249 = vrot.slane %v1754, %v3248
      %v3250 = vsel %vm2026, %v3249, %v3245
      %v3251 = vlaneseq
      %v3252 = vshrl.u32 %v3251, 7
      %v3253 = vsub.s32 %v2028, %v3252
      %v3254 = vrot.slane %v1757, %v3253
      %v3255 = vsel %vm2033, %v3254, %v3250
      %v3256 = vsel %vm2270, %v3021, %v3021
      %v3257 = vsel %vm2272, %v3021, %v3256
      %v3258 = vsel %vm2274, %v3021, %v3257
      %v3259 = vsel %vm2276, %v3021, %v3258
      %v3260 = vsel %vm2278, %v3021, %v3259
      %v3261 = vsel %vm2280, %v3021, %v3260
      %v3262 = vsel %vm2270, %v3060, %v3060
      %v3263 = vsel %vm2272, %v3060, %v3262
      %v3264 = vsel %vm2274, %v3060, %v3263
      %v3265 = vsel %vm2276, %v3060, %v3264
      %v3266 = vsel %vm2278, %v3060, %v3265
      %v3267 = vsel %vm2280, %v3060, %v3266
      %v3268 = vsel %vm2270, %v3099, %v3099
      %v3269 = vsel %vm2272, %v3099, %v3268
      %v3270 = vsel %vm2274, %v3099, %v3269
      %v3271 = vsel %vm2276, %v3099, %v3270
      %v3272 = vsel %vm2278, %v3099, %v3271
      %v3273 = vsel %vm2280, %v3099, %v3272
      %v3274 = vsel %vm2270, %v3138, %v3138
      %v3275 = vsel %vm2272, %v3138, %v3274
      %v3276 = vsel %vm2274, %v3138, %v3275
      %v3277 = vsel %vm2276, %v3138, %v3276
      %v3278 = vsel %vm2278, %v3138, %v3277
      %v3279 = vsel %vm2280, %v3138, %v3278
      %v3280 = vsel %vm2270, %v3177, %v3177
      %v3281 = vsel %vm2272, %v3177, %v3280
      %v3282 = vsel %vm2274, %v3177, %v3281
      %v3283 = vsel %vm2276, %v3177, %v3282
      %v3284 = vsel %vm2278, %v3177, %v3283
      %v3285 = vsel %vm2280, %v3177, %v3284
      %v3286 = vsel %vm2270, %v3216, %v3216
      %v3287 = vsel %vm2272, %v3216, %v3286
      %v3288 = vsel %vm2274, %v3216, %v3287
      %v3289 = vsel %vm2276, %v3216, %v3288
      %v3290 = vsel %vm2278, %v3216, %v3289
      %v3291 = vsel %vm2280, %v3216, %v3290
      %v3292 = vsel %vm2270, %v3255, %v3255
      %v3293 = vsel %vm2272, %v3255, %v3292
      %v3294 = vsel %vm2274, %v3255, %v3293
      %v3295 = vsel %vm2276, %v3255, %v3294
      %v3296 = vsel %vm2278, %v3255, %v3295
      %v3297 = vsel %vm2280, %v3255, %v3296
      %v3305 = vmin.f32 %v1592, %v3261
      %v3306 = vmin.f32 %v1595, %v3261
      %v3307 = vmin.f32 %v1598, %v3261
      %v3308 = vmin.f32 %v1601, %v3261
      %v3309 = vmin.f32 %v1604, %v3261
      %v3310 = vmin.f32 %v1607, %v3261
      %v3311 = vmin.f32 %v1610, %v3261
      %v3312 = vmin.f32 %v1613, %v3261
      %v3313 = vmin.f32 %v1616, %v3267
      %v3314 = vmin.f32 %v1619, %v3267
      %v3315 = vmin.f32 %v1622, %v3267
      %v3316 = vmin.f32 %v1625, %v3267
      %v3317 = vmin.f32 %v1628, %v3267
      %v3318 = vmin.f32 %v1631, %v3267
      %v3319 = vmin.f32 %v1634, %v3267
      %v3320 = vmin.f32 %v1637, %v3267
      %v3321 = vmin.f32 %v1640, %v3273
      %v3322 = vmin.f32 %v1643, %v3273
      %v3323 = vmin.f32 %v1646, %v3273
      %v3324 = vmin.f32 %v1649, %v3273
      %v3325 = vmin.f32 %v1652, %v3273
      %v3326 = vmin.f32 %v1655, %v3273
      %v3327 = vmin.f32 %v1658, %v3273
      %v3328 = vmin.f32 %v1661, %v3273
      %v3329 = vmin.f32 %v1664, %v3279
      %v3330 = vmin.f32 %v1667, %v3279
      %v3331 = vmin.f32 %v1670, %v3279
      %v3332 = vmin.f32 %v1673, %v3279
      %v3333 = vmin.f32 %v1676, %v3279
      %v3334 = vmin.f32 %v1679, %v3279
      %v3335 = vmin.f32 %v1682, %v3279
      %v3336 = vmin.f32 %v1685, %v3279
      %v3337 = vmin.f32 %v1688, %v3285
      %v3338 = vmin.f32 %v1691, %v3285
      %v3339 = vmin.f32 %v1694, %v3285
      %v3340 = vmin.f32 %v1697, %v3285
      %v3341 = vmin.f32 %v1700, %v3285
      %v3342 = vmin.f32 %v1703, %v3285
      %v3343 = vmin.f32 %v1706, %v3285
      %v3344 = vmin.f32 %v1709, %v3285
      %v3345 = vmin.f32 %v1712, %v3291
      %v3346 = vmin.f32 %v1715, %v3291
      %v3347 = vmin.f32 %v1718, %v3291
      %v3348 = vmin.f32 %v1721, %v3291
      %v3349 = vmin.f32 %v1724, %v3291
      %v3350 = vmin.f32 %v1727, %v3291
      %v3351 = vmin.f32 %v1730, %v3291
      %v3352 = vmin.f32 %v1733, %v3291
      %v3353 = vmin.f32 %v1736, %v3297
      %v3354 = vmin.f32 %v1739, %v3297
      %v3355 = vmin.f32 %v1742, %v3297
      %v3356 = vmin.f32 %v1745, %v3297
      %v3357 = vmin.f32 %v1748, %v3297
      %v3358 = vmin.f32 %v1751, %v3297
      %v3359 = vmin.f32 %v1754, %v3297
      %v3360 = vmin.f32 %v1757, %v3297
      %v3417 = vlaneseq
      %v3418 = vshrl.u32 %v3417, 7
      %v3419 = vsub.s32 %v206, %v3418
      %v3420 = vrot.slane %v996, %v3419
      %v3421 = vlaneseq
      %v3422 = vshrl.u32 %v3421, 7
      %v3423 = vsub.s32 %v1986, %v3422
      %v3424 = vrot.slane %v999, %v3423
      %v3425 = vsel %vm1991, %v3424, %v3420
      %v3426 = vlaneseq
      %v3427 = vshrl.u32 %v3426, 7
      %v3428 = vsub.s32 %v1993, %v3427
      %v3429 = vrot.slane %v1002, %v3428
      %v3430 = vsel %vm1998, %v3429, %v3425
      %v3431 = vlaneseq
      %v3432 = vshrl.u32 %v3431, 7
      %v3433 = vsub.s32 %v2000, %v3432
      %v3434 = vrot.slane %v1005, %v3433
      %v3435 = vsel %vm2005, %v3434, %v3430
      %v3436 = vlaneseq
      %v3437 = vshrl.u32 %v3436, 7
      %v3438 = vsub.s32 %v2007, %v3437
      %v3439 = vrot.slane %v1008, %v3438
      %v3440 = vsel %vm2012, %v3439, %v3435
      %v3441 = vlaneseq
      %v3442 = vshrl.u32 %v3441, 7
      %v3443 = vsub.s32 %v2014, %v3442
      %v3444 = vrot.slane %v1011, %v3443
      %v3445 = vsel %vm2019, %v3444, %v3440
      %v3446 = vlaneseq
      %v3447 = vshrl.u32 %v3446, 7
      %v3448 = vsub.s32 %v2021, %v3447
      %v3449 = vrot.slane %v1014, %v3448
      %v3450 = vsel %vm2026, %v3449, %v3445
      %v3451 = vlaneseq
      %v3452 = vshrl.u32 %v3451, 7
      %v3453 = vsub.s32 %v2028, %v3452
      %v3454 = vrot.slane %v1017, %v3453
      %v3455 = vsel %vm2033, %v3454, %v3450
      %v3456 = vlaneseq
      %v3457 = vshrl.u32 %v3456, 7
      %v3458 = vsub.s32 %v206, %v3457
      %v3459 = vrot.slane %v1020, %v3458
      %v3460 = vlaneseq
      %v3461 = vshrl.u32 %v3460, 7
      %v3462 = vsub.s32 %v1986, %v3461
      %v3463 = vrot.slane %v1023, %v3462
      %v3464 = vsel %vm1991, %v3463, %v3459
      %v3465 = vlaneseq
      %v3466 = vshrl.u32 %v3465, 7
      %v3467 = vsub.s32 %v1993, %v3466
      %v3468 = vrot.slane %v1026, %v3467
      %v3469 = vsel %vm1998, %v3468, %v3464
      %v3470 = vlaneseq
      %v3471 = vshrl.u32 %v3470, 7
      %v3472 = vsub.s32 %v2000, %v3471
      %v3473 = vrot.slane %v1029, %v3472
      %v3474 = vsel %vm2005, %v3473, %v3469
      %v3475 = vlaneseq
      %v3476 = vshrl.u32 %v3475, 7
      %v3477 = vsub.s32 %v2007, %v3476
      %v3478 = vrot.slane %v1032, %v3477
      %v3479 = vsel %vm2012, %v3478, %v3474
      %v3480 = vlaneseq
      %v3481 = vshrl.u32 %v3480, 7
      %v3482 = vsub.s32 %v2014, %v3481
      %v3483 = vrot.slane %v1035, %v3482
      %v3484 = vsel %vm2019, %v3483, %v3479
      %v3485 = vlaneseq
      %v3486 = vshrl.u32 %v3485, 7
      %v3487 = vsub.s32 %v2021, %v3486
      %v3488 = vrot.slane %v1038, %v3487
      %v3489 = vsel %vm2026, %v3488, %v3484
      %v3490 = vlaneseq
      %v3491 = vshrl.u32 %v3490, 7
      %v3492 = vsub.s32 %v2028, %v3491
      %v3493 = vrot.slane %v1041, %v3492
      %v3494 = vsel %vm2033, %v3493, %v3489
      %v3495 = vlaneseq
      %v3496 = vshrl.u32 %v3495, 7
      %v3497 = vsub.s32 %v206, %v3496
      %v3498 = vrot.slane %v1044, %v3497
      %v3499 = vlaneseq
      %v3500 = vshrl.u32 %v3499, 7
      %v3501 = vsub.s32 %v1986, %v3500
      %v3502 = vrot.slane %v1047, %v3501
      %v3503 = vsel %vm1991, %v3502, %v3498
      %v3504 = vlaneseq
      %v3505 = vshrl.u32 %v3504, 7
      %v3506 = vsub.s32 %v1993, %v3505
      %v3507 = vrot.slane %v1050, %v3506
      %v3508 = vsel %vm1998, %v3507, %v3503
      %v3509 = vlaneseq
      %v3510 = vshrl.u32 %v3509, 7
      %v3511 = vsub.s32 %v2000, %v3510
      %v3512 = vrot.slane %v1053, %v3511
      %v3513 = vsel %vm2005, %v3512, %v3508
      %v3514 = vlaneseq
      %v3515 = vshrl.u32 %v3514, 7
      %v3516 = vsub.s32 %v2007, %v3515
      %v3517 = vrot.slane %v1056, %v3516
      %v3518 = vsel %vm2012, %v3517, %v3513
      %v3519 = vlaneseq
      %v3520 = vshrl.u32 %v3519, 7
      %v3521 = vsub.s32 %v2014, %v3520
      %v3522 = vrot.slane %v1059, %v3521
      %v3523 = vsel %vm2019, %v3522, %v3518
      %v3524 = vlaneseq
      %v3525 = vshrl.u32 %v3524, 7
      %v3526 = vsub.s32 %v2021, %v3525
      %v3527 = vrot.slane %v1062, %v3526
      %v3528 = vsel %vm2026, %v3527, %v3523
      %v3529 = vlaneseq
      %v3530 = vshrl.u32 %v3529, 7
      %v3531 = vsub.s32 %v2028, %v3530
      %v3532 = vrot.slane %v1065, %v3531
      %v3533 = vsel %vm2033, %v3532, %v3528
      %v3534 = vlaneseq
      %v3535 = vshrl.u32 %v3534, 7
      %v3536 = vsub.s32 %v206, %v3535
      %v3537 = vrot.slane %v1068, %v3536
      %v3538 = vlaneseq
      %v3539 = vshrl.u32 %v3538, 7
      %v3540 = vsub.s32 %v1986, %v3539
      %v3541 = vrot.slane %v1071, %v3540
      %v3542 = vsel %vm1991, %v3541, %v3537
      %v3543 = vlaneseq
      %v3544 = vshrl.u32 %v3543, 7
      %v3545 = vsub.s32 %v1993, %v3544
      %v3546 = vrot.slane %v1074, %v3545
      %v3547 = vsel %vm1998, %v3546, %v3542
      %v3548 = vlaneseq
      %v3549 = vshrl.u32 %v3548, 7
      %v3550 = vsub.s32 %v2000, %v3549
      %v3551 = vrot.slane %v1077, %v3550
      %v3552 = vsel %vm2005, %v3551, %v3547
      %v3553 = vlaneseq
      %v3554 = vshrl.u32 %v3553, 7
      %v3555 = vsub.s32 %v2007, %v3554
      %v3556 = vrot.slane %v1080, %v3555
      %v3557 = vsel %vm2012, %v3556, %v3552
      %v3558 = vlaneseq
      %v3559 = vshrl.u32 %v3558, 7
      %v3560 = vsub.s32 %v2014, %v3559
      %v3561 = vrot.slane %v1083, %v3560
      %v3562 = vsel %vm2019, %v3561, %v3557
      %v3563 = vlaneseq
      %v3564 = vshrl.u32 %v3563, 7
      %v3565 = vsub.s32 %v2021, %v3564
      %v3566 = vrot.slane %v1086, %v3565
      %v3567 = vsel %vm2026, %v3566, %v3562
      %v3568 = vlaneseq
      %v3569 = vshrl.u32 %v3568, 7
      %v3570 = vsub.s32 %v2028, %v3569
      %v3571 = vrot.slane %v1089, %v3570
      %v3572 = vsel %vm2033, %v3571, %v3567
      %v3573 = vlaneseq
      %v3574 = vshrl.u32 %v3573, 7
      %v3575 = vsub.s32 %v206, %v3574
      %v3576 = vrot.slane %v1092, %v3575
      %v3577 = vlaneseq
      %v3578 = vshrl.u32 %v3577, 7
      %v3579 = vsub.s32 %v1986, %v3578
      %v3580 = vrot.slane %v1095, %v3579
      %v3581 = vsel %vm1991, %v3580, %v3576
      %v3582 = vlaneseq
      %v3583 = vshrl.u32 %v3582, 7
      %v3584 = vsub.s32 %v1993, %v3583
      %v3585 = vrot.slane %v1098, %v3584
      %v3586 = vsel %vm1998, %v3585, %v3581
      %v3587 = vlaneseq
      %v3588 = vshrl.u32 %v3587, 7
      %v3589 = vsub.s32 %v2000, %v3588
      %v3590 = vrot.slane %v1101, %v3589
      %v3591 = vsel %vm2005, %v3590, %v3586
      %v3592 = vlaneseq
      %v3593 = vshrl.u32 %v3592, 7
      %v3594 = vsub.s32 %v2007, %v3593
      %v3595 = vrot.slane %v1104, %v3594
      %v3596 = vsel %vm2012, %v3595, %v3591
      %v3597 = vlaneseq
      %v3598 = vshrl.u32 %v3597, 7
      %v3599 = vsub.s32 %v2014, %v3598
      %v3600 = vrot.slane %v1107, %v3599
      %v3601 = vsel %vm2019, %v3600, %v3596
      %v3602 = vlaneseq
      %v3603 = vshrl.u32 %v3602, 7
      %v3604 = vsub.s32 %v2021, %v3603
      %v3605 = vrot.slane %v1110, %v3604
      %v3606 = vsel %vm2026, %v3605, %v3601
      %v3607 = vlaneseq
      %v3608 = vshrl.u32 %v3607, 7
      %v3609 = vsub.s32 %v2028, %v3608
      %v3610 = vrot.slane %v1113, %v3609
      %v3611 = vsel %vm2033, %v3610, %v3606
      %v3612 = vlaneseq
      %v3613 = vshrl.u32 %v3612, 7
      %v3614 = vsub.s32 %v206, %v3613
      %v3615 = vrot.slane %v1116, %v3614
      %v3616 = vlaneseq
      %v3617 = vshrl.u32 %v3616, 7
      %v3618 = vsub.s32 %v1986, %v3617
      %v3619 = vrot.slane %v1119, %v3618
      %v3620 = vsel %vm1991, %v3619, %v3615
      %v3621 = vlaneseq
      %v3622 = vshrl.u32 %v3621, 7
      %v3623 = vsub.s32 %v1993, %v3622
      %v3624 = vrot.slane %v1122, %v3623
      %v3625 = vsel %vm1998, %v3624, %v3620
      %v3626 = vlaneseq
      %v3627 = vshrl.u32 %v3626, 7
      %v3628 = vsub.s32 %v2000, %v3627
      %v3629 = vrot.slane %v1125, %v3628
      %v3630 = vsel %vm2005, %v3629, %v3625
      %v3631 = vlaneseq
      %v3632 = vshrl.u32 %v3631, 7
      %v3633 = vsub.s32 %v2007, %v3632
      %v3634 = vrot.slane %v1128, %v3633
      %v3635 = vsel %vm2012, %v3634, %v3630
      %v3636 = vlaneseq
      %v3637 = vshrl.u32 %v3636, 7
      %v3638 = vsub.s32 %v2014, %v3637
      %v3639 = vrot.slane %v1131, %v3638
      %v3640 = vsel %vm2019, %v3639, %v3635
      %v3641 = vlaneseq
      %v3642 = vshrl.u32 %v3641, 7
      %v3643 = vsub.s32 %v2021, %v3642
      %v3644 = vrot.slane %v1134, %v3643
      %v3645 = vsel %vm2026, %v3644, %v3640
      %v3646 = vlaneseq
      %v3647 = vshrl.u32 %v3646, 7
      %v3648 = vsub.s32 %v2028, %v3647
      %v3649 = vrot.slane %v1137, %v3648
      %v3650 = vsel %vm2033, %v3649, %v3645
      %v3651 = vlaneseq
      %v3652 = vshrl.u32 %v3651, 7
      %v3653 = vsub.s32 %v206, %v3652
      %v3654 = vrot.slane %v1140, %v3653
      %v3655 = vlaneseq
      %v3656 = vshrl.u32 %v3655, 7
      %v3657 = vsub.s32 %v1986, %v3656
      %v3658 = vrot.slane %v1143, %v3657
      %v3659 = vsel %vm1991, %v3658, %v3654
      %v3660 = vlaneseq
      %v3661 = vshrl.u32 %v3660, 7
      %v3662 = vsub.s32 %v1993, %v3661
      %v3663 = vrot.slane %v1146, %v3662
      %v3664 = vsel %vm1998, %v3663, %v3659
      %v3665 = vlaneseq
      %v3666 = vshrl.u32 %v3665, 7
      %v3667 = vsub.s32 %v2000, %v3666
      %v3668 = vrot.slane %v1149, %v3667
      %v3669 = vsel %vm2005, %v3668, %v3664
      %v3670 = vlaneseq
      %v3671 = vshrl.u32 %v3670, 7
      %v3672 = vsub.s32 %v2007, %v3671
      %v3673 = vrot.slane %v1152, %v3672
      %v3674 = vsel %vm2012, %v3673, %v3669
      %v3675 = vlaneseq
      %v3676 = vshrl.u32 %v3675, 7
      %v3677 = vsub.s32 %v2014, %v3676
      %v3678 = vrot.slane %v1155, %v3677
      %v3679 = vsel %vm2019, %v3678, %v3674
      %v3680 = vlaneseq
      %v3681 = vshrl.u32 %v3680, 7
      %v3682 = vsub.s32 %v2021, %v3681
      %v3683 = vrot.slane %v1158, %v3682
      %v3684 = vsel %vm2026, %v3683, %v3679
      %v3685 = vlaneseq
      %v3686 = vshrl.u32 %v3685, 7
      %v3687 = vsub.s32 %v2028, %v3686
      %v3688 = vrot.slane %v1161, %v3687
      %v3689 = vsel %vm2033, %v3688, %v3684
      %v3690 = vsel %vm2270, %v3455, %v3455
      %v3691 = vsel %vm2272, %v3455, %v3690
      %v3692 = vsel %vm2274, %v3455, %v3691
      %v3693 = vsel %vm2276, %v3455, %v3692
      %v3694 = vsel %vm2278, %v3455, %v3693
      %v3695 = vsel %vm2280, %v3455, %v3694
      %v3696 = vsel %vm2270, %v3494, %v3494
      %v3697 = vsel %vm2272, %v3494, %v3696
      %v3698 = vsel %vm2274, %v3494, %v3697
      %v3699 = vsel %vm2276, %v3494, %v3698
      %v3700 = vsel %vm2278, %v3494, %v3699
      %v3701 = vsel %vm2280, %v3494, %v3700
      %v3702 = vsel %vm2270, %v3533, %v3533
      %v3703 = vsel %vm2272, %v3533, %v3702
      %v3704 = vsel %vm2274, %v3533, %v3703
      %v3705 = vsel %vm2276, %v3533, %v3704
      %v3706 = vsel %vm2278, %v3533, %v3705
      %v3707 = vsel %vm2280, %v3533, %v3706
      %v3708 = vsel %vm2270, %v3572, %v3572
      %v3709 = vsel %vm2272, %v3572, %v3708
      %v3710 = vsel %vm2274, %v3572, %v3709
      %v3711 = vsel %vm2276, %v3572, %v3710
      %v3712 = vsel %vm2278, %v3572, %v3711
      %v3713 = vsel %vm2280, %v3572, %v3712
      %v3714 = vsel %vm2270, %v3611, %v3611
      %v3715 = vsel %vm2272, %v3611, %v3714
      %v3716 = vsel %vm2274, %v3611, %v3715
      %v3717 = vsel %vm2276, %v3611, %v3716
      %v3718 = vsel %vm2278, %v3611, %v3717
      %v3719 = vsel %vm2280, %v3611, %v3718
      %v3720 = vsel %vm2270, %v3650, %v3650
      %v3721 = vsel %vm2272, %v3650, %v3720
      %v3722 = vsel %vm2274, %v3650, %v3721
      %v3723 = vsel %vm2276, %v3650, %v3722
      %v3724 = vsel %vm2278, %v3650, %v3723
      %v3725 = vsel %vm2280, %v3650, %v3724
      %v3726 = vsel %vm2270, %v3689, %v3689
      %v3727 = vsel %vm2272, %v3689, %v3726
      %v3728 = vsel %vm2274, %v3689, %v3727
      %v3729 = vsel %vm2276, %v3689, %v3728
      %v3730 = vsel %vm2278, %v3689, %v3729
      %v3731 = vsel %vm2280, %v3689, %v3730
      %v3739 = vmax.f32 %v996, %v3695
      %v3740 = vmax.f32 %v999, %v3695
      %v3741 = vmax.f32 %v1002, %v3695
      %v3742 = vmax.f32 %v1005, %v3695
      %v3743 = vmax.f32 %v1008, %v3695
      %v3744 = vmax.f32 %v1011, %v3695
      %v3745 = vmax.f32 %v1014, %v3695
      %v3746 = vmax.f32 %v1017, %v3695
      %v3747 = vmax.f32 %v1020, %v3701
      %v3748 = vmax.f32 %v1023, %v3701
      %v3749 = vmax.f32 %v1026, %v3701
      %v3750 = vmax.f32 %v1029, %v3701
      %v3751 = vmax.f32 %v1032, %v3701
      %v3752 = vmax.f32 %v1035, %v3701
      %v3753 = vmax.f32 %v1038, %v3701
      %v3754 = vmax.f32 %v1041, %v3701
      %v3755 = vmax.f32 %v1044, %v3707
      %v3756 = vmax.f32 %v1047, %v3707
      %v3757 = vmax.f32 %v1050, %v3707
      %v3758 = vmax.f32 %v1053, %v3707
      %v3759 = vmax.f32 %v1056, %v3707
      %v3760 = vmax.f32 %v1059, %v3707
      %v3761 = vmax.f32 %v1062, %v3707
      %v3762 = vmax.f32 %v1065, %v3707
      %v3763 = vmax.f32 %v1068, %v3713
      %v3764 = vmax.f32 %v1071, %v3713
      %v3765 = vmax.f32 %v1074, %v3713
      %v3766 = vmax.f32 %v1077, %v3713
      %v3767 = vmax.f32 %v1080, %v3713
      %v3768 = vmax.f32 %v1083, %v3713
      %v3769 = vmax.f32 %v1086, %v3713
      %v3770 = vmax.f32 %v1089, %v3713
      %v3771 = vmax.f32 %v1092, %v3719
      %v3772 = vmax.f32 %v1095, %v3719
      %v3773 = vmax.f32 %v1098, %v3719
      %v3774 = vmax.f32 %v1101, %v3719
      %v3775 = vmax.f32 %v1104, %v3719
      %v3776 = vmax.f32 %v1107, %v3719
      %v3777 = vmax.f32 %v1110, %v3719
      %v3778 = vmax.f32 %v1113, %v3719
      %v3779 = vmax.f32 %v1116, %v3725
      %v3780 = vmax.f32 %v1119, %v3725
      %v3781 = vmax.f32 %v1122, %v3725
      %v3782 = vmax.f32 %v1125, %v3725
      %v3783 = vmax.f32 %v1128, %v3725
      %v3784 = vmax.f32 %v1131, %v3725
      %v3785 = vmax.f32 %v1134, %v3725
      %v3786 = vmax.f32 %v1137, %v3725
      %v3787 = vmax.f32 %v1140, %v3731
      %v3788 = vmax.f32 %v1143, %v3731
      %v3789 = vmax.f32 %v1146, %v3731
      %v3790 = vmax.f32 %v1149, %v3731
      %v3791 = vmax.f32 %v1152, %v3731
      %v3792 = vmax.f32 %v1155, %v3731
      %v3793 = vmax.f32 %v1158, %v3731
      %v3794 = vmax.f32 %v1161, %v3731
      %v3795 = vsub.f32 %v3305, %v3739
      %v3796 = vsub.f32 %v3306, %v3740
      %v3797 = vsub.f32 %v3307, %v3741
      %v3798 = vsub.f32 %v3308, %v3742
      %v3799 = vsub.f32 %v3309, %v3743
      %v3800 = vsub.f32 %v3310, %v3744
      %v3801 = vsub.f32 %v3311, %v3745
      %v3802 = vsub.f32 %v3312, %v3746
      %v3803 = vsub.f32 %v3313, %v3747
      %v3804 = vsub.f32 %v3314, %v3748
      %v3805 = vsub.f32 %v3315, %v3749
      %v3806 = vsub.f32 %v3316, %v3750
      %v3807 = vsub.f32 %v3317, %v3751
      %v3808 = vsub.f32 %v3318, %v3752
      %v3809 = vsub.f32 %v3319, %v3753
      %v3810 = vsub.f32 %v3320, %v3754
      %v3811 = vsub.f32 %v3321, %v3755
      %v3812 = vsub.f32 %v3322, %v3756
      %v3813 = vsub.f32 %v3323, %v3757
      %v3814 = vsub.f32 %v3324, %v3758
      %v3815 = vsub.f32 %v3325, %v3759
      %v3816 = vsub.f32 %v3326, %v3760
      %v3817 = vsub.f32 %v3327, %v3761
      %v3818 = vsub.f32 %v3328, %v3762
      %v3819 = vsub.f32 %v3329, %v3763
      %v3820 = vsub.f32 %v3330, %v3764
      %v3821 = vsub.f32 %v3331, %v3765
      %v3822 = vsub.f32 %v3332, %v3766
      %v3823 = vsub.f32 %v3333, %v3767
      %v3824 = vsub.f32 %v3334, %v3768
      %v3825 = vsub.f32 %v3335, %v3769
      %v3826 = vsub.f32 %v3336, %v3770
      %v3827 = vsub.f32 %v3337, %v3771
      %v3828 = vsub.f32 %v3338, %v3772
      %v3829 = vsub.f32 %v3339, %v3773
      %v3830 = vsub.f32 %v3340, %v3774
      %v3831 = vsub.f32 %v3341, %v3775
      %v3832 = vsub.f32 %v3342, %v3776
      %v3833 = vsub.f32 %v3343, %v3777
      %v3834 = vsub.f32 %v3344, %v3778
      %v3835 = vsub.f32 %v3345, %v3779
      %v3836 = vsub.f32 %v3346, %v3780
      %v3837 = vsub.f32 %v3347, %v3781
      %v3838 = vsub.f32 %v3348, %v3782
      %v3839 = vsub.f32 %v3349, %v3783
      %v3840 = vsub.f32 %v3350, %v3784
      %v3841 = vsub.f32 %v3351, %v3785
      %v3842 = vsub.f32 %v3352, %v3786
      %v3843 = vsub.f32 %v3353, %v3787
      %v3844 = vsub.f32 %v3354, %v3788
      %v3845 = vsub.f32 %v3355, %v3789
      %v3846 = vsub.f32 %v3356, %v3790
      %v3847 = vsub.f32 %v3357, %v3791
      %v3848 = vsub.f32 %v3358, %v3792
      %v3849 = vsub.f32 %v3359, %v3793
      %v3850 = vsub.f32 %v3360, %v3794
      %v3851 = vmax.f32 %v3795, 0.0
      %v3852 = vmax.f32 %v3796, 0.0
      %v3853 = vmax.f32 %v3797, 0.0
      %v3854 = vmax.f32 %v3798, 0.0
      %v3855 = vmax.f32 %v3799, 0.0
      %v3856 = vmax.f32 %v3800, 0.0
      %v3857 = vmax.f32 %v3801, 0.0
      %v3858 = vmax.f32 %v3802, 0.0
      %v3859 = vmax.f32 %v3803, 0.0
      %v3860 = vmax.f32 %v3804, 0.0
      %v3861 = vmax.f32 %v3805, 0.0
      %v3862 = vmax.f32 %v3806, 0.0
      %v3863 = vmax.f32 %v3807, 0.0
      %v3864 = vmax.f32 %v3808, 0.0
      %v3865 = vmax.f32 %v3809, 0.0
      %v3866 = vmax.f32 %v3810, 0.0
      %v3867 = vmax.f32 %v3811, 0.0
      %v3868 = vmax.f32 %v3812, 0.0
      %v3869 = vmax.f32 %v3813, 0.0
      %v3870 = vmax.f32 %v3814, 0.0
      %v3871 = vmax.f32 %v3815, 0.0
      %v3872 = vmax.f32 %v3816, 0.0
      %v3873 = vmax.f32 %v3817, 0.0
      %v3874 = vmax.f32 %v3818, 0.0
      %v3875 = vmax.f32 %v3819, 0.0
      %v3876 = vmax.f32 %v3820, 0.0
      %v3877 = vmax.f32 %v3821, 0.0
      %v3878 = vmax.f32 %v3822, 0.0
      %v3879 = vmax.f32 %v3823, 0.0
      %v3880 = vmax.f32 %v3824, 0.0
      %v3881 = vmax.f32 %v3825, 0.0
      %v3882 = vmax.f32 %v3826, 0.0
      %v3883 = vmax.f32 %v3827, 0.0
      %v3884 = vmax.f32 %v3828, 0.0
      %v3885 = vmax.f32 %v3829, 0.0
      %v3886 = vmax.f32 %v3830, 0.0
      %v3887 = vmax.f32 %v3831, 0.0
      %v3888 = vmax.f32 %v3832, 0.0
      %v3889 = vmax.f32 %v3833, 0.0
      %v3890 = vmax.f32 %v3834, 0.0
      %v3891 = vmax.f32 %v3835, 0.0
      %v3892 = vmax.f32 %v3836, 0.0
      %v3893 = vmax.f32 %v3837, 0.0
      %v3894 = vmax.f32 %v3838, 0.0
      %v3895 = vmax.f32 %v3839, 0.0
      %v3896 = vmax.f32 %v3840, 0.0
      %v3897 = vmax.f32 %v3841, 0.0
      %v3898 = vmax.f32 %v3842, 0.0
      %v3899 = vmax.f32 %v3843, 0.0
      %v3900 = vmax.f32 %v3844, 0.0
      %v3901 = vmax.f32 %v3845, 0.0
      %v3902 = vmax.f32 %v3846, 0.0
      %v3903 = vmax.f32 %v3847, 0.0
      %v3904 = vmax.f32 %v3848, 0.0
      %v3905 = vmax.f32 %v3849, 0.0
      %v3906 = vmax.f32 %v3850, 0.0
      %v3907 = vmul.f32 %v2871, %v3851
      %v3908 = vmul.f32 %v2872, %v3852
      %v3909 = vmul.f32 %v2873, %v3853
      %v3910 = vmul.f32 %v2874, %v3854
      %v3911 = vmul.f32 %v2875, %v3855
      %v3912 = vmul.f32 %v2876, %v3856
      %v3913 = vmul.f32 %v2877, %v3857
      %v3914 = vmul.f32 %v2878, %v3858
      %v3915 = vmul.f32 %v2879, %v3859
      %v3916 = vmul.f32 %v2880, %v3860
      %v3917 = vmul.f32 %v2881, %v3861
      %v3918 = vmul.f32 %v2882, %v3862
      %v3919 = vmul.f32 %v2883, %v3863
      %v3920 = vmul.f32 %v2884, %v3864
      %v3921 = vmul.f32 %v2885, %v3865
      %v3922 = vmul.f32 %v2886, %v3866
      %v3923 = vmul.f32 %v2887, %v3867
      %v3924 = vmul.f32 %v2888, %v3868
      %v3925 = vmul.f32 %v2889, %v3869
      %v3926 = vmul.f32 %v2890, %v3870
      %v3927 = vmul.f32 %v2891, %v3871
      %v3928 = vmul.f32 %v2892, %v3872
      %v3929 = vmul.f32 %v2893, %v3873
      %v3930 = vmul.f32 %v2894, %v3874
      %v3931 = vmul.f32 %v2895, %v3875
      %v3932 = vmul.f32 %v2896, %v3876
      %v3933 = vmul.f32 %v2897, %v3877
      %v3934 = vmul.f32 %v2898, %v3878
      %v3935 = vmul.f32 %v2899, %v3879
      %v3936 = vmul.f32 %v2900, %v3880
      %v3937 = vmul.f32 %v2901, %v3881
      %v3938 = vmul.f32 %v2902, %v3882
      %v3939 = vmul.f32 %v2903, %v3883
      %v3940 = vmul.f32 %v2904, %v3884
      %v3941 = vmul.f32 %v2905, %v3885
      %v3942 = vmul.f32 %v2906, %v3886
      %v3943 = vmul.f32 %v2907, %v3887
      %v3944 = vmul.f32 %v2908, %v3888
      %v3945 = vmul.f32 %v2909, %v3889
      %v3946 = vmul.f32 %v2910, %v3890
      %v3947 = vmul.f32 %v2911, %v3891
      %v3948 = vmul.f32 %v2912, %v3892
      %v3949 = vmul.f32 %v2913, %v3893
      %v3950 = vmul.f32 %v2914, %v3894
      %v3951 = vmul.f32 %v2915, %v3895
      %v3952 = vmul.f32 %v2916, %v3896
      %v3953 = vmul.f32 %v2917, %v3897
      %v3954 = vmul.f32 %v2918, %v3898
      %v3955 = vmul.f32 %v2919, %v3899
      %v3956 = vmul.f32 %v2920, %v3900
      %v3957 = vmul.f32 %v2921, %v3901
      %v3958 = vmul.f32 %v2922, %v3902
      %v3959 = vmul.f32 %v2923, %v3903
      %v3960 = vmul.f32 %v2924, %v3904
      %v3961 = vmul.f32 %v2925, %v3905
      %v3962 = vmul.f32 %v2926, %v3906
      %v4019 = vlaneseq
      %v4020 = vshrl.u32 %v4019, 7
      %v4021 = vsub.s32 %v206, %v4020
      %v4022 = vrot.slane %v1870, %v4021
      %v4023 = vlaneseq
      %v4024 = vshrl.u32 %v4023, 7
      %v4025 = vsub.s32 %v1986, %v4024
      %v4026 = vrot.slane %v1871, %v4025
      %v4027 = vsel %vm1991, %v4026, %v4022
      %v4028 = vlaneseq
      %v4029 = vshrl.u32 %v4028, 7
      %v4030 = vsub.s32 %v1993, %v4029
      %v4031 = vrot.slane %v1872, %v4030
      %v4032 = vsel %vm1998, %v4031, %v4027
      %v4033 = vlaneseq
      %v4034 = vshrl.u32 %v4033, 7
      %v4035 = vsub.s32 %v2000, %v4034
      %v4036 = vrot.slane %v1873, %v4035
      %v4037 = vsel %vm2005, %v4036, %v4032
      %v4038 = vlaneseq
      %v4039 = vshrl.u32 %v4038, 7
      %v4040 = vsub.s32 %v2007, %v4039
      %v4041 = vrot.slane %v1874, %v4040
      %v4042 = vsel %vm2012, %v4041, %v4037
      %v4043 = vlaneseq
      %v4044 = vshrl.u32 %v4043, 7
      %v4045 = vsub.s32 %v2014, %v4044
      %v4046 = vrot.slane %v1875, %v4045
      %v4047 = vsel %vm2019, %v4046, %v4042
      %v4048 = vlaneseq
      %v4049 = vshrl.u32 %v4048, 7
      %v4050 = vsub.s32 %v2021, %v4049
      %v4051 = vrot.slane %v1876, %v4050
      %v4052 = vsel %vm2026, %v4051, %v4047
      %v4053 = vlaneseq
      %v4054 = vshrl.u32 %v4053, 7
      %v4055 = vsub.s32 %v2028, %v4054
      %v4056 = vrot.slane %v1877, %v4055
      %v4057 = vsel %vm2033, %v4056, %v4052
      %v4058 = vlaneseq
      %v4059 = vshrl.u32 %v4058, 7
      %v4060 = vsub.s32 %v206, %v4059
      %v4061 = vrot.slane %v1878, %v4060
      %v4062 = vlaneseq
      %v4063 = vshrl.u32 %v4062, 7
      %v4064 = vsub.s32 %v1986, %v4063
      %v4065 = vrot.slane %v1879, %v4064
      %v4066 = vsel %vm1991, %v4065, %v4061
      %v4067 = vlaneseq
      %v4068 = vshrl.u32 %v4067, 7
      %v4069 = vsub.s32 %v1993, %v4068
      %v4070 = vrot.slane %v1880, %v4069
      %v4071 = vsel %vm1998, %v4070, %v4066
      %v4072 = vlaneseq
      %v4073 = vshrl.u32 %v4072, 7
      %v4074 = vsub.s32 %v2000, %v4073
      %v4075 = vrot.slane %v1881, %v4074
      %v4076 = vsel %vm2005, %v4075, %v4071
      %v4077 = vlaneseq
      %v4078 = vshrl.u32 %v4077, 7
      %v4079 = vsub.s32 %v2007, %v4078
      %v4080 = vrot.slane %v1882, %v4079
      %v4081 = vsel %vm2012, %v4080, %v4076
      %v4082 = vlaneseq
      %v4083 = vshrl.u32 %v4082, 7
      %v4084 = vsub.s32 %v2014, %v4083
      %v4085 = vrot.slane %v1883, %v4084
      %v4086 = vsel %vm2019, %v4085, %v4081
      %v4087 = vlaneseq
      %v4088 = vshrl.u32 %v4087, 7
      %v4089 = vsub.s32 %v2021, %v4088
      %v4090 = vrot.slane %v1884, %v4089
      %v4091 = vsel %vm2026, %v4090, %v4086
      %v4092 = vlaneseq
      %v4093 = vshrl.u32 %v4092, 7
      %v4094 = vsub.s32 %v2028, %v4093
      %v4095 = vrot.slane %v1885, %v4094
      %v4096 = vsel %vm2033, %v4095, %v4091
      %v4097 = vlaneseq
      %v4098 = vshrl.u32 %v4097, 7
      %v4099 = vsub.s32 %v206, %v4098
      %v4100 = vrot.slane %v1886, %v4099
      %v4101 = vlaneseq
      %v4102 = vshrl.u32 %v4101, 7
      %v4103 = vsub.s32 %v1986, %v4102
      %v4104 = vrot.slane %v1887, %v4103
      %v4105 = vsel %vm1991, %v4104, %v4100
      %v4106 = vlaneseq
      %v4107 = vshrl.u32 %v4106, 7
      %v4108 = vsub.s32 %v1993, %v4107
      %v4109 = vrot.slane %v1888, %v4108
      %v4110 = vsel %vm1998, %v4109, %v4105
      %v4111 = vlaneseq
      %v4112 = vshrl.u32 %v4111, 7
      %v4113 = vsub.s32 %v2000, %v4112
      %v4114 = vrot.slane %v1889, %v4113
      %v4115 = vsel %vm2005, %v4114, %v4110
      %v4116 = vlaneseq
      %v4117 = vshrl.u32 %v4116, 7
      %v4118 = vsub.s32 %v2007, %v4117
      %v4119 = vrot.slane %v1890, %v4118
      %v4120 = vsel %vm2012, %v4119, %v4115
      %v4121 = vlaneseq
      %v4122 = vshrl.u32 %v4121, 7
      %v4123 = vsub.s32 %v2014, %v4122
      %v4124 = vrot.slane %v1891, %v4123
      %v4125 = vsel %vm2019, %v4124, %v4120
      %v4126 = vlaneseq
      %v4127 = vshrl.u32 %v4126, 7
      %v4128 = vsub.s32 %v2021, %v4127
      %v4129 = vrot.slane %v1892, %v4128
      %v4130 = vsel %vm2026, %v4129, %v4125
      %v4131 = vlaneseq
      %v4132 = vshrl.u32 %v4131, 7
      %v4133 = vsub.s32 %v2028, %v4132
      %v4134 = vrot.slane %v1893, %v4133
      %v4135 = vsel %vm2033, %v4134, %v4130
      %v4136 = vlaneseq
      %v4137 = vshrl.u32 %v4136, 7
      %v4138 = vsub.s32 %v206, %v4137
      %v4139 = vrot.slane %v1894, %v4138
      %v4140 = vlaneseq
      %v4141 = vshrl.u32 %v4140, 7
      %v4142 = vsub.s32 %v1986, %v4141
      %v4143 = vrot.slane %v1895, %v4142
      %v4144 = vsel %vm1991, %v4143, %v4139
      %v4145 = vlaneseq
      %v4146 = vshrl.u32 %v4145, 7
      %v4147 = vsub.s32 %v1993, %v4146
      %v4148 = vrot.slane %v1896, %v4147
      %v4149 = vsel %vm1998, %v4148, %v4144
      %v4150 = vlaneseq
      %v4151 = vshrl.u32 %v4150, 7
      %v4152 = vsub.s32 %v2000, %v4151
      %v4153 = vrot.slane %v1897, %v4152
      %v4154 = vsel %vm2005, %v4153, %v4149
      %v4155 = vlaneseq
      %v4156 = vshrl.u32 %v4155, 7
      %v4157 = vsub.s32 %v2007, %v4156
      %v4158 = vrot.slane %v1898, %v4157
      %v4159 = vsel %vm2012, %v4158, %v4154
      %v4160 = vlaneseq
      %v4161 = vshrl.u32 %v4160, 7
      %v4162 = vsub.s32 %v2014, %v4161
      %v4163 = vrot.slane %v1899, %v4162
      %v4164 = vsel %vm2019, %v4163, %v4159
      %v4165 = vlaneseq
      %v4166 = vshrl.u32 %v4165, 7
      %v4167 = vsub.s32 %v2021, %v4166
      %v4168 = vrot.slane %v1900, %v4167
      %v4169 = vsel %vm2026, %v4168, %v4164
      %v4170 = vlaneseq
      %v4171 = vshrl.u32 %v4170, 7
      %v4172 = vsub.s32 %v2028, %v4171
      %v4173 = vrot.slane %v1901, %v4172
      %v4174 = vsel %vm2033, %v4173, %v4169
      %v4175 = vlaneseq
      %v4176 = vshrl.u32 %v4175, 7
      %v4177 = vsub.s32 %v206, %v4176
      %v4178 = vrot.slane %v1902, %v4177
      %v4179 = vlaneseq
      %v4180 = vshrl.u32 %v4179, 7
      %v4181 = vsub.s32 %v1986, %v4180
      %v4182 = vrot.slane %v1903, %v4181
      %v4183 = vsel %vm1991, %v4182, %v4178
      %v4184 = vlaneseq
      %v4185 = vshrl.u32 %v4184, 7
      %v4186 = vsub.s32 %v1993, %v4185
      %v4187 = vrot.slane %v1904, %v4186
      %v4188 = vsel %vm1998, %v4187, %v4183
      %v4189 = vlaneseq
      %v4190 = vshrl.u32 %v4189, 7
      %v4191 = vsub.s32 %v2000, %v4190
      %v4192 = vrot.slane %v1905, %v4191
      %v4193 = vsel %vm2005, %v4192, %v4188
      %v4194 = vlaneseq
      %v4195 = vshrl.u32 %v4194, 7
      %v4196 = vsub.s32 %v2007, %v4195
      %v4197 = vrot.slane %v1906, %v4196
      %v4198 = vsel %vm2012, %v4197, %v4193
      %v4199 = vlaneseq
      %v4200 = vshrl.u32 %v4199, 7
      %v4201 = vsub.s32 %v2014, %v4200
      %v4202 = vrot.slane %v1907, %v4201
      %v4203 = vsel %vm2019, %v4202, %v4198
      %v4204 = vlaneseq
      %v4205 = vshrl.u32 %v4204, 7
      %v4206 = vsub.s32 %v2021, %v4205
      %v4207 = vrot.slane %v1908, %v4206
      %v4208 = vsel %vm2026, %v4207, %v4203
      %v4209 = vlaneseq
      %v4210 = vshrl.u32 %v4209, 7
      %v4211 = vsub.s32 %v2028, %v4210
      %v4212 = vrot.slane %v1909, %v4211
      %v4213 = vsel %vm2033, %v4212, %v4208
      %v4214 = vlaneseq
      %v4215 = vshrl.u32 %v4214, 7
      %v4216 = vsub.s32 %v206, %v4215
      %v4217 = vrot.slane %v1910, %v4216
      %v4218 = vlaneseq
      %v4219 = vshrl.u32 %v4218, 7
      %v4220 = vsub.s32 %v1986, %v4219
      %v4221 = vrot.slane %v1911, %v4220
      %v4222 = vsel %vm1991, %v4221, %v4217
      %v4223 = vlaneseq
      %v4224 = vshrl.u32 %v4223, 7
      %v4225 = vsub.s32 %v1993, %v4224
      %v4226 = vrot.slane %v1912, %v4225
      %v4227 = vsel %vm1998, %v4226, %v4222
      %v4228 = vlaneseq
      %v4229 = vshrl.u32 %v4228, 7
      %v4230 = vsub.s32 %v2000, %v4229
      %v4231 = vrot.slane %v1913, %v4230
      %v4232 = vsel %vm2005, %v4231, %v4227
      %v4233 = vlaneseq
      %v4234 = vshrl.u32 %v4233, 7
      %v4235 = vsub.s32 %v2007, %v4234
      %v4236 = vrot.slane %v1914, %v4235
      %v4237 = vsel %vm2012, %v4236, %v4232
      %v4238 = vlaneseq
      %v4239 = vshrl.u32 %v4238, 7
      %v4240 = vsub.s32 %v2014, %v4239
      %v4241 = vrot.slane %v1915, %v4240
      %v4242 = vsel %vm2019, %v4241, %v4237
      %v4243 = vlaneseq
      %v4244 = vshrl.u32 %v4243, 7
      %v4245 = vsub.s32 %v2021, %v4244
      %v4246 = vrot.slane %v1916, %v4245
      %v4247 = vsel %vm2026, %v4246, %v4242
      %v4248 = vlaneseq
      %v4249 = vshrl.u32 %v4248, 7
      %v4250 = vsub.s32 %v2028, %v4249
      %v4251 = vrot.slane %v1917, %v4250
      %v4252 = vsel %vm2033, %v4251, %v4247
      %v4253 = vlaneseq
      %v4254 = vshrl.u32 %v4253, 7
      %v4255 = vsub.s32 %v206, %v4254
      %v4256 = vrot.slane %v1918, %v4255
      %v4257 = vlaneseq
      %v4258 = vshrl.u32 %v4257, 7
      %v4259 = vsub.s32 %v1986, %v4258
      %v4260 = vrot.slane %v1919, %v4259
      %v4261 = vsel %vm1991, %v4260, %v4256
      %v4262 = vlaneseq
      %v4263 = vshrl.u32 %v4262, 7
      %v4264 = vsub.s32 %v1993, %v4263
      %v4265 = vrot.slane %v1920, %v4264
      %v4266 = vsel %vm1998, %v4265, %v4261
      %v4267 = vlaneseq
      %v4268 = vshrl.u32 %v4267, 7
      %v4269 = vsub.s32 %v2000, %v4268
      %v4270 = vrot.slane %v1921, %v4269
      %v4271 = vsel %vm2005, %v4270, %v4266
      %v4272 = vlaneseq
      %v4273 = vshrl.u32 %v4272, 7
      %v4274 = vsub.s32 %v2007, %v4273
      %v4275 = vrot.slane %v1922, %v4274
      %v4276 = vsel %vm2012, %v4275, %v4271
      %v4277 = vlaneseq
      %v4278 = vshrl.u32 %v4277, 7
      %v4279 = vsub.s32 %v2014, %v4278
      %v4280 = vrot.slane %v1923, %v4279
      %v4281 = vsel %vm2019, %v4280, %v4276
      %v4282 = vlaneseq
      %v4283 = vshrl.u32 %v4282, 7
      %v4284 = vsub.s32 %v2021, %v4283
      %v4285 = vrot.slane %v1924, %v4284
      %v4286 = vsel %vm2026, %v4285, %v4281
      %v4287 = vlaneseq
      %v4288 = vshrl.u32 %v4287, 7
      %v4289 = vsub.s32 %v2028, %v4288
      %v4290 = vrot.slane %v1925, %v4289
      %v4291 = vsel %vm2033, %v4290, %v4286
      %v4292 = vsel %vm2270, %v4057, %v4057
      %v4293 = vsel %vm2272, %v4057, %v4292
      %v4294 = vsel %vm2274, %v4057, %v4293
      %v4295 = vsel %vm2276, %v4057, %v4294
      %v4296 = vsel %vm2278, %v4057, %v4295
      %v4297 = vsel %vm2280, %v4057, %v4296
      %v4298 = vsel %vm2270, %v4096, %v4096
      %v4299 = vsel %vm2272, %v4096, %v4298
      %v4300 = vsel %vm2274, %v4096, %v4299
      %v4301 = vsel %vm2276, %v4096, %v4300
      %v4302 = vsel %vm2278, %v4096, %v4301
      %v4303 = vsel %vm2280, %v4096, %v4302
      %v4304 = vsel %vm2270, %v4135, %v4135
      %v4305 = vsel %vm2272, %v4135, %v4304
      %v4306 = vsel %vm2274, %v4135, %v4305
      %v4307 = vsel %vm2276, %v4135, %v4306
      %v4308 = vsel %vm2278, %v4135, %v4307
      %v4309 = vsel %vm2280, %v4135, %v4308
      %v4310 = vsel %vm2270, %v4174, %v4174
      %v4311 = vsel %vm2272, %v4174, %v4310
      %v4312 = vsel %vm2274, %v4174, %v4311
      %v4313 = vsel %vm2276, %v4174, %v4312
      %v4314 = vsel %vm2278, %v4174, %v4313
      %v4315 = vsel %vm2280, %v4174, %v4314
      %v4316 = vsel %vm2270, %v4213, %v4213
      %v4317 = vsel %vm2272, %v4213, %v4316
      %v4318 = vsel %vm2274, %v4213, %v4317
      %v4319 = vsel %vm2276, %v4213, %v4318
      %v4320 = vsel %vm2278, %v4213, %v4319
      %v4321 = vsel %vm2280, %v4213, %v4320
      %v4322 = vsel %vm2270, %v4252, %v4252
      %v4323 = vsel %vm2272, %v4252, %v4322
      %v4324 = vsel %vm2274, %v4252, %v4323
      %v4325 = vsel %vm2276, %v4252, %v4324
      %v4326 = vsel %vm2278, %v4252, %v4325
      %v4327 = vsel %vm2280, %v4252, %v4326
      %v4328 = vsel %vm2270, %v4291, %v4291
      %v4329 = vsel %vm2272, %v4291, %v4328
      %v4330 = vsel %vm2274, %v4291, %v4329
      %v4331 = vsel %vm2276, %v4291, %v4330
      %v4332 = vsel %vm2278, %v4291, %v4331
      %v4333 = vsel %vm2280, %v4291, %v4332
      %v4341 = vadd.f32 %v1870, %v4297
      %v4342 = vadd.f32 %v1871, %v4297
      %v4343 = vadd.f32 %v1872, %v4297
      %v4344 = vadd.f32 %v1873, %v4297
      %v4345 = vadd.f32 %v1874, %v4297
      %v4346 = vadd.f32 %v1875, %v4297
      %v4347 = vadd.f32 %v1876, %v4297
      %v4348 = vadd.f32 %v1877, %v4297
      %v4349 = vadd.f32 %v1878, %v4303
      %v4350 = vadd.f32 %v1879, %v4303
      %v4351 = vadd.f32 %v1880, %v4303
      %v4352 = vadd.f32 %v1881, %v4303
      %v4353 = vadd.f32 %v1882, %v4303
      %v4354 = vadd.f32 %v1883, %v4303
      %v4355 = vadd.f32 %v1884, %v4303
      %v4356 = vadd.f32 %v1885, %v4303
      %v4357 = vadd.f32 %v1886, %v4309
      %v4358 = vadd.f32 %v1887, %v4309
      %v4359 = vadd.f32 %v1888, %v4309
      %v4360 = vadd.f32 %v1889, %v4309
      %v4361 = vadd.f32 %v1890, %v4309
      %v4362 = vadd.f32 %v1891, %v4309
      %v4363 = vadd.f32 %v1892, %v4309
      %v4364 = vadd.f32 %v1893, %v4309
      %v4365 = vadd.f32 %v1894, %v4315
      %v4366 = vadd.f32 %v1895, %v4315
      %v4367 = vadd.f32 %v1896, %v4315
      %v4368 = vadd.f32 %v1897, %v4315
      %v4369 = vadd.f32 %v1898, %v4315
      %v4370 = vadd.f32 %v1899, %v4315
      %v4371 = vadd.f32 %v1900, %v4315
      %v4372 = vadd.f32 %v1901, %v4315
      %v4373 = vadd.f32 %v1902, %v4321
      %v4374 = vadd.f32 %v1903, %v4321
      %v4375 = vadd.f32 %v1904, %v4321
      %v4376 = vadd.f32 %v1905, %v4321
      %v4377 = vadd.f32 %v1906, %v4321
      %v4378 = vadd.f32 %v1907, %v4321
      %v4379 = vadd.f32 %v1908, %v4321
      %v4380 = vadd.f32 %v1909, %v4321
      %v4381 = vadd.f32 %v1910, %v4327
      %v4382 = vadd.f32 %v1911, %v4327
      %v4383 = vadd.f32 %v1912, %v4327
      %v4384 = vadd.f32 %v1913, %v4327
      %v4385 = vadd.f32 %v1914, %v4327
      %v4386 = vadd.f32 %v1915, %v4327
      %v4387 = vadd.f32 %v1916, %v4327
      %v4388 = vadd.f32 %v1917, %v4327
      %v4389 = vadd.f32 %v1918, %v4333
      %v4390 = vadd.f32 %v1919, %v4333
      %v4391 = vadd.f32 %v1920, %v4333
      %v4392 = vadd.f32 %v1921, %v4333
      %v4393 = vadd.f32 %v1922, %v4333
      %v4394 = vadd.f32 %v1923, %v4333
      %v4395 = vadd.f32 %v1924, %v4333
      %v4396 = vadd.f32 %v1925, %v4333
      %v4397 = vsub.f32 %v4341, %v3907
      %v4398 = vsub.f32 %v4342, %v3908
      %v4399 = vsub.f32 %v4343, %v3909
      %v4400 = vsub.f32 %v4344, %v3910
      %v4401 = vsub.f32 %v4345, %v3911
      %v4402 = vsub.f32 %v4346, %v3912
      %v4403 = vsub.f32 %v4347, %v3913
      %v4404 = vsub.f32 %v4348, %v3914
      %v4405 = vsub.f32 %v4349, %v3915
      %v4406 = vsub.f32 %v4350, %v3916
      %v4407 = vsub.f32 %v4351, %v3917
      %v4408 = vsub.f32 %v4352, %v3918
      %v4409 = vsub.f32 %v4353, %v3919
      %v4410 = vsub.f32 %v4354, %v3920
      %v4411 = vsub.f32 %v4355, %v3921
      %v4412 = vsub.f32 %v4356, %v3922
      %v4413 = vsub.f32 %v4357, %v3923
      %v4414 = vsub.f32 %v4358, %v3924
      %v4415 = vsub.f32 %v4359, %v3925
      %v4416 = vsub.f32 %v4360, %v3926
      %v4417 = vsub.f32 %v4361, %v3927
      %v4418 = vsub.f32 %v4362, %v3928
      %v4419 = vsub.f32 %v4363, %v3929
      %v4420 = vsub.f32 %v4364, %v3930
      %v4421 = vsub.f32 %v4365, %v3931
      %v4422 = vsub.f32 %v4366, %v3932
      %v4423 = vsub.f32 %v4367, %v3933
      %v4424 = vsub.f32 %v4368, %v3934
      %v4425 = vsub.f32 %v4369, %v3935
      %v4426 = vsub.f32 %v4370, %v3936
      %v4427 = vsub.f32 %v4371, %v3937
      %v4428 = vsub.f32 %v4372, %v3938
      %v4429 = vsub.f32 %v4373, %v3939
      %v4430 = vsub.f32 %v4374, %v3940
      %v4431 = vsub.f32 %v4375, %v3941
      %v4432 = vsub.f32 %v4376, %v3942
      %v4433 = vsub.f32 %v4377, %v3943
      %v4434 = vsub.f32 %v4378, %v3944
      %v4435 = vsub.f32 %v4379, %v3945
      %v4436 = vsub.f32 %v4380, %v3946
      %v4437 = vsub.f32 %v4381, %v3947
      %v4438 = vsub.f32 %v4382, %v3948
      %v4439 = vsub.f32 %v4383, %v3949
      %v4440 = vsub.f32 %v4384, %v3950
      %v4441 = vsub.f32 %v4385, %v3951
      %v4442 = vsub.f32 %v4386, %v3952
      %v4443 = vsub.f32 %v4387, %v3953
      %v4444 = vsub.f32 %v4388, %v3954
      %v4445 = vsub.f32 %v4389, %v3955
      %v4446 = vsub.f32 %v4390, %v3956
      %v4447 = vsub.f32 %v4391, %v3957
      %v4448 = vsub.f32 %v4392, %v3958
      %v4449 = vsub.f32 %v4393, %v3959
      %v4450 = vsub.f32 %v4394, %v3960
      %v4451 = vsub.f32 %v4395, %v3961
      %v4452 = vsub.f32 %v4396, %v3962
      %v4453 = vlaneseq
      %v4454 = vshrl.u32 %v4453, 7
      %v4455 = vadd.s32 %v4454, 8
      %v4456 = vadd.s32 %v4454, 16
      %v4457 = vadd.s32 %v4454, 24
      %v4458 = vadd.s32 %v4454, 32
      %v4459 = vadd.s32 %v4454, 40
      %v4460 = vadd.s32 %v4454, 48
      %v4461 = vadd.s32 %v4454, 56
      %vm4462 = vcmp.lt.s32.totalorder %v4454, %v206
      %vm4463 = vcmp.lt.s32.totalorder %v4455, %v206
      %vm4464 = vcmp.lt.s32.totalorder %v4456, %v206
      %vm4465 = vcmp.lt.s32.totalorder %v4457, %v206
      %vm4466 = vcmp.lt.s32.totalorder %v4458, %v206
      %vm4467 = vcmp.lt.s32.totalorder %v4459, %v206
      %vm4468 = vcmp.lt.s32.totalorder %v4460, %v206
      %vm4469 = vcmp.lt.s32.totalorder %v4461, %v206
      %v4470 = vmul.f32 %v4397, 0.5
      %v4471 = vmul.f32 %v4398, 0.5
      %v4472 = vmul.f32 %v4399, 0.5
      %v4473 = vmul.f32 %v4400, 0.5
      %v4474 = vmul.f32 %v4401, 0.5
      %v4475 = vmul.f32 %v4402, 0.5
      %v4476 = vmul.f32 %v4403, 0.5
      %v4477 = vmul.f32 %v4404, 0.5
      %v4478 = vmul.f32 %v4405, 0.5
      %v4479 = vmul.f32 %v4406, 0.5
      %v4480 = vmul.f32 %v4407, 0.5
      %v4481 = vmul.f32 %v4408, 0.5
      %v4482 = vmul.f32 %v4409, 0.5
      %v4483 = vmul.f32 %v4410, 0.5
      %v4484 = vmul.f32 %v4411, 0.5
      %v4485 = vmul.f32 %v4412, 0.5
      %v4486 = vmul.f32 %v4413, 0.5
      %v4487 = vmul.f32 %v4414, 0.5
      %v4488 = vmul.f32 %v4415, 0.5
      %v4489 = vmul.f32 %v4416, 0.5
      %v4490 = vmul.f32 %v4417, 0.5
      %v4491 = vmul.f32 %v4418, 0.5
      %v4492 = vmul.f32 %v4419, 0.5
      %v4493 = vmul.f32 %v4420, 0.5
      %v4494 = vmul.f32 %v4421, 0.5
      %v4495 = vmul.f32 %v4422, 0.5
      %v4496 = vmul.f32 %v4423, 0.5
      %v4497 = vmul.f32 %v4424, 0.5
      %v4498 = vmul.f32 %v4425, 0.5
      %v4499 = vmul.f32 %v4426, 0.5
      %v4500 = vmul.f32 %v4427, 0.5
      %v4501 = vmul.f32 %v4428, 0.5
      %v4502 = vmul.f32 %v4429, 0.5
      %v4503 = vmul.f32 %v4430, 0.5
      %v4504 = vmul.f32 %v4431, 0.5
      %v4505 = vmul.f32 %v4432, 0.5
      %v4506 = vmul.f32 %v4433, 0.5
      %v4507 = vmul.f32 %v4434, 0.5
      %v4508 = vmul.f32 %v4435, 0.5
      %v4509 = vmul.f32 %v4436, 0.5
      %v4510 = vmul.f32 %v4437, 0.5
      %v4511 = vmul.f32 %v4438, 0.5
      %v4512 = vmul.f32 %v4439, 0.5
      %v4513 = vmul.f32 %v4440, 0.5
      %v4514 = vmul.f32 %v4441, 0.5
      %v4515 = vmul.f32 %v4442, 0.5
      %v4516 = vmul.f32 %v4443, 0.5
      %v4517 = vmul.f32 %v4444, 0.5
      %v4518 = vmul.f32 %v4445, 0.5
      %v4519 = vmul.f32 %v4446, 0.5
      %v4520 = vmul.f32 %v4447, 0.5
      %v4521 = vmul.f32 %v4448, 0.5
      %v4522 = vmul.f32 %v4449, 0.5
      %v4523 = vmul.f32 %v4450, 0.5
      %v4524 = vmul.f32 %v4451, 0.5
      %v4525 = vmul.f32 %v4452, 0.5
      %vm4526 = vcmp.gt.f32.partialorder %v3907, %v4470
      %vm4527 = vcmp.gt.f32.partialorder %v3908, %v4471
      %vm4528 = vcmp.gt.f32.partialorder %v3909, %v4472
      %vm4529 = vcmp.gt.f32.partialorder %v3910, %v4473
      %vm4530 = vcmp.gt.f32.partialorder %v3911, %v4474
      %vm4531 = vcmp.gt.f32.partialorder %v3912, %v4475
      %vm4532 = vcmp.gt.f32.partialorder %v3913, %v4476
      %vm4533 = vcmp.gt.f32.partialorder %v3914, %v4477
      %vm4534 = vcmp.gt.f32.partialorder %v3915, %v4478
      %vm4535 = vcmp.gt.f32.partialorder %v3916, %v4479
      %vm4536 = vcmp.gt.f32.partialorder %v3917, %v4480
      %vm4537 = vcmp.gt.f32.partialorder %v3918, %v4481
      %vm4538 = vcmp.gt.f32.partialorder %v3919, %v4482
      %vm4539 = vcmp.gt.f32.partialorder %v3920, %v4483
      %vm4540 = vcmp.gt.f32.partialorder %v3921, %v4484
      %vm4541 = vcmp.gt.f32.partialorder %v3922, %v4485
      %vm4542 = vcmp.gt.f32.partialorder %v3923, %v4486
      %vm4543 = vcmp.gt.f32.partialorder %v3924, %v4487
      %vm4544 = vcmp.gt.f32.partialorder %v3925, %v4488
      %vm4545 = vcmp.gt.f32.partialorder %v3926, %v4489
      %vm4546 = vcmp.gt.f32.partialorder %v3927, %v4490
      %vm4547 = vcmp.gt.f32.partialorder %v3928, %v4491
      %vm4548 = vcmp.gt.f32.partialorder %v3929, %v4492
      %vm4549 = vcmp.gt.f32.partialorder %v3930, %v4493
      %vm4550 = vcmp.gt.f32.partialorder %v3931, %v4494
      %vm4551 = vcmp.gt.f32.partialorder %v3932, %v4495
      %vm4552 = vcmp.gt.f32.partialorder %v3933, %v4496
      %vm4553 = vcmp.gt.f32.partialorder %v3934, %v4497
      %vm4554 = vcmp.gt.f32.partialorder %v3935, %v4498
      %vm4555 = vcmp.gt.f32.partialorder %v3936, %v4499
      %vm4556 = vcmp.gt.f32.partialorder %v3937, %v4500
      %vm4557 = vcmp.gt.f32.partialorder %v3938, %v4501
      %vm4558 = vcmp.gt.f32.partialorder %v3939, %v4502
      %vm4559 = vcmp.gt.f32.partialorder %v3940, %v4503
      %vm4560 = vcmp.gt.f32.partialorder %v3941, %v4504
      %vm4561 = vcmp.gt.f32.partialorder %v3942, %v4505
      %vm4562 = vcmp.gt.f32.partialorder %v3943, %v4506
      %vm4563 = vcmp.gt.f32.partialorder %v3944, %v4507
      %vm4564 = vcmp.gt.f32.partialorder %v3945, %v4508
      %vm4565 = vcmp.gt.f32.partialorder %v3946, %v4509
      %vm4566 = vcmp.gt.f32.partialorder %v3947, %v4510
      %vm4567 = vcmp.gt.f32.partialorder %v3948, %v4511
      %vm4568 = vcmp.gt.f32.partialorder %v3949, %v4512
      %vm4569 = vcmp.gt.f32.partialorder %v3950, %v4513
      %vm4570 = vcmp.gt.f32.partialorder %v3951, %v4514
      %vm4571 = vcmp.gt.f32.partialorder %v3952, %v4515
      %vm4572 = vcmp.gt.f32.partialorder %v3953, %v4516
      %vm4573 = vcmp.gt.f32.partialorder %v3954, %v4517
      %vm4574 = vcmp.gt.f32.partialorder %v3955, %v4518
      %vm4575 = vcmp.gt.f32.partialorder %v3956, %v4519
      %vm4576 = vcmp.gt.f32.partialorder %v3957, %v4520
      %vm4577 = vcmp.gt.f32.partialorder %v3958, %v4521
      %vm4578 = vcmp.gt.f32.partialorder %v3959, %v4522
      %vm4579 = vcmp.gt.f32.partialorder %v3960, %v4523
      %vm4580 = vcmp.gt.f32.partialorder %v3961, %v4524
      %vm4581 = vcmp.gt.f32.partialorder %v3962, %v4525
      %v4582 = vsel %vm4462, 1, 0
      %v4583 = vsel %vm4463, 1, 0
      %v4584 = vsel %vm4464, 1, 0
      %v4585 = vsel %vm4465, 1, 0
      %v4586 = vsel %vm4466, 1, 0
      %v4587 = vsel %vm4467, 1, 0
      %v4588 = vsel %vm4468, 1, 0
      %v4589 = vsel %vm4469, 1, 0
      %vm4590 = vcmp.eq.s32.totalorder %v4582, 1
      %vm4591 = vcmp.eq.s32.totalorder %v4583, 1
      %vm4592 = vcmp.eq.s32.totalorder %v4584, 1
      %vm4593 = vcmp.eq.s32.totalorder %v4585, 1
      %vm4594 = vcmp.eq.s32.totalorder %v4586, 1
      %vm4595 = vcmp.eq.s32.totalorder %v4587, 1
      %vm4596 = vcmp.eq.s32.totalorder %v4588, 1
      %vm4597 = vcmp.eq.s32.totalorder %v4589, 1
      %vm4598 = vmand %vm4526, %vm4590
      %vm4599 = vmand %vm4527, %vm4591
      %vm4600 = vmand %vm4528, %vm4592
      %vm4601 = vmand %vm4529, %vm4593
      %vm4602 = vmand %vm4530, %vm4594
      %vm4603 = vmand %vm4531, %vm4595
      %vm4604 = vmand %vm4532, %vm4596
      %vm4605 = vmand %vm4533, %vm4597
      %vm4606 = vmand %vm4534, %vm4590
      %vm4607 = vmand %vm4535, %vm4591
      %vm4608 = vmand %vm4536, %vm4592
      %vm4609 = vmand %vm4537, %vm4593
      %vm4610 = vmand %vm4538, %vm4594
      %vm4611 = vmand %vm4539, %vm4595
      %vm4612 = vmand %vm4540, %vm4596
      %vm4613 = vmand %vm4541, %vm4597
      %vm4614 = vmand %vm4542, %vm4590
      %vm4615 = vmand %vm4543, %vm4591
      %vm4616 = vmand %vm4544, %vm4592
      %vm4617 = vmand %vm4545, %vm4593
      %vm4618 = vmand %vm4546, %vm4594
      %vm4619 = vmand %vm4547, %vm4595
      %vm4620 = vmand %vm4548, %vm4596
      %vm4621 = vmand %vm4549, %vm4597
      %vm4622 = vmand %vm4550, %vm4590
      %vm4623 = vmand %vm4551, %vm4591
      %vm4624 = vmand %vm4552, %vm4592
      %vm4625 = vmand %vm4553, %vm4593
      %vm4626 = vmand %vm4554, %vm4594
      %vm4627 = vmand %vm4555, %vm4595
      %vm4628 = vmand %vm4556, %vm4596
      %vm4629 = vmand %vm4557, %vm4597
      %vm4630 = vmand %vm4558, %vm4590
      %vm4631 = vmand %vm4559, %vm4591
      %vm4632 = vmand %vm4560, %vm4592
      %vm4633 = vmand %vm4561, %vm4593
      %vm4634 = vmand %vm4562, %vm4594
      %vm4635 = vmand %vm4563, %vm4595
      %vm4636 = vmand %vm4564, %vm4596
      %vm4637 = vmand %vm4565, %vm4597
      %vm4638 = vmand %vm4566, %vm4590
      %vm4639 = vmand %vm4567, %vm4591
      %vm4640 = vmand %vm4568, %vm4592
      %vm4641 = vmand %vm4569, %vm4593
      %vm4642 = vmand %vm4570, %vm4594
      %vm4643 = vmand %vm4571, %vm4595
      %vm4644 = vmand %vm4572, %vm4596
      %vm4645 = vmand %vm4573, %vm4597
      %vm4646 = vmand %vm4574, %vm4590
      %vm4647 = vmand %vm4575, %vm4591
      %vm4648 = vmand %vm4576, %vm4592
      %vm4649 = vmand %vm4577, %vm4593
      %vm4650 = vmand %vm4578, %vm4594
      %vm4651 = vmand %vm4579, %vm4595
      %vm4652 = vmand %vm4580, %vm4596
      %vm4653 = vmand %vm4581, %vm4597
      %v4654 = vsel %vm4598, 1.0, 0.0
      %v4655 = vsel %vm4599, 1.0, 0.0
      %v4656 = vsel %vm4600, 1.0, 0.0
      %v4657 = vsel %vm4601, 1.0, 0.0
      %v4658 = vsel %vm4602, 1.0, 0.0
      %v4659 = vsel %vm4603, 1.0, 0.0
      %v4660 = vsel %vm4604, 1.0, 0.0
      %v4661 = vsel %vm4605, 1.0, 0.0
      %v4662 = vsel %vm4606, 1.0, 0.0
      %v4663 = vsel %vm4607, 1.0, 0.0
      %v4664 = vsel %vm4608, 1.0, 0.0
      %v4665 = vsel %vm4609, 1.0, 0.0
      %v4666 = vsel %vm4610, 1.0, 0.0
      %v4667 = vsel %vm4611, 1.0, 0.0
      %v4668 = vsel %vm4612, 1.0, 0.0
      %v4669 = vsel %vm4613, 1.0, 0.0
      %v4670 = vsel %vm4614, 1.0, 0.0
      %v4671 = vsel %vm4615, 1.0, 0.0
      %v4672 = vsel %vm4616, 1.0, 0.0
      %v4673 = vsel %vm4617, 1.0, 0.0
      %v4674 = vsel %vm4618, 1.0, 0.0
      %v4675 = vsel %vm4619, 1.0, 0.0
      %v4676 = vsel %vm4620, 1.0, 0.0
      %v4677 = vsel %vm4621, 1.0, 0.0
      %v4678 = vsel %vm4622, 1.0, 0.0
      %v4679 = vsel %vm4623, 1.0, 0.0
      %v4680 = vsel %vm4624, 1.0, 0.0
      %v4681 = vsel %vm4625, 1.0, 0.0
      %v4682 = vsel %vm4626, 1.0, 0.0
      %v4683 = vsel %vm4627, 1.0, 0.0
      %v4684 = vsel %vm4628, 1.0, 0.0
      %v4685 = vsel %vm4629, 1.0, 0.0
      %v4686 = vsel %vm4630, 1.0, 0.0
      %v4687 = vsel %vm4631, 1.0, 0.0
      %v4688 = vsel %vm4632, 1.0, 0.0
      %v4689 = vsel %vm4633, 1.0, 0.0
      %v4690 = vsel %vm4634, 1.0, 0.0
      %v4691 = vsel %vm4635, 1.0, 0.0
      %v4692 = vsel %vm4636, 1.0, 0.0
      %v4693 = vsel %vm4637, 1.0, 0.0
      %v4694 = vsel %vm4638, 1.0, 0.0
      %v4695 = vsel %vm4639, 1.0, 0.0
      %v4696 = vsel %vm4640, 1.0, 0.0
      %v4697 = vsel %vm4641, 1.0, 0.0
      %v4698 = vsel %vm4642, 1.0, 0.0
      %v4699 = vsel %vm4643, 1.0, 0.0
      %v4700 = vsel %vm4644, 1.0, 0.0
      %v4701 = vsel %vm4645, 1.0, 0.0
      %v4702 = vsel %vm4646, 1.0, 0.0
      %v4703 = vsel %vm4647, 1.0, 0.0
      %v4704 = vsel %vm4648, 1.0, 0.0
      %v4705 = vsel %vm4649, 1.0, 0.0
      %v4706 = vsel %vm4650, 1.0, 0.0
      %v4707 = vsel %vm4651, 1.0, 0.0
      %v4708 = vsel %vm4652, 1.0, 0.0
      %v4709 = vsel %vm4653, 1.0, 0.0
      %vm4710 = vcmask 523264
      %v4711 = vsel %vm4710, %v4654, -inf
      %v4712 = vsel %vm4710, %v4655, -inf
      %v4713 = vmax.f32 %v4711, %v4712
      %v4714 = vsel %vm4710, %v4656, -inf
      %v4715 = vmax.f32 %v4713, %v4714
      %v4716 = vsel %vm4710, %v4657, -inf
      %v4717 = vmax.f32 %v4715, %v4716
      %v4718 = vsel %vm4710, %v4658, -inf
      %v4719 = vmax.f32 %v4717, %v4718
      %v4720 = vsel %vm4710, %v4659, -inf
      %v4721 = vmax.f32 %v4719, %v4720
      %v4722 = vsel %vm4710, %v4660, -inf
      %v4723 = vmax.f32 %v4721, %v4722
      %v4724 = vsel %vm4710, %v4661, -inf
      %v4725 = vmax.f32 %v4723, %v4724
      %v4726 = vrot.slane %v4725, 4
      %v4727 = vmax.f32 %v4725, %v4726
      %v4728 = vrot.slane %v4727, 2
      %v4729 = vmax.f32 %v4727, %v4728
      %v4730 = vrot.slane %v4729, 1
      %v4731 = vmax.f32 %v4729, %v4730
      %v4732 = vsel %vm4710, %v4662, -inf
      %v4733 = vsel %vm4710, %v4663, -inf
      %v4734 = vmax.f32 %v4732, %v4733
      %v4735 = vsel %vm4710, %v4664, -inf
      %v4736 = vmax.f32 %v4734, %v4735
      %v4737 = vsel %vm4710, %v4665, -inf
      %v4738 = vmax.f32 %v4736, %v4737
      %v4739 = vsel %vm4710, %v4666, -inf
      %v4740 = vmax.f32 %v4738, %v4739
      %v4741 = vsel %vm4710, %v4667, -inf
      %v4742 = vmax.f32 %v4740, %v4741
      %v4743 = vsel %vm4710, %v4668, -inf
      %v4744 = vmax.f32 %v4742, %v4743
      %v4745 = vsel %vm4710, %v4669, -inf
      %v4746 = vmax.f32 %v4744, %v4745
      %v4747 = vrot.slane %v4746, 4
      %v4748 = vmax.f32 %v4746, %v4747
      %v4749 = vrot.slane %v4748, 2
      %v4750 = vmax.f32 %v4748, %v4749
      %v4751 = vrot.slane %v4750, 1
      %v4752 = vmax.f32 %v4750, %v4751
      %v4753 = vsel %vm4710, %v4670, -inf
      %v4754 = vsel %vm4710, %v4671, -inf
      %v4755 = vmax.f32 %v4753, %v4754
      %v4756 = vsel %vm4710, %v4672, -inf
      %v4757 = vmax.f32 %v4755, %v4756
      %v4758 = vsel %vm4710, %v4673, -inf
      %v4759 = vmax.f32 %v4757, %v4758
      %v4760 = vsel %vm4710, %v4674, -inf
      %v4761 = vmax.f32 %v4759, %v4760
      %v4762 = vsel %vm4710, %v4675, -inf
      %v4763 = vmax.f32 %v4761, %v4762
      %v4764 = vsel %vm4710, %v4676, -inf
      %v4765 = vmax.f32 %v4763, %v4764
      %v4766 = vsel %vm4710, %v4677, -inf
      %v4767 = vmax.f32 %v4765, %v4766
      %v4768 = vrot.slane %v4767, 4
      %v4769 = vmax.f32 %v4767, %v4768
      %v4770 = vrot.slane %v4769, 2
      %v4771 = vmax.f32 %v4769, %v4770
      %v4772 = vrot.slane %v4771, 1
      %v4773 = vmax.f32 %v4771, %v4772
      %v4774 = vsel %vm4710, %v4678, -inf
      %v4775 = vsel %vm4710, %v4679, -inf
      %v4776 = vmax.f32 %v4774, %v4775
      %v4777 = vsel %vm4710, %v4680, -inf
      %v4778 = vmax.f32 %v4776, %v4777
      %v4779 = vsel %vm4710, %v4681, -inf
      %v4780 = vmax.f32 %v4778, %v4779
      %v4781 = vsel %vm4710, %v4682, -inf
      %v4782 = vmax.f32 %v4780, %v4781
      %v4783 = vsel %vm4710, %v4683, -inf
      %v4784 = vmax.f32 %v4782, %v4783
      %v4785 = vsel %vm4710, %v4684, -inf
      %v4786 = vmax.f32 %v4784, %v4785
      %v4787 = vsel %vm4710, %v4685, -inf
      %v4788 = vmax.f32 %v4786, %v4787
      %v4789 = vrot.slane %v4788, 4
      %v4790 = vmax.f32 %v4788, %v4789
      %v4791 = vrot.slane %v4790, 2
      %v4792 = vmax.f32 %v4790, %v4791
      %v4793 = vrot.slane %v4792, 1
      %v4794 = vmax.f32 %v4792, %v4793
      %v4795 = vsel %vm4710, %v4686, -inf
      %v4796 = vsel %vm4710, %v4687, -inf
      %v4797 = vmax.f32 %v4795, %v4796
      %v4798 = vsel %vm4710, %v4688, -inf
      %v4799 = vmax.f32 %v4797, %v4798
      %v4800 = vsel %vm4710, %v4689, -inf
      %v4801 = vmax.f32 %v4799, %v4800
      %v4802 = vsel %vm4710, %v4690, -inf
      %v4803 = vmax.f32 %v4801, %v4802
      %v4804 = vsel %vm4710, %v4691, -inf
      %v4805 = vmax.f32 %v4803, %v4804
      %v4806 = vsel %vm4710, %v4692, -inf
      %v4807 = vmax.f32 %v4805, %v4806
      %v4808 = vsel %vm4710, %v4693, -inf
      %v4809 = vmax.f32 %v4807, %v4808
      %v4810 = vrot.slane %v4809, 4
      %v4811 = vmax.f32 %v4809, %v4810
      %v4812 = vrot.slane %v4811, 2
      %v4813 = vmax.f32 %v4811, %v4812
      %v4814 = vrot.slane %v4813, 1
      %v4815 = vmax.f32 %v4813, %v4814
      %v4816 = vsel %vm4710, %v4694, -inf
      %v4817 = vsel %vm4710, %v4695, -inf
      %v4818 = vmax.f32 %v4816, %v4817
      %v4819 = vsel %vm4710, %v4696, -inf
      %v4820 = vmax.f32 %v4818, %v4819
      %v4821 = vsel %vm4710, %v4697, -inf
      %v4822 = vmax.f32 %v4820, %v4821
      %v4823 = vsel %vm4710, %v4698, -inf
      %v4824 = vmax.f32 %v4822, %v4823
      %v4825 = vsel %vm4710, %v4699, -inf
      %v4826 = vmax.f32 %v4824, %v4825
      %v4827 = vsel %vm4710, %v4700, -inf
      %v4828 = vmax.f32 %v4826, %v4827
      %v4829 = vsel %vm4710, %v4701, -inf
      %v4830 = vmax.f32 %v4828, %v4829
      %v4831 = vrot.slane %v4830, 4
      %v4832 = vmax.f32 %v4830, %v4831
      %v4833 = vrot.slane %v4832, 2
      %v4834 = vmax.f32 %v4832, %v4833
      %v4835 = vrot.slane %v4834, 1
      %v4836 = vmax.f32 %v4834, %v4835
      %v4837 = vsel %vm4710, %v4702, -inf
      %v4838 = vsel %vm4710, %v4703, -inf
      %v4839 = vmax.f32 %v4837, %v4838
      %v4840 = vsel %vm4710, %v4704, -inf
      %v4841 = vmax.f32 %v4839, %v4840
      %v4842 = vsel %vm4710, %v4705, -inf
      %v4843 = vmax.f32 %v4841, %v4842
      %v4844 = vsel %vm4710, %v4706, -inf
      %v4845 = vmax.f32 %v4843, %v4844
      %v4846 = vsel %vm4710, %v4707, -inf
      %v4847 = vmax.f32 %v4845, %v4846
      %v4848 = vsel %vm4710, %v4708, -inf
      %v4849 = vmax.f32 %v4847, %v4848
      %v4850 = vsel %vm4710, %v4709, -inf
      %v4851 = vmax.f32 %v4849, %v4850
      %v4852 = vrot.slane %v4851, 4
      %v4853 = vmax.f32 %v4851, %v4852
      %v4854 = vrot.slane %v4853, 2
      %v4855 = vmax.f32 %v4853, %v4854
      %v4856 = vrot.slane %v4855, 1
      %v4857 = vmax.f32 %v4855, %v4856
      %vm4858 = vcmp.gt.f32.partialorder %v4731, 0.0
      %vm4859 = vcmp.gt.f32.partialorder %v4752, 0.0
      %vm4860 = vcmp.gt.f32.partialorder %v4773, 0.0
      %vm4861 = vcmp.gt.f32.partialorder %v4794, 0.0
      %vm4862 = vcmp.gt.f32.partialorder %v4815, 0.0
      %vm4863 = vcmp.gt.f32.partialorder %v4836, 0.0
      %vm4864 = vcmp.gt.f32.partialorder %v4857, 0.0
      %v4865 = vld [vmem:[%s198] sm:$0x7f]
      %v4867 = vrot.slane %v4865, 1
      %v4868 = vrot.slane %v4865, 2
      %v4869 = vrot.slane %v4865, 3
      %v4870 = vrot.slane %v4865, 4
      %v4871 = vrot.slane %v4865, 5
      %v4872 = vrot.slane %v4865, 6
      %v4880 = vsel %vm4858, -1.0, %v4865
      %v4881 = vsel %vm4859, -1.0, %v4867
      %v4882 = vsel %vm4860, -1.0, %v4868
      %v4883 = vsel %vm4861, -1.0, %v4869
      %v4884 = vsel %vm4862, -1.0, %v4870
      %v4885 = vsel %vm4863, -1.0, %v4871
      %v4886 = vsel %vm4864, -1.0, %v4872
      %v4894 = vrot.slane %v4881, 7
      %v4895 = vsel %vm2269, %v4894, %v4880
      %v4896 = vrot.slane %v4882, 6
      %v4897 = vsel %vm2270, %v4896, %v4895
      %v4898 = vrot.slane %v4883, 5
      %v4899 = vsel %vm2272, %v4898, %v4897
      %v4900 = vrot.slane %v4884, 4
      %v4901 = vsel %vm2274, %v4900, %v4899
      %v4902 = vrot.slane %v4885, 3
      %v4903 = vsel %vm2276, %v4902, %v4901
      %v4904 = vrot.slane %v4886, 2
      %v4905 = vsel %vm2278, %v4904, %v4903
      %vm4907 = vcmask 522240
      %4908 = vst.msk [vmem:[%s202] sm:$0x7f] %vm4907, %v4905
      %p4909 = scmp.lt.s32.totalorder %s14, 1
      %s4910 = scalar_select %p4909, %s14, 1
      %s4911 = smul.addr %s4910, 8
      %s4912 = scalar_lea.vmem %s3, %s4911
      // Predicated region
      $region33: #{_decode_core.4} parent=31 // pred_check
        %p4913 = pneg %p110
      $region34: #{_decode_core.4} parent=31 // pred_check_branch
        %4915 = sbr.rel (%p4913) target = $region36
      $region35: #{_decode_core.4} parent=31 // pred_region
        _
      $region36: #{_decode_core.4} parent=31 // pred_fallthru
        _
    $region32: #{_decode_core.4} parent=5 // pred_fallthru
      _
    %p4916 = scmp.le.s32.totalorder 2, %s9
    // Predicated region
    $region37: #{_decode_core.4} parent=5 // pred_check
      %p4917 = pneg %p4916
    $region38: #{_decode_core.4} parent=5 // pred_check_branch
      %4919 = sbr.rel (%p4917) target = $region40
    $region39: #{_decode_core.4} parent=5 // pred_region
      %s4920 = ssub.s32 %s9, 2
      // Predicated region
      $region41: #{_decode_core.4} parent=39 // pred_check
        %p4921 = pneg %p116
      $region42: #{_decode_core.4} parent=39 // pred_check_branch
        %4923 = sbr.rel (%p4921) target = $region44
      $region43: #{_decode_core.4} parent=39 // pred_region
        %p4924 = scmp.lt.s32.totalorder %s15, 1
        %s4925 = scalar_select %p4924, %s15, 1
        %s4926 = smul.addr %s4925, 8
        %s4927 = scalar_lea.vmem %s3, %s4926
      $region44: #{_decode_core.4} parent=39 // pred_fallthru
        _
    $region40: #{_decode_core.4} parent=5 // pred_fallthru
      _
  $region6: #{_decode_core.4} parent=0 // loop_footer
    %s13 = sadd.s32 1, %s9
  $region7: #{_decode_core.4} parent=0 // loop_footer_branch
    %8 = sbr.rel target = $region3
  $region8: #{_decode_core.4} parent=0 // loop_exit
    _

</llo_original>
